<compile_context>
chip_gen: v5e
topology: v5e:2x2
jax: 0.10.0
libtpu: 0.0.40
codegen_flags: <defaults>
</compile_context>

<pallas_src>
import functools

import jax
import jax.numpy as jnp
import numpy as np
from jax.experimental import pallas as pl
from jax.experimental.pallas import tpu as pltpu


def _round_up(x, m):
    return ((x + m - 1) // m) * m


def _cdiv(a, b):
    return -(-a // b)


# ---------------------------------------------------------------------------
# Fused kernel: Linear(in_dim+64 -> 512) (mask folded through) + SiLU
#               + Linear(512 -> 512) + SiLU + Linear(512 -> out_dim)
# ---------------------------------------------------------------------------

def _position_net_kernel(pe_ref, xy_ref, mask_ref, null_h1_ref,
                         w1a_ref, w1b_ref, b1_ref,
                         w2_ref, b2_ref, w3_ref, b3_ref,
                         o_ref, *, compute_dtype):
    f32 = jnp.float32
    cd = compute_dtype

    # Linear #1.  torch.cat([pe, xyxy], -1) @ W1 is folded into two dots
    # (pe @ W1a + xyxy @ W1b); the null-feature blend is applied *after* the
    # matmul on the (tm, hidden) result (mathematically identical, mask is a
    # per-row scalar).
    h_pos = (jnp.dot(pe_ref[...], w1a_ref[...], preferred_element_type=f32)
             + jnp.dot(xy_ref[...], w1b_ref[...], preferred_element_type=f32)
             + b1_ref[...])
    m = mask_ref[...]                                        # (tm, 1) f32
    h = m * h_pos + (1.0 - m) * null_h1_ref[...]

    # SiLU in f32; approx reciprocal keeps the divide on the EUP slot.
    h = h * pl.reciprocal(1.0 + jnp.exp(-h), approx=True)

    # Linear #2 + SiLU
    h = jnp.dot(h.astype(cd), w2_ref[...], preferred_element_type=f32) + b2_ref[...]
    h = h * pl.reciprocal(1.0 + jnp.exp(-h), approx=True)

    # Linear #3 (output projection)
    out = jnp.dot(h.astype(cd), w3_ref[...], preferred_element_type=f32) + b3_ref[...]
    o_ref[...] = out.astype(o_ref.dtype)


# ---------------------------------------------------------------------------
# Fourier embedding (matches FourierEmbedder exactly): tiny, done in XLA.
# ---------------------------------------------------------------------------

def fourier_embed(x, num_freqs=8, temperature=100.0):
    """cat([sin(f0*x), cos(f0*x), sin(f1*x), cos(f1*x), ...], axis=-1)."""
    freqs = np.asarray(
        temperature ** (np.arange(num_freqs, dtype=np.float64) / num_freqs),
        dtype=np.float32)
    pieces = []
    for i in range(num_freqs):
        pieces.append(jnp.sin(freqs[i] * x))
        pieces.append(jnp.cos(freqs[i] * x))
    return jnp.concatenate(pieces, axis=-1)


# ---------------------------------------------------------------------------
# Forward wrapper
# ---------------------------------------------------------------------------

def position_net(boxes, masks, positive_embeddings, params, *,
                 fourier_freqs=8, temperature=100.0,
                 compute_dtype=jnp.bfloat16, out_dtype=None, block_rows=512):
    """boxes: (B,N,4), masks: (B,N), positive_embeddings: (B,N,in_dim)."""
    B, N, _ = boxes.shape
    in_dim = positive_embeddings.shape[-1]
    position_dim = fourier_freqs * 2 * 4
    w1, w2, w3 = params["w1"], params["w2"], params["w3"]
    hidden = w1.shape[1]
    out_dim = w3.shape[1]
    assert w1.shape[0] == in_dim + position_dim

    f32 = jnp.float32
    cd = compute_dtype
    od = cd if out_dtype is None else out_dtype
    M = B * N

    # Activation streams enter the kernel directly in the compute dtype
    # (bf16 halves the two dominant HBM streams); no f32 promotion at the boundary.
    pe = positive_embeddings.reshape(M, in_dim).astype(cd)
    xy = fourier_embed(boxes.astype(f32), fourier_freqs, temperature)
    xy = xy.reshape(M, position_dim).astype(cd)
    mk = masks.reshape(M, 1).astype(f32)

    # Row tiling: no wrapper-side padding; grid = cdiv(M, tm) and Pallas masks the
    # ragged last block.  >= 2 grid steps (when M allows) so both v7x TensorCores
    # get work; tm is chosen to minimize last-tile waste and kept a multiple of 8.
    if M <= 8:
        tm = M
        grid = (1,)
    else:
        n_steps = max(_cdiv(M, block_rows), 2)
        tm = min(_round_up(_cdiv(M, n_steps), 8), _round_up(M, 8))
        grid = (_cdiv(M, tm),)

    w1a = w1[:in_dim].astype(cd)          # positive-embedding rows of W1
    w1b = w1[in_dim:].astype(cd)          # fourier-embedding rows of W1
    w2c = w2.astype(cd)
    b1 = params["b1"].reshape(1, hidden).astype(f32)
    b2 = params["b2"].reshape(1, hidden).astype(f32)

    # Null branch folded through Linear #1 (a (1, hidden) f32 constant).
    null_h1 = (jnp.dot(params["null_positive"].reshape(1, in_dim).astype(f32),
                       w1[:in_dim].astype(f32))
               + jnp.dot(params["null_position"].reshape(1, position_dim).astype(f32),
                         w1[in_dim:].astype(f32))
               + b1)

    # Lane-dense output: pad out_dim columns of W3/b3 up to a multiple of 128 and
    # slice after the kernel (no-op for real GLIGEN dims 768/1280/2048).
    out_dim_p = _round_up(out_dim, 128)
    w3c = w3.astype(cd)
    b3 = params["b3"].reshape(1, out_dim).astype(f32)
    if out_dim_p != out_dim:
        w3c = jnp.pad(w3c, ((0, 0), (0, out_dim_p - out_dim)))
        b3 = jnp.pad(b3, ((0, 0), (0, out_dim_p - out_dim)))

    def row_spec(width):
        return pl.BlockSpec((tm, width), lambda i: (i, 0))

    def run(single_buffer_weights):
        if single_buffer_weights:
            def resident_spec(shape):
                # Constant-index inputs are DMA'd once; single-buffer them so the
                # default double-buffering doesn't waste VMEM (matters on v7x).
                return pl.BlockSpec(shape, lambda i: (0, 0),
                                    pipeline_mode=pl.Buffered(1))
        else:
            def resident_spec(shape):
                return pl.BlockSpec(shape, lambda i: (0, 0))

        return pl.pallas_call(
            functools.partial(_position_net_kernel, compute_dtype=cd),
            grid=grid,
            out_shape=jax.ShapeDtypeStruct((M, out_dim_p), od),
            in_specs=[
                row_spec(in_dim),                        # positive embeddings (cd)
                row_spec(position_dim),                  # fourier embedding (cd)
                row_spec(1),                             # mask (f32)
                resident_spec((1, hidden)),              # null branch through L1
                resident_spec((in_dim, hidden)),         # W1a
                resident_spec((position_dim, hidden)),   # W1b
                resident_spec((1, hidden)),              # b1
                resident_spec((hidden, hidden)),         # W2
                resident_spec((1, hidden)),              # b2
                resident_spec((hidden, out_dim_p)),      # W3
                resident_spec((1, out_dim_p)),           # b3
            ],
            out_specs=row_spec(out_dim_p),
            compiler_params=pltpu.CompilerParams(
                dimension_semantics=("parallel",),
                vmem_limit_bytes=32 * 1024 * 1024,
            ),
        )(pe, xy, mk, null_h1, w1a, w1b, b1, w2c, b2, w3c, b3)

    try:
        out = run(single_buffer_weights=True)
    except Exception:
        # pl.Buffered(1) unsupported by this jax/libtpu combo: fall back to the
        # default double-buffered resident specs (pure VMEM-headroom optimization).
        out = run(single_buffer_weights=False)

    if out_dim_p != out_dim:
        out = out[:, :out_dim]
    return out.reshape(B, N, out_dim)


# ---------------------------------------------------------------------------
# Pure-JAX reference (mirrors the PyTorch module) + deterministic init
# ---------------------------------------------------------------------------

def position_net_reference(boxes, masks, positive_embeddings, params,
                           fourier_freqs=8, temperature=100.0):
    m = masks[..., None].astype(jnp.float32)
    xyxy = fourier_embed(boxes.astype(jnp.float32), fourier_freqs, temperature)
    pe = (positive_embeddings.astype(jnp.float32) * m
          + (1.0 - m) * params["null_positive"].reshape(1, 1, -1))
    xyxy = xyxy * m + (1.0 - m) * params["null_position"].reshape(1, 1, -1)
    x = jnp.concatenate([pe, xyxy], axis=-1)
    hp = jax.lax.Precision.HIGHEST
    h = jnp.dot(x, params["w1"], precision=hp) + params["b1"]
    h = h * jax.nn.sigmoid(h)
    h = jnp.dot(h, params["w2"], precision=hp) + params["b2"]
    h = h * jax.nn.sigmoid(h)
    return jnp.dot(h, params["w3"], precision=hp) + params["b3"]


def init_params(key, in_dim, out_dim, fourier_freqs=8):
    position_dim = fourier_freqs * 2 * 4
    hidden = 512  # hard-coded in the PyTorch module
    ks = jax.random.split(key, 8)

    def w(k, shape, scale=0.05):
        return scale * jax.random.normal(k, shape, jnp.float32)

    return dict(
        w1=w(ks[0], (in_dim + position_dim, hidden)),
        b1=w(ks[1], (hidden,), 0.1),
        w2=w(ks[2], (hidden, hidden)),
        b2=w(ks[3], (hidden,), 0.1),
        w3=w(ks[4], (hidden, out_dim)),
        b3=w(ks[5], (out_dim,), 0.1),
        # The module registers these zero-initialized; use small random values so
        # the (1 - mask) * null branch is numerically exercised by the test.
        null_positive=w(ks[6], (in_dim,), 0.5),
        null_position=w(ks[7], (position_dim,), 0.5),
    )


if __name__ == "__main__":
    B, N = 2, 14                      # N not a multiple of 8 -> exercises ragged tile
    in_dim, out_dim, fourier_freqs = 64, 64, 8

    key = jax.random.PRNGKey(0)
    kb, km, ke, kp = jax.random.split(key, 4)
    boxes = jax.random.uniform(kb, (B, N, 4), jnp.float32)               # xyxy in [0,1]
    masks = (jax.random.uniform(km, (B, N)) > 0.3).astype(jnp.float32)   # some boxes nulled
    positive_embeddings = jax.random.normal(ke, (B, N, in_dim), jnp.float32)
    params = init_params(kp, in_dim, out_dim, fourier_freqs)

    ref = position_net_reference(boxes, masks, positive_embeddings, params,
                                 fourier_freqs)

    out_f32 = position_net(boxes, masks, positive_embeddings, params,
                           fourier_freqs=fourier_freqs,
                           compute_dtype=jnp.float32)
    out_bf16 = position_net(boxes, masks, positive_embeddings, params,
                            fourier_freqs=fourier_freqs,
                            compute_dtype=jnp.bfloat16)
    jax.block_until_ready((out_f32, out_bf16))

    assert out_f32.shape == (B, N, out_dim)
    assert out_bf16.shape == (B, N, out_dim)
    assert out_f32.dtype == jnp.float32
    assert out_bf16.dtype == jnp.bfloat16
    assert bool(jnp.all(jnp.isfinite(out_f32)))
    assert bool(jnp.all(jnp.isfinite(out_bf16.astype(jnp.float32))))
    assert bool(jnp.allclose(out_f32, ref, rtol=2e-2, atol=5e-3)), \
        float(jnp.max(jnp.abs(out_f32 - ref)))
    assert bool(jnp.allclose(out_bf16.astype(jnp.float32), ref, rtol=1e-1, atol=2e-2)), \
        float(jnp.max(jnp.abs(out_bf16.astype(jnp.float32) - ref)))
    print("KERNEL_OK")
</pallas_src>

<mosaic_0001>
module attributes {stable_mosaic.version = 11 : i64} {
  func.func @_position_net_kernel(%arg0: i32, %arg1: memref<16x64xf32, #tpu.memory_space<vmem>>, %arg2: memref<16x64xf32, #tpu.memory_space<vmem>>, %arg3: memref<16x1xf32, #tpu.memory_space<vmem>>, %arg4: memref<1x512xf32, #tpu.memory_space<vmem>>, %arg5: memref<64x512xf32, #tpu.memory_space<vmem>>, %arg6: memref<64x512xf32, #tpu.memory_space<vmem>>, %arg7: memref<1x512xf32, #tpu.memory_space<vmem>>, %arg8: memref<512x512xf32, #tpu.memory_space<vmem>>, %arg9: memref<1x512xf32, #tpu.memory_space<vmem>>, %arg10: memref<512x128xf32, #tpu.memory_space<vmem>>, %arg11: memref<1x128xf32, #tpu.memory_space<vmem>>, %arg12: memref<16x128xf32, #tpu.memory_space<vmem>>) attributes {dimension_semantics = [#tpu.dimension_semantics<parallel>], iteration_bounds = array<i64: 2>, scalar_prefetch = 0 : i64, scratch_operands = 0 : i64, tpu.core_type = #tpu.core_type<tc>, window_params = [{transform_indices = @transform_0, window_bounds = array<i64: 16, 64>}, {transform_indices = @transform_1, window_bounds = array<i64: 16, 64>}, {transform_indices = @transform_2, window_bounds = array<i64: 16, 1>}, {pipeline_mode = #tpu.pipeline_mode<synchronous>, transform_indices = @transform_3, window_bounds = array<i64: 1, 512>}, {pipeline_mode = #tpu.pipeline_mode<synchronous>, transform_indices = @transform_4, window_bounds = array<i64: 64, 512>}, {pipeline_mode = #tpu.pipeline_mode<synchronous>, transform_indices = @transform_5, window_bounds = array<i64: 64, 512>}, {pipeline_mode = #tpu.pipeline_mode<synchronous>, transform_indices = @transform_6, window_bounds = array<i64: 1, 512>}, {pipeline_mode = #tpu.pipeline_mode<synchronous>, transform_indices = @transform_7, window_bounds = array<i64: 512, 512>}, {pipeline_mode = #tpu.pipeline_mode<synchronous>, transform_indices = @transform_8, window_bounds = array<i64: 1, 512>}, {pipeline_mode = #tpu.pipeline_mode<synchronous>, transform_indices = @transform_9, window_bounds = array<i64: 512, 128>}, {pipeline_mode = #tpu.pipeline_mode<synchronous>, transform_indices = @transform_10, window_bounds = array<i64: 1, 128>}, {transform_indices = @transform_11, window_bounds = array<i64: 16, 128>}]} {
    %c0 = arith.constant 0 : index
    %c0_0 = arith.constant 0 : index
    %0 = vector.load %arg1[%c0, %c0_0] : memref<16x64xf32, #tpu.memory_space<vmem>>, vector<16x64xf32>
    %c0_1 = arith.constant 0 : index
    %c0_2 = arith.constant 0 : index
    %1 = vector.load %arg5[%c0_1, %c0_2] : memref<64x512xf32, #tpu.memory_space<vmem>>, vector<64x512xf32>
    %cst = arith.constant dense<0.000000e+00> : vector<16x512xf32>
    %2 = tpu.matmul %0, %1, %cst {dimension_numbers = #tpu.dot_dimension_numbers<[1], [0], [0], [1], [0, 0, 1, 1], [], []>} : vector<16x64xf32>, vector<64x512xf32>, vector<16x512xf32> -> vector<16x512xf32>
    %c0_3 = arith.constant 0 : index
    %c0_4 = arith.constant 0 : index
    %3 = vector.load %arg2[%c0_3, %c0_4] : memref<16x64xf32, #tpu.memory_space<vmem>>, vector<16x64xf32>
    %c0_5 = arith.constant 0 : index
    %c0_6 = arith.constant 0 : index
    %4 = vector.load %arg6[%c0_5, %c0_6] : memref<64x512xf32, #tpu.memory_space<vmem>>, vector<64x512xf32>
    %cst_7 = arith.constant dense<0.000000e+00> : vector<16x512xf32>
    %5 = tpu.matmul %3, %4, %cst_7 {dimension_numbers = #tpu.dot_dimension_numbers<[1], [0], [0], [1], [0, 0, 1, 1], [], []>} : vector<16x64xf32>, vector<64x512xf32>, vector<16x512xf32> -> vector<16x512xf32>
    %6 = arith.addf %2, %5 : vector<16x512xf32>
    %c0_8 = arith.constant 0 : index
    %c0_9 = arith.constant 0 : index
    %7 = vector.load %arg7[%c0_8, %c0_9] : memref<1x512xf32, #tpu.memory_space<vmem>>, vector<1x512xf32>
    %8 = vector.broadcast %7 : vector<1x512xf32> to vector<16x512xf32>
    %9 = arith.addf %6, %8 : vector<16x512xf32>
    %c0_10 = arith.constant 0 : index
    %c0_11 = arith.constant 0 : index
    %10 = vector.load %arg3[%c0_10, %c0_11] : memref<16x1xf32, #tpu.memory_space<vmem>>, vector<16x1xf32>
    %11 = vector.broadcast %10 : vector<16x1xf32> to vector<16x512xf32>
    %12 = arith.mulf %11, %9 : vector<16x512xf32>
    %cst_12 = arith.constant 1.000000e+00 : f32
    %13 = vector.broadcast %cst_12 : f32 to vector<16x1xf32>
    %14 = arith.subf %13, %10 : vector<16x1xf32>
    %c0_13 = arith.constant 0 : index
    %c0_14 = arith.constant 0 : index
    %15 = vector.load %arg4[%c0_13, %c0_14] : memref<1x512xf32, #tpu.memory_space<vmem>>, vector<1x512xf32>
    %16 = vector.broadcast %14 : vector<16x1xf32> to vector<16x512xf32>
    %17 = vector.broadcast %15 : vector<1x512xf32> to vector<16x512xf32>
    %18 = arith.mulf %16, %17 : vector<16x512xf32>
    %19 = arith.addf %12, %18 : vector<16x512xf32>
    %cst_15 = arith.constant 0.000000e+00 : f32
    %20 = vector.broadcast %cst_15 : f32 to vector<16x512xf32>
    %21 = arith.subf %20, %19 : vector<16x512xf32>
    %22 = math.exp %21 : vector<16x512xf32>
    %cst_16 = arith.constant 1.000000e+00 : f32
    %23 = vector.broadcast %cst_16 : f32 to vector<16x512xf32>
    %24 = arith.addf %23, %22 : vector<16x512xf32>
    %25 = tpu.reciprocal %24 {approx = true} : vector<16x512xf32> -> vector<16x512xf32>
    %26 = arith.mulf %19, %25 : vector<16x512xf32>
    %c0_17 = arith.constant 0 : index
    %c0_18 = arith.constant 0 : index
    %27 = vector.load %arg8[%c0_17, %c0_18] : memref<512x512xf32, #tpu.memory_space<vmem>>, vector<512x512xf32>
    %cst_19 = arith.constant dense<0.000000e+00> : vector<16x512xf32>
    %28 = tpu.matmul %26, %27, %cst_19 {dimension_numbers = #tpu.dot_dimension_numbers<[1], [0], [0], [1], [0, 0, 1, 1], [], []>} : vector<16x512xf32>, vector<512x512xf32>, vector<16x512xf32> -> vector<16x512xf32>
    %c0_20 = arith.constant 0 : index
    %c0_21 = arith.constant 0 : index
    %29 = vector.load %arg9[%c0_20, %c0_21] : memref<1x512xf32, #tpu.memory_space<vmem>>, vector<1x512xf32>
    %30 = vector.broadcast %29 : vector<1x512xf32> to vector<16x512xf32>
    %31 = arith.addf %28, %30 : vector<16x512xf32>
    %cst_22 = arith.constant 0.000000e+00 : f32
    %32 = vector.broadcast %cst_22 : f32 to vector<16x512xf32>
    %33 = arith.subf %32, %31 : vector<16x512xf32>
    %34 = math.exp %33 : vector<16x512xf32>
    %cst_23 = arith.constant 1.000000e+00 : f32
    %35 = vector.broadcast %cst_23 : f32 to vector<16x512xf32>
    %36 = arith.addf %35, %34 : vector<16x512xf32>
    %37 = tpu.reciprocal %36 {approx = true} : vector<16x512xf32> -> vector<16x512xf32>
    %38 = arith.mulf %31, %37 : vector<16x512xf32>
    %c0_24 = arith.constant 0 : index
    %c0_25 = arith.constant 0 : index
    %39 = vector.load %arg10[%c0_24, %c0_25] : memref<512x128xf32, #tpu.memory_space<vmem>>, vector<512x128xf32>
    %cst_26 = arith.constant dense<0.000000e+00> : vector<16x128xf32>
    %40 = tpu.matmul %38, %39, %cst_26 {dimension_numbers = #tpu.dot_dimension_numbers<[1], [0], [0], [1], [0, 0, 1, 1], [], []>} : vector<16x512xf32>, vector<512x128xf32>, vector<16x128xf32> -> vector<16x128xf32>
    %c0_27 = arith.constant 0 : index
    %c0_28 = arith.constant 0 : index
    %41 = vector.load %arg11[%c0_27, %c0_28] : memref<1x128xf32, #tpu.memory_space<vmem>>, vector<1x128xf32>
    %42 = vector.broadcast %41 : vector<1x128xf32> to vector<16x128xf32>
    %43 = arith.addf %40, %42 : vector<16x128xf32>
    %c0_29 = arith.constant 0 : index
    %c0_30 = arith.constant 0 : index
    %44 = vector.load %arg12[%c0_29, %c0_30] : memref<16x128xf32, #tpu.memory_space<vmem>>, vector<16x128xf32>
    tpu.vector_store %arg12[%c0_29, %c0_30], %43 {strides = array<i32>} : memref<16x128xf32, #tpu.memory_space<vmem>>, vector<16x128xf32>,
    return
  }
  func.func @transform_0(%arg0: i32) -> (i32, i32) {
    %c0_i32 = arith.constant 0 : i32
    %c0_i32_0 = arith.constant 0 : i32
    return %arg0, %c0_i32 : i32, i32
  }
  func.func @transform_1(%arg0: i32) -> (i32, i32) {
    %c0_i32 = arith.constant 0 : i32
    %c0_i32_0 = arith.constant 0 : i32
    return %arg0, %c0_i32 : i32, i32
  }
  func.func @transform_2(%arg0: i32) -> (i32, i32) {
    %c0_i32 = arith.constant 0 : i32
    %c0_i32_0 = arith.constant 0 : i32
    return %arg0, %c0_i32 : i32, i32
  }
  func.func @transform_3(%arg0: i32) -> (i32, i32) {
    %c0_i32 = arith.constant 0 : i32
    %c0_i32_0 = arith.constant 0 : i32
    %c0_i32_1 = arith.constant 0 : i32
    return %c0_i32, %c0_i32_0 : i32, i32
  }
  func.func @transform_4(%arg0: i32) -> (i32, i32) {
    %c0_i32 = arith.constant 0 : i32
    %c0_i32_0 = arith.constant 0 : i32
    %c0_i32_1 = arith.constant 0 : i32
    return %c0_i32, %c0_i32_0 : i32, i32
  }
  func.func @transform_5(%arg0: i32) -> (i32, i32) {
    %c0_i32 = arith.constant 0 : i32
    %c0_i32_0 = arith.constant 0 : i32
    %c0_i32_1 = arith.constant 0 : i32
    return %c0_i32, %c0_i32_0 : i32, i32
  }
  func.func @transform_6(%arg0: i32) -> (i32, i32) {
    %c0_i32 = arith.constant 0 : i32
    %c0_i32_0 = arith.constant 0 : i32
    %c0_i32_1 = arith.constant 0 : i32
    return %c0_i32, %c0_i32_0 : i32, i32
  }
  func.func @transform_7(%arg0: i32) -> (i32, i32) {
    %c0_i32 = arith.constant 0 : i32
    %c0_i32_0 = arith.constant 0 : i32
    %c0_i32_1 = arith.constant 0 : i32
    return %c0_i32, %c0_i32_0 : i32, i32
  }
  func.func @transform_8(%arg0: i32) -> (i32, i32) {
    %c0_i32 = arith.constant 0 : i32
    %c0_i32_0 = arith.constant 0 : i32
    %c0_i32_1 = arith.constant 0 : i32
    return %c0_i32, %c0_i32_0 : i32, i32
  }
  func.func @transform_9(%arg0: i32) -> (i32, i32) {
    %c0_i32 = arith.constant 0 : i32
    %c0_i32_0 = arith.constant 0 : i32
    %c0_i32_1 = arith.constant 0 : i32
    return %c0_i32, %c0_i32_0 : i32, i32
  }
  func.func @transform_10(%arg0: i32) -> (i32, i32) {
    %c0_i32 = arith.constant 0 : i32
    %c0_i32_0 = arith.constant 0 : i32
    %c0_i32_1 = arith.constant 0 : i32
    return %c0_i32, %c0_i32_0 : i32, i32
  }
  func.func @transform_11(%arg0: i32) -> (i32, i32) {
    %c0_i32 = arith.constant 0 : i32
    %c0_i32_0 = arith.constant 0 : i32
    return %arg0, %c0_i32 : i32, i32
  }
}

module attributes {stable_mosaic.version = 11 : i64} {
  func.func @_position_net_kernel(%arg0: i32, %arg1: memref<16x64xf32, #tpu.memory_space<vmem>>, %arg2: memref<16x64xf32, #tpu.memory_space<vmem>>, %arg3: memref<16x1xf32, #tpu.memory_space<vmem>>, %arg4: memref<1x512xf32, #tpu.memory_space<vmem>>, %arg5: memref<64x512xf32, #tpu.memory_space<vmem>>, %arg6: memref<64x512xf32, #tpu.memory_space<vmem>>, %arg7: memref<1x512xf32, #tpu.memory_space<vmem>>, %arg8: memref<512x512xf32, #tpu.memory_space<vmem>>, %arg9: memref<1x512xf32, #tpu.memory_space<vmem>>, %arg10: memref<512x128xf32, #tpu.memory_space<vmem>>, %arg11: memref<1x128xf32, #tpu.memory_space<vmem>>, %arg12: memref<16x128xf32, #tpu.memory_space<vmem>>) attributes {dimension_semantics = [#tpu.dimension_semantics<parallel>], iteration_bounds = array<i64: 2>, scalar_prefetch = 0 : i64, scratch_operands = 0 : i64, tpu.core_type = #tpu.core_type<tc>, window_params = [{transform_indices = @transform_0, window_bounds = array<i64: 16, 64>}, {transform_indices = @transform_1, window_bounds = array<i64: 16, 64>}, {transform_indices = @transform_2, window_bounds = array<i64: 16, 1>}, {pipeline_mode = #tpu.pipeline_mode<synchronous>, transform_indices = @transform_3, window_bounds = array<i64: 1, 512>}, {pipeline_mode = #tpu.pipeline_mode<synchronous>, transform_indices = @transform_4, window_bounds = array<i64: 64, 512>}, {pipeline_mode = #tpu.pipeline_mode<synchronous>, transform_indices = @transform_5, window_bounds = array<i64: 64, 512>}, {pipeline_mode = #tpu.pipeline_mode<synchronous>, transform_indices = @transform_6, window_bounds = array<i64: 1, 512>}, {pipeline_mode = #tpu.pipeline_mode<synchronous>, transform_indices = @transform_7, window_bounds = array<i64: 512, 512>}, {pipeline_mode = #tpu.pipeline_mode<synchronous>, transform_indices = @transform_8, window_bounds = array<i64: 1, 512>}, {pipeline_mode = #tpu.pipeline_mode<synchronous>, transform_indices = @transform_9, window_bounds = array<i64: 512, 128>}, {pipeline_mode = #tpu.pipeline_mode<synchronous>, transform_indices = @transform_10, window_bounds = array<i64: 1, 128>}, {transform_indices = @transform_11, window_bounds = array<i64: 16, 128>}]} {
    %c0 = arith.constant 0 : index
    %c0_0 = arith.constant 0 : index
    %0 = vector.load %arg1[%c0, %c0_0] : memref<16x64xf32, #tpu.memory_space<vmem>>, vector<16x64xf32>
    %c0_1 = arith.constant 0 : index
    %c0_2 = arith.constant 0 : index
    %1 = vector.load %arg5[%c0_1, %c0_2] : memref<64x512xf32, #tpu.memory_space<vmem>>, vector<64x512xf32>
    %cst = arith.constant dense<0.000000e+00> : vector<16x512xf32>
    %2 = tpu.matmul %0, %1, %cst {dimension_numbers = #tpu.dot_dimension_numbers<[1], [0], [0], [1], [0, 0, 1, 1], [], []>} : vector<16x64xf32>, vector<64x512xf32>, vector<16x512xf32> -> vector<16x512xf32>
    %c0_3 = arith.constant 0 : index
    %c0_4 = arith.constant 0 : index
    %3 = vector.load %arg2[%c0_3, %c0_4] : memref<16x64xf32, #tpu.memory_space<vmem>>, vector<16x64xf32>
    %c0_5 = arith.constant 0 : index
    %c0_6 = arith.constant 0 : index
    %4 = vector.load %arg6[%c0_5, %c0_6] : memref<64x512xf32, #tpu.memory_space<vmem>>, vector<64x512xf32>
    %cst_7 = arith.constant dense<0.000000e+00> : vector<16x512xf32>
    %5 = tpu.matmul %3, %4, %cst_7 {dimension_numbers = #tpu.dot_dimension_numbers<[1], [0], [0], [1], [0, 0, 1, 1], [], []>} : vector<16x64xf32>, vector<64x512xf32>, vector<16x512xf32> -> vector<16x512xf32>
    %6 = arith.addf %2, %5 : vector<16x512xf32>
    %c0_8 = arith.constant 0 : index
    %c0_9 = arith.constant 0 : index
    %7 = vector.load %arg7[%c0_8, %c0_9] : memref<1x512xf32, #tpu.memory_space<vmem>>, vector<1x512xf32>
    %8 = vector.broadcast %7 : vector<1x512xf32> to vector<16x512xf32>
    %9 = arith.addf %6, %8 : vector<16x512xf32>
    %c0_10 = arith.constant 0 : index
    %c0_11 = arith.constant 0 : index
    %10 = vector.load %arg3[%c0_10, %c0_11] : memref<16x1xf32, #tpu.memory_space<vmem>>, vector<16x1xf32>
    %11 = vector.broadcast %10 : vector<16x1xf32> to vector<16x512xf32>
    %12 = arith.mulf %11, %9 : vector<16x512xf32>
    %cst_12 = arith.constant 1.000000e+00 : f32
    %13 = vector.broadcast %cst_12 : f32 to vector<16x1xf32>
    %14 = arith.subf %13, %10 : vector<16x1xf32>
    %c0_13 = arith.constant 0 : index
    %c0_14 = arith.constant 0 : index
    %15 = vector.load %arg4[%c0_13, %c0_14] : memref<1x512xf32, #tpu.memory_space<vmem>>, vector<1x512xf32>
    %16 = vector.broadcast %14 : vector<16x1xf32> to vector<16x512xf32>
    %17 = vector.broadcast %15 : vector<1x512xf32> to vector<16x512xf32>
    %18 = arith.mulf %16, %17 : vector<16x512xf32>
    %19 = arith.addf %12, %18 : vector<16x512xf32>
    %cst_15 = arith.constant 0.000000e+00 : f32
    %20 = vector.broadcast %cst_15 : f32 to vector<16x512xf32>
    %21 = arith.subf %20, %19 : vector<16x512xf32>
    %22 = math.exp %21 : vector<16x512xf32>
    %cst_16 = arith.constant 1.000000e+00 : f32
    %23 = vector.broadcast %cst_16 : f32 to vector<16x512xf32>
    %24 = arith.addf %23, %22 : vector<16x512xf32>
    %25 = tpu.reciprocal %24 {approx = true} : vector<16x512xf32> -> vector<16x512xf32>
    %26 = arith.mulf %19, %25 : vector<16x512xf32>
    %c0_17 = arith.constant 0 : index
    %c0_18 = arith.constant 0 : index
    %27 = vector.load %arg8[%c0_17, %c0_18] : memref<512x512xf32, #tpu.memory_space<vmem>>, vector<512x512xf32>
    %cst_19 = arith.constant dense<0.000000e+00> : vector<16x512xf32>
    %28 = tpu.matmul %26, %27, %cst_19 {dimension_numbers = #tpu.dot_dimension_numbers<[1], [0], [0], [1], [0, 0, 1, 1], [], []>} : vector<16x512xf32>, vector<512x512xf32>, vector<16x512xf32> -> vector<16x512xf32>
    %c0_20 = arith.constant 0 : index
    %c0_21 = arith.constant 0 : index
    %29 = vector.load %arg9[%c0_20, %c0_21] : memref<1x512xf32, #tpu.memory_space<vmem>>, vector<1x512xf32>
    %30 = vector.broadcast %29 : vector<1x512xf32> to vector<16x512xf32>
    %31 = arith.addf %28, %30 : vector<16x512xf32>
    %cst_22 = arith.constant 0.000000e+00 : f32
    %32 = vector.broadcast %cst_22 : f32 to vector<16x512xf32>
    %33 = arith.subf %32, %31 : vector<16x512xf32>
    %34 = math.exp %33 : vector<16x512xf32>
    %cst_23 = arith.constant 1.000000e+00 : f32
    %35 = vector.broadcast %cst_23 : f32 to vector<16x512xf32>
    %36 = arith.addf %35, %34 : vector<16x512xf32>
    %37 = tpu.reciprocal %36 {approx = true} : vector<16x512xf32> -> vector<16x512xf32>
    %38 = arith.mulf %31, %37 : vector<16x512xf32>
    %c0_24 = arith.constant 0 : index
    %c0_25 = arith.constant 0 : index
    %39 = vector.load %arg10[%c0_24, %c0_25] : memref<512x128xf32, #tpu.memory_space<vmem>>, vector<512x128xf32>
    %cst_26 = arith.constant dense<0.000000e+00> : vector<16x128xf32>
    %40 = tpu.matmul %38, %39, %cst_26 {dimension_numbers = #tpu.dot_dimension_numbers<[1], [0], [0], [1], [0, 0, 1, 1], [], []>} : vector<16x512xf32>, vector<512x128xf32>, vector<16x128xf32> -> vector<16x128xf32>
    %c0_27 = arith.constant 0 : index
    %c0_28 = arith.constant 0 : index
    %41 = vector.load %arg11[%c0_27, %c0_28] : memref<1x128xf32, #tpu.memory_space<vmem>>, vector<1x128xf32>
    %42 = vector.broadcast %41 : vector<1x128xf32> to vector<16x128xf32>
    %43 = arith.addf %40, %42 : vector<16x128xf32>
    %c0_29 = arith.constant 0 : index
    %c0_30 = arith.constant 0 : index
    %44 = vector.load %arg12[%c0_29, %c0_30] : memref<16x128xf32, #tpu.memory_space<vmem>>, vector<16x128xf32>
    tpu.vector_store %arg12[%c0_29, %c0_30], %43 {strides = array<i32>} : memref<16x128xf32, #tpu.memory_space<vmem>>, vector<16x128xf32>,
    return
  }
  func.func @transform_0(%arg0: i32) -> (i32, i32) {
    %c0_i32 = arith.constant 0 : i32
    %c0_i32_0 = arith.constant 0 : i32
    return %arg0, %c0_i32 : i32, i32
  }
  func.func @transform_1(%arg0: i32) -> (i32, i32) {
    %c0_i32 = arith.constant 0 : i32
    %c0_i32_0 = arith.constant 0 : i32
    return %arg0, %c0_i32 : i32, i32
  }
  func.func @transform_2(%arg0: i32) -> (i32, i32) {
    %c0_i32 = arith.constant 0 : i32
    %c0_i32_0 = arith.constant 0 : i32
    return %arg0, %c0_i32 : i32, i32
  }
  func.func @transform_3(%arg0: i32) -> (i32, i32) {
    %c0_i32 = arith.constant 0 : i32
    %c0_i32_0 = arith.constant 0 : i32
    %c0_i32_1 = arith.constant 0 : i32
    return %c0_i32, %c0_i32_0 : i32, i32
  }
  func.func @transform_4(%arg0: i32) -> (i32, i32) {
    %c0_i32 = arith.constant 0 : i32
    %c0_i32_0 = arith.constant 0 : i32
    %c0_i32_1 = arith.constant 0 : i32
    return %c0_i32, %c0_i32_0 : i32, i32
  }
  func.func @transform_5(%arg0: i32) -> (i32, i32) {
    %c0_i32 = arith.constant 0 : i32
    %c0_i32_0 = arith.constant 0 : i32
    %c0_i32_1 = arith.constant 0 : i32
    return %c0_i32, %c0_i32_0 : i32, i32
  }
  func.func @transform_6(%arg0: i32) -> (i32, i32) {
    %c0_i32 = arith.constant 0 : i32
    %c0_i32_0 = arith.constant 0 : i32
    %c0_i32_1 = arith.constant 0 : i32
    return %c0_i32, %c0_i32_0 : i32, i32
  }
  func.func @transform_7(%arg0: i32) -> (i32, i32) {
    %c0_i32 = arith.constant 0 : i32
    %c0_i32_0 = arith.constant 0 : i32
    %c0_i32_1 = arith.constant 0 : i32
    return %c0_i32, %c0_i32_0 : i32, i32
  }
  func.func @transform_8(%arg0: i32) -> (i32, i32) {
    %c0_i32 = arith.constant 0 : i32
    %c0_i32_0 = arith.constant 0 : i32
    %c0_i32_1 = arith.constant 0 : i32
    return %c0_i32, %c0_i32_0 : i32, i32
  }
  func.func @transform_9(%arg0: i32) -> (i32, i32) {
    %c0_i32 = arith.constant 0 : i32
    %c0_i32_0 = arith.constant 0 : i32
    %c0_i32_1 = arith.constant 0 : i32
    return %c0_i32, %c0_i32_0 : i32, i32
  }
  func.func @transform_10(%arg0: i32) -> (i32, i32) {
    %c0_i32 = arith.constant 0 : i32
    %c0_i32_0 = arith.constant 0 : i32
    %c0_i32_1 = arith.constant 0 : i32
    return %c0_i32, %c0_i32_0 : i32, i32
  }
  func.func @transform_11(%arg0: i32) -> (i32, i32) {
    %c0_i32 = arith.constant 0 : i32
    %c0_i32_0 = arith.constant 0 : i32
    return %arg0, %c0_i32 : i32, i32
  }
}

</mosaic_0001>

<llo_original>
// kernel: tpu_custom_call.1
$region0: #{tpu_custom_call.1}
  #allocation0 [shape = 'u32[]', space=smem, size = 0x4, offset = 0x4, fixed_abs, tag = 'smem constant byte address 0x4 - core index']
  #allocation1 [shape = 'u32[72,128]{1,0:T(1,128)}', space=vmem, size = 0x9000, scoped, tag = 'internal scratch']
  %s0 = inlined_call_operand.vmem [shape: f32[28,64], index: 0, kind: input, shape index: {}]
  %s1 = inlined_call_operand.hbm [shape: f32[28,64], index: 1, kind: input, shape index: {}]
  %s2 = inlined_call_operand.vmem [shape: f32[28,1], index: 2, kind: input, shape index: {}]
  %s3 = inlined_call_operand.hbm [shape: f32[1,512], index: 3, kind: input, shape index: {}]
  %s4 = inlined_call_operand.hbm [shape: f32[64,512], index: 4, kind: input, shape index: {}]
  %s5 = inlined_call_operand.hbm [shape: f32[64,512], index: 5, kind: input, shape index: {}]
  %s6 = inlined_call_operand.vmem [shape: f32[1,512], index: 6, kind: input, shape index: {}]
  %s7 = inlined_call_operand.hbm [shape: f32[512,512], index: 7, kind: input, shape index: {}]
  %s8 = inlined_call_operand.hbm [shape: f32[1,512], index: 8, kind: input, shape index: {}]
  %s9 = inlined_call_operand.hbm [shape: f32[512,128], index: 9, kind: input, shape index: {}]
  %s10 = inlined_call_operand.vmem [shape: f32[1,128], index: 10, kind: input, shape index: {}]
  %s11 = inlined_call_operand.hbm [shape: f32[28,128], index: 11, kind: output, shape index: {}]
  %s12 = sld [smem:[#allocation0]]
  $region105: #{tpu_custom_call.1} parent=0
    _
  %s14 = ssub.s32 1, %s12
  %s15 = scalar_select 0, %s14, %s12
  $region1: #{tpu_custom_call.1} parent=0
    #allocation2 [shape = 'u8[16384]{0}', space=vmem, size = 0x4000, scoped, tag = 'input window, operand 1']
    #allocation3 [shape = 's32[2]{0}', space=sflag, size = 0x8, scoped, tag = 'scoped memory for tpu_custom_call.1']
    #allocation4 [shape = 's32[2]{0}', space=sflag, size = 0x8, scoped, tag = 'scoped memory for tpu_custom_call.1']
    #allocation5 [shape = 'u8[2048]{0}', space=vmem, size = 0x800, scoped, tag = 'input window, operand 3, single buffered']
    #allocation6 [shape = 's32[1]{0}', space=sflag, size = 0x4, scoped, tag = 'scoped memory for tpu_custom_call.1']
    #allocation7 [shape = 'u8[131072]{0}', space=vmem, size = 0x20000, scoped, tag = 'input window, operand 4, single buffered']
    #allocation8 [shape = 'u8[131072]{0}', space=vmem, size = 0x20000, scoped, tag = 'input window, operand 5, single buffered']
    #allocation9 [shape = 's32[1]{0}', space=sflag, size = 0x4, scoped, tag = 'scoped memory for tpu_custom_call.1']
    #allocation10 [shape = 'u8[1048576]{0}', space=vmem, size = 0x100000, scoped, tag = 'input window, operand 7, single buffered']
    #allocation11 [shape = 'u8[2048]{0}', space=vmem, size = 0x800, scoped, tag = 'input window, operand 8, single buffered']
    #allocation12 [shape = 's32[1]{0}', space=sflag, size = 0x4, scoped, tag = 'scoped memory for tpu_custom_call.1']
    #allocation13 [shape = 'u8[262144]{0}', space=vmem, size = 0x40000, scoped, tag = 'input window, operand 9, single buffered']
    #allocation14 [shape = 'u8[16384]{0}', space=vmem, size = 0x4000, scoped, tag = 'output window, operand 0']
    %16 = vsyncpa [#allocation3], 0
    %s17 = scalar_lea.sflag [#allocation3], 1
    %18 = vsyncpa %s17, 0
    %19 = vsyncpa [#allocation6], 0
    %20 = vsyncpa [#allocation9], 0
    %21 = vsyncpa [#allocation12], 0
    %22 = vsyncpa [#allocation4], 0
    %s23 = scalar_lea.sflag [#allocation4], 1
    %24 = vsyncpa %s23, 0
    loop: start=0, step=1, limit=4
    $region2: #{tpu_custom_call.1} parent=1 // loop_pre_header
      _
    $region3: #{tpu_custom_call.1} parent=1 // loop_header
      %s26 = sphi 0, %s30
      %p27 = scmp.ge.s32.totalorder %s26, 4
      %s36 = sphi 0, %s38
      %s39 = sphi 0, %s36
      %s40 = sphi 0, %s39
      %s56 = sphi 0, %s40
      %s62 = sphi 0, %s64
      %s65 = sphi 0, %s62
      %s66 = sphi 0, %s65
      %s82 = sphi 0, %s66
      %s88 = sphi 0, %s90
      %s91 = sphi 0, %s88
      %s92 = sphi 0, %s91
      %s108 = sphi 0, %s92
      %s112 = sphi 0, %s112
      %s114 = sphi 0, %s112
      %s115 = sphi 0, %s114
      %s129 = sphi 0, %s115
      %s133 = sphi 0, %s133
      %s135 = sphi 0, %s133
      %s136 = sphi 0, %s135
      %s150 = sphi 0, %s136
      %s154 = sphi 0, %s154
      %s156 = sphi 0, %s154
      %s157 = sphi 0, %s156
      %s171 = sphi 0, %s157
      %s175 = sphi 0, %s175
      %s177 = sphi 0, %s175
      %s178 = sphi 0, %s177
      %s192 = sphi 0, %s178
      %s196 = sphi 0, %s196
      %s198 = sphi 0, %s196
      %s199 = sphi 0, %s198
      %s213 = sphi 0, %s199
      %s217 = sphi 0, %s217
      %s219 = sphi 0, %s217
      %s220 = sphi 0, %s219
      %s234 = sphi 0, %s220
      %s238 = sphi 0, %s238
      %s240 = sphi 0, %s238
      %s241 = sphi 0, %s240
      %s255 = sphi 0, %s241
      %s259 = sphi 0, %s259
      %s261 = sphi 0, %s259
      %s262 = sphi 0, %s261
      %s276 = sphi 0, %s262
      %s282 = sphi 0, %s284
      %s285 = sphi 0, %s282
      %s286 = sphi 0, %s285
      %s302 = sphi 0, %s286
    $region4: #{tpu_custom_call.1} parent=1 // loop_header_branch
      %29 = sbr.rel (%p27) target = $region8
    $region5: #{tpu_custom_call.1} parent=1 // loop_body
      %s31 = ssub.s32 %s26, 1
      %s32 = ssub.s32 %s26, 2
      %s33 = sadd.s32 %s26, 1
      %s34 = ssub.s32 %s26, %s33
      %p35 = scmp.eq.s32.totalorder %s34, 0
      %s37 = sadd.s32 %s36, 1
      %s38 = scalar_select %p35, %s36, %s37
      %p41 = pneg %p35
      %p42 = scmp.eq.s32.totalorder %s26, 1
      %p43 = por %p41, %p42
      %p44 = scmp.ne.s32.totalorder %s36, %s39
      %p45 = scmp.eq.s32.totalorder %s26, 0
      %p46 = por %p44, %p45
      %p47 = scmp.ne.s32.totalorder %s36, %s39
      %p48 = scmp.eq.s32.totalorder %s31, 1
      %p49 = por %p47, %p48
      %p50 = scmp.ne.s32.totalorder %s39, %s40
      %p51 = scmp.eq.s32.totalorder %s31, 0
      %p52 = por %p50, %p51
      %p53 = scmp.ne.s32.totalorder %s39, %s40
      %p54 = scmp.eq.s32.totalorder %s32, 1
      %p55 = por %p53, %p54
      %p57 = scmp.ne.s32.totalorder %s40, %s56
      %p58 = scmp.eq.s32.totalorder %s32, 0
      %p59 = por %p57, %p58
      %s60 = ssub.s32 %s26, %s33
      %p61 = scmp.eq.s32.totalorder %s60, 0
      %s63 = sadd.s32 %s62, 1
      %s64 = scalar_select %p61, %s62, %s63
      %p67 = pneg %p61
      %p68 = scmp.eq.s32.totalorder %s26, 1
      %p69 = por %p67, %p68
      %p70 = scmp.ne.s32.totalorder %s62, %s65
      %p71 = scmp.eq.s32.totalorder %s26, 0
      %p72 = por %p70, %p71
      %p73 = scmp.ne.s32.totalorder %s62, %s65
      %p74 = scmp.eq.s32.totalorder %s31, 1
      %p75 = por %p73, %p74
      %p76 = scmp.ne.s32.totalorder %s65, %s66
      %p77 = scmp.eq.s32.totalorder %s31, 0
      %p78 = por %p76, %p77
      %p79 = scmp.ne.s32.totalorder %s65, %s66
      %p80 = scmp.eq.s32.totalorder %s32, 1
      %p81 = por %p79, %p80
      %p83 = scmp.ne.s32.totalorder %s66, %s82
      %p84 = scmp.eq.s32.totalorder %s32, 0
      %p85 = por %p83, %p84
      %s86 = ssub.s32 %s26, %s33
      %p87 = scmp.eq.s32.totalorder %s86, 0
      %s89 = sadd.s32 %s88, 1
      %s90 = scalar_select %p87, %s88, %s89
      %p93 = pneg %p87
      %p94 = scmp.eq.s32.totalorder %s26, 1
      %p95 = por %p93, %p94
      %p96 = scmp.ne.s32.totalorder %s88, %s91
      %p97 = scmp.eq.s32.totalorder %s26, 0
      %p98 = por %p96, %p97
      %p99 = scmp.ne.s32.totalorder %s88, %s91
      %p100 = scmp.eq.s32.totalorder %s31, 1
      %p101 = por %p99, %p100
      %p102 = scmp.ne.s32.totalorder %s91, %s92
      %p103 = scmp.eq.s32.totalorder %s31, 0
      %p104 = por %p102, %p103
      %p105 = scmp.ne.s32.totalorder %s91, %s92
      %p106 = scmp.eq.s32.totalorder %s32, 1
      %p107 = por %p105, %p106
      %p109 = scmp.ne.s32.totalorder %s92, %s108
      %p110 = scmp.eq.s32.totalorder %s32, 0
      %p111 = por %p109, %p110
      %s113 = sadd.s32 %s112, 1
      %p116 = scmp.eq.s32.totalorder %s26, 1
      %p117 = scmp.ne.s32.totalorder %s112, %s114
      %p118 = scmp.eq.s32.totalorder %s26, 0
      %p119 = por %p117, %p118
      %p120 = scmp.ne.s32.totalorder %s112, %s114
      %p121 = scmp.eq.s32.totalorder %s31, 1
      %p122 = por %p120, %p121
      %p123 = scmp.ne.s32.totalorder %s114, %s115
      %p124 = scmp.eq.s32.totalorder %s31, 0
      %p125 = por %p123, %p124
      %p126 = scmp.ne.s32.totalorder %s114, %s115
      %p127 = scmp.eq.s32.totalorder %s32, 1
      %p128 = por %p126, %p127
      %p130 = scmp.ne.s32.totalorder %s115, %s129
      %p131 = scmp.eq.s32.totalorder %s32, 0
      %p132 = por %p130, %p131
      %s134 = sadd.s32 %s133, 1
      %p137 = scmp.eq.s32.totalorder %s26, 1
      %p138 = scmp.ne.s32.totalorder %s133, %s135
      %p139 = scmp.eq.s32.totalorder %s26, 0
      %p140 = por %p138, %p139
      %p141 = scmp.ne.s32.totalorder %s133, %s135
      %p142 = scmp.eq.s32.totalorder %s31, 1
      %p143 = por %p141, %p142
      %p144 = scmp.ne.s32.totalorder %s135, %s136
      %p145 = scmp.eq.s32.totalorder %s31, 0
      %p146 = por %p144, %p145
      %p147 = scmp.ne.s32.totalorder %s135, %s136
      %p148 = scmp.eq.s32.totalorder %s32, 1
      %p149 = por %p147, %p148
      %p151 = scmp.ne.s32.totalorder %s136, %s150
      %p152 = scmp.eq.s32.totalorder %s32, 0
      %p153 = por %p151, %p152
      %s155 = sadd.s32 %s154, 1
      %p158 = scmp.eq.s32.totalorder %s26, 1
      %p159 = scmp.ne.s32.totalorder %s154, %s156
      %p160 = scmp.eq.s32.totalorder %s26, 0
      %p161 = por %p159, %p160
      %p162 = scmp.ne.s32.totalorder %s154, %s156
      %p163 = scmp.eq.s32.totalorder %s31, 1
      %p164 = por %p162, %p163
      %p165 = scmp.ne.s32.totalorder %s156, %s157
      %p166 = scmp.eq.s32.totalorder %s31, 0
      %p167 = por %p165, %p166
      %p168 = scmp.ne.s32.totalorder %s156, %s157
      %p169 = scmp.eq.s32.totalorder %s32, 1
      %p170 = por %p168, %p169
      %p172 = scmp.ne.s32.totalorder %s157, %s171
      %p173 = scmp.eq.s32.totalorder %s32, 0
      %p174 = por %p172, %p173
      %s176 = sadd.s32 %s175, 1
      %p179 = scmp.eq.s32.totalorder %s26, 1
      %p180 = scmp.ne.s32.totalorder %s175, %s177
      %p181 = scmp.eq.s32.totalorder %s26, 0
      %p182 = por %p180, %p181
      %p183 = scmp.ne.s32.totalorder %s175, %s177
      %p184 = scmp.eq.s32.totalorder %s31, 1
      %p185 = por %p183, %p184
      %p186 = scmp.ne.s32.totalorder %s177, %s178
      %p187 = scmp.eq.s32.totalorder %s31, 0
      %p188 = por %p186, %p187
      %p189 = scmp.ne.s32.totalorder %s177, %s178
      %p190 = scmp.eq.s32.totalorder %s32, 1
      %p191 = por %p189, %p190
      %p193 = scmp.ne.s32.totalorder %s178, %s192
      %p194 = scmp.eq.s32.totalorder %s32, 0
      %p195 = por %p193, %p194
      %s197 = sadd.s32 %s196, 1
      %p200 = scmp.eq.s32.totalorder %s26, 1
      %p201 = scmp.ne.s32.totalorder %s196, %s198
      %p202 = scmp.eq.s32.totalorder %s26, 0
      %p203 = por %p201, %p202
      %p204 = scmp.ne.s32.totalorder %s196, %s198
      %p205 = scmp.eq.s32.totalorder %s31, 1
      %p206 = por %p204, %p205
      %p207 = scmp.ne.s32.totalorder %s198, %s199
      %p208 = scmp.eq.s32.totalorder %s31, 0
      %p209 = por %p207, %p208
      %p210 = scmp.ne.s32.totalorder %s198, %s199
      %p211 = scmp.eq.s32.totalorder %s32, 1
      %p212 = por %p210, %p211
      %p214 = scmp.ne.s32.totalorder %s199, %s213
      %p215 = scmp.eq.s32.totalorder %s32, 0
      %p216 = por %p214, %p215
      %s218 = sadd.s32 %s217, 1
      %p221 = scmp.eq.s32.totalorder %s26, 1
      %p222 = scmp.ne.s32.totalorder %s217, %s219
      %p223 = scmp.eq.s32.totalorder %s26, 0
      %p224 = por %p222, %p223
      %p225 = scmp.ne.s32.totalorder %s217, %s219
      %p226 = scmp.eq.s32.totalorder %s31, 1
      %p227 = por %p225, %p226
      %p228 = scmp.ne.s32.totalorder %s219, %s220
      %p229 = scmp.eq.s32.totalorder %s31, 0
      %p230 = por %p228, %p229
      %p231 = scmp.ne.s32.totalorder %s219, %s220
      %p232 = scmp.eq.s32.totalorder %s32, 1
      %p233 = por %p231, %p232
      %p235 = scmp.ne.s32.totalorder %s220, %s234
      %p236 = scmp.eq.s32.totalorder %s32, 0
      %p237 = por %p235, %p236
      %s239 = sadd.s32 %s238, 1
      %p242 = scmp.eq.s32.totalorder %s26, 1
      %p243 = scmp.ne.s32.totalorder %s238, %s240
      %p244 = scmp.eq.s32.totalorder %s26, 0
      %p245 = por %p243, %p244
      %p246 = scmp.ne.s32.totalorder %s238, %s240
      %p247 = scmp.eq.s32.totalorder %s31, 1
      %p248 = por %p246, %p247
      %p249 = scmp.ne.s32.totalorder %s240, %s241
      %p250 = scmp.eq.s32.totalorder %s31, 0
      %p251 = por %p249, %p250
      %p252 = scmp.ne.s32.totalorder %s240, %s241
      %p253 = scmp.eq.s32.totalorder %s32, 1
      %p254 = por %p252, %p253
      %p256 = scmp.ne.s32.totalorder %s241, %s255
      %p257 = scmp.eq.s32.totalorder %s32, 0
      %p258 = por %p256, %p257
      %s260 = sadd.s32 %s259, 1
      %p263 = scmp.eq.s32.totalorder %s26, 1
      %p264 = scmp.ne.s32.totalorder %s259, %s261
      %p265 = scmp.eq.s32.totalorder %s26, 0
      %p266 = por %p264, %p265
      %p267 = scmp.ne.s32.totalorder %s259, %s261
      %p268 = scmp.eq.s32.totalorder %s31, 1
      %p269 = por %p267, %p268
      %p270 = scmp.ne.s32.totalorder %s261, %s262
      %p271 = scmp.eq.s32.totalorder %s31, 0
      %p272 = por %p270, %p271
      %p273 = scmp.ne.s32.totalorder %s261, %s262
      %p274 = scmp.eq.s32.totalorder %s32, 1
      %p275 = por %p273, %p274
      %p277 = scmp.ne.s32.totalorder %s262, %s276
      %p278 = scmp.eq.s32.totalorder %s32, 0
      %p279 = por %p277, %p278
      %s280 = ssub.s32 %s26, %s33
      %p281 = scmp.eq.s32.totalorder %s280, 0
      %s283 = sadd.s32 %s282, 1
      %s284 = scalar_select %p281, %s282, %s283
      %p287 = pneg %p281
      %p288 = scmp.eq.s32.totalorder %s26, 1
      %p289 = por %p287, %p288
      %p290 = scmp.ne.s32.totalorder %s282, %s285
      %p291 = scmp.eq.s32.totalorder %s26, 0
      %p292 = por %p290, %p291
      %p293 = scmp.ne.s32.totalorder %s282, %s285
      %p294 = scmp.eq.s32.totalorder %s31, 1
      %p295 = por %p293, %p294
      %p296 = scmp.ne.s32.totalorder %s285, %s286
      %p297 = scmp.eq.s32.totalorder %s31, 0
      %p298 = por %p296, %p297
      %p299 = scmp.ne.s32.totalorder %s285, %s286
      %p300 = scmp.eq.s32.totalorder %s32, 1
      %p301 = por %p299, %p300
      %p303 = scmp.ne.s32.totalorder %s286, %s302
      %p304 = scmp.eq.s32.totalorder %s32, 0
      %p305 = por %p303, %p304
      %p306 = scmp.le.s32.totalorder 1, %s26
      %p307 = scmp.lt.s32.totalorder %s26, 3
      %p308 = pnand %p306, %p307
      %p309 = pneg %p308
      // Predicated region
      $region9: #{tpu_custom_call.1} parent=5 // pred_check
        _
      $region10: #{tpu_custom_call.1} parent=5 // pred_check_branch
        %311 = sbr.rel (%p308) target = $region12
      $region11: #{tpu_custom_call.1} parent=5 // pred_region
        %s312 = ssub.s32 %s26, 1
        // Predicated region
        $region13: #{tpu_custom_call.1} parent=11 // pred_check
          %p313 = pneg %p125
        $region14: #{tpu_custom_call.1} parent=11 // pred_check_branch
          %315 = sbr.rel (%p313) target = $region16
        $region15: #{tpu_custom_call.1} parent=11 // pred_region
          %317 = vsyncadd [#allocation6], 0
          %s319 = sshll.u32 %s3, 4
          %s320 = int_to_ptr.hbm [resolvable:$true] %s319
          %s321 = sshll.u32 [#allocation5], 4
          %s322 = int_to_ptr.vmem [resolvable:$true] %s321
          %324 = dma.hbm_to_vmem [thread:$0]  %s320, 64, %s322, [#allocation6]
        $region16: #{tpu_custom_call.1} parent=11 // pred_fallthru
          _
        // Predicated region
        $region17: #{tpu_custom_call.1} parent=11 // pred_check
          %p325 = pneg %p146
        $region18: #{tpu_custom_call.1} parent=11 // pred_check_branch
          %327 = sbr.rel (%p325) target = $region20
        $region19: #{tpu_custom_call.1} parent=11 // pred_region
          %329 = vsyncadd [#allocation6], 0
          %s330 = sshll.u32 %s4, 4
          %s331 = int_to_ptr.hbm [resolvable:$true] %s330
          %s332 = sshll.u32 [#allocation7], 4
          %s333 = int_to_ptr.vmem [resolvable:$true] %s332
          %338 = dma.hbm_to_vmem [thread:$0]  %s331, 4096, %s333, [#allocation6], 512, 512, 32
        $region20: #{tpu_custom_call.1} parent=11 // pred_fallthru
          _
        // Predicated region
        $region21: #{tpu_custom_call.1} parent=11 // pred_check
          %p339 = pneg %p167
        $region22: #{tpu_custom_call.1} parent=11 // pred_check_branch
          %341 = sbr.rel (%p339) target = $region24
        $region23: #{tpu_custom_call.1} parent=11 // pred_region
          %343 = vsyncadd [#allocation9], 0
          %s344 = sshll.u32 %s5, 4
          %s345 = int_to_ptr.hbm [resolvable:$true] %s344
          %s346 = sshll.u32 [#allocation8], 4
          %s347 = int_to_ptr.vmem [resolvable:$true] %s346
          %352 = dma.hbm_to_vmem [thread:$0]  %s345, 4096, %s347, [#allocation9], 512, 512, 32
        $region24: #{tpu_custom_call.1} parent=11 // pred_fallthru
          _
        // Predicated region
        $region25: #{tpu_custom_call.1} parent=11 // pred_check
          %p353 = pneg %p188
        $region26: #{tpu_custom_call.1} parent=11 // pred_check_branch
          %355 = sbr.rel (%p353) target = $region28
        $region27: #{tpu_custom_call.1} parent=11 // pred_region
          _
        $region28: #{tpu_custom_call.1} parent=11 // pred_fallthru
          _
        // Predicated region
        $region29: #{tpu_custom_call.1} parent=11 // pred_check
          %p356 = pneg %p209
        $region30: #{tpu_custom_call.1} parent=11 // pred_check_branch
          %358 = sbr.rel (%p356) target = $region32
        $region31: #{tpu_custom_call.1} parent=11 // pred_region
          %360 = vsyncadd [#allocation9], 0
          %s361 = sshll.u32 %s7, 4
          %s362 = int_to_ptr.hbm [resolvable:$true] %s361
          %s363 = sshll.u32 [#allocation10], 4
          %s364 = int_to_ptr.vmem [resolvable:$true] %s363
          %369 = dma.hbm_to_vmem [thread:$0]  %s362, 32768, %s364, [#allocation9], 512, 512, 32
        $region32: #{tpu_custom_call.1} parent=11 // pred_fallthru
          _
        // Predicated region
        $region33: #{tpu_custom_call.1} parent=11 // pred_check
          %p370 = pneg %p230
        $region34: #{tpu_custom_call.1} parent=11 // pred_check_branch
          %372 = sbr.rel (%p370) target = $region36
        $region35: #{tpu_custom_call.1} parent=11 // pred_region
          %374 = vsyncadd [#allocation12], 0
          %s376 = sshll.u32 %s8, 4
          %s377 = int_to_ptr.hbm [resolvable:$true] %s376
          %s378 = sshll.u32 [#allocation11], 4
          %s379 = int_to_ptr.vmem [resolvable:$true] %s378
          %381 = dma.hbm_to_vmem [thread:$0]  %s377, 64, %s379, [#allocation12]
        $region36: #{tpu_custom_call.1} parent=11 // pred_fallthru
          _
        // Predicated region
        $region37: #{tpu_custom_call.1} parent=11 // pred_check
          %p382 = pneg %p251
        $region38: #{tpu_custom_call.1} parent=11 // pred_check_branch
          %384 = sbr.rel (%p382) target = $region40
        $region39: #{tpu_custom_call.1} parent=11 // pred_region
          %386 = vsyncadd [#allocation12], 0
          %s387 = sshll.u32 %s9, 4
          %s388 = int_to_ptr.hbm [resolvable:$true] %s387
          %s389 = sshll.u32 [#allocation13], 4
          %s390 = int_to_ptr.vmem [resolvable:$true] %s389
          %395 = dma.hbm_to_vmem [thread:$0]  %s388, 8192, %s390, [#allocation12], 128, 128, 8
        $region40: #{tpu_custom_call.1} parent=11 // pred_fallthru
          _
        // Predicated region
        $region41: #{tpu_custom_call.1} parent=11 // pred_check
          %p396 = pneg %p272
        $region42: #{tpu_custom_call.1} parent=11 // pred_check_branch
          %398 = sbr.rel (%p396) target = $region44
        $region43: #{tpu_custom_call.1} parent=11 // pred_region
          _
        $region44: #{tpu_custom_call.1} parent=11 // pred_fallthru
          _
      $region12: #{tpu_custom_call.1} parent=5 // pred_fallthru
        _
      %p399 = scmp.lt.s32.totalorder %s26, 2
      // Predicated region
      $region45: #{tpu_custom_call.1} parent=5 // pred_check
        %p400 = pneg %p399
      $region46: #{tpu_custom_call.1} parent=5 // pred_check_branch
        %402 = sbr.rel (%p400) target = $region48
      $region47: #{tpu_custom_call.1} parent=5 // pred_region
        // Predicated region
        $region49: #{tpu_custom_call.1} parent=47 // pred_check
          %p403 = pneg %p46
        $region50: #{tpu_custom_call.1} parent=47 // pred_check_branch
          %405 = sbr.rel (%p403) target = $region52
        $region51: #{tpu_custom_call.1} parent=47 // pred_region
          %s406 = smul.u32 2, %s26
          %p407 = scmp.lt.s32.totalorder %s406, 3
          %s408 = scalar_select %p407, %s406, 3
          %s409 = smul.addr %s408, 8
          %s410 = scalar_lea.vmem %s0, %s409
          %s411 = smul.u32 2, %s26
        $region52: #{tpu_custom_call.1} parent=47 // pred_fallthru
          _
        // Predicated region
        $region53: #{tpu_custom_call.1} parent=47 // pred_check
          %p412 = pneg %p72
        $region54: #{tpu_custom_call.1} parent=47 // pred_check_branch
          %414 = sbr.rel (%p412) target = $region56
        $region55: #{tpu_custom_call.1} parent=47 // pred_region
          %s415 = sand.u32 %s62, 1
          %s416 = scalar_lea.sflag [#allocation3], %s415
          %s417 = sand.u32 %s62, 1
          %s418 = smul.addr %s417, 16
          %s419 = scalar_lea.vmem [#allocation2], %s418
          %s420 = smul.u32 2, %s26
          %422 = vsyncadd %s416, 0
          %s423 = smul.addr %s420, 8
          %s424 = scalar_lea.hbm %s1, %s423
          %s425 = sshll.u32 %s424, 4
          %s426 = int_to_ptr.hbm [resolvable:$true] %s425
          %s427 = sshll.u32 %s419, 4
          %s428 = int_to_ptr.vmem [resolvable:$true] %s427
          %433 = dma.hbm_to_vmem [thread:$0]  %s426, 256, %s428, %s416, 128, 128, 8
        $region56: #{tpu_custom_call.1} parent=47 // pred_fallthru
          _
        // Predicated region
        $region57: #{tpu_custom_call.1} parent=47 // pred_check
          %p434 = pneg %p98
        $region58: #{tpu_custom_call.1} parent=47 // pred_check_branch
          %436 = sbr.rel (%p434) target = $region60
        $region59: #{tpu_custom_call.1} parent=47 // pred_region
          %s437 = smul.u32 2, %s26
          %p438 = scmp.lt.s32.totalorder %s437, 3
          %s439 = scalar_select %p438, %s437, 3
          %s440 = smul.addr %s439, 8
          %s441 = scalar_lea.vmem %s2, %s440
          %s442 = smul.u32 2, %s26
        $region60: #{tpu_custom_call.1} parent=47 // pred_fallthru
          _
      $region48: #{tpu_custom_call.1} parent=5 // pred_fallthru
        _
      %p443 = scmp.le.s32.totalorder 1, %s26
      %p444 = scmp.lt.s32.totalorder %s26, 3
      %p445 = pnand %p443, %p444
      %p446 = pneg %p445
      // Predicated region
      $region61: #{tpu_custom_call.1} parent=5 // pred_check
        _
      $region62: #{tpu_custom_call.1} parent=5 // pred_check_branch
        %448 = sbr.rel (%p445) target = $region64
      $region63: #{tpu_custom_call.1} parent=5 // pred_region
        %s449 = ssub.s32 %s26, 1
        %s450 = sand.u32 %s65, 1
        %s451 = scalar_lea.sflag [#allocation3], %s450
        %s452 = sand.u32 %s65, 1
        %s453 = smul.addr %s452, 16
        %s454 = scalar_lea.vmem [#allocation2], %s453
        // Predicated region
        $region65: #{tpu_custom_call.1} parent=63 // pred_check
          %p455 = pneg %p78
        $region66: #{tpu_custom_call.1} parent=63 // pred_check_branch
          %457 = sbr.rel (%p455) target = $region68
        $region67: #{tpu_custom_call.1} parent=63 // pred_region
          %459 = dma.done %s451, 256
        $region68: #{tpu_custom_call.1} parent=63 // pred_fallthru
          _
        // Predicated region
        $region69: #{tpu_custom_call.1} parent=63 // pred_check
          %p460 = pneg %p125
        $region70: #{tpu_custom_call.1} parent=63 // pred_check_branch
          %462 = sbr.rel (%p460) target = $region72
        $region71: #{tpu_custom_call.1} parent=63 // pred_region
          %464 = dma.done [#allocation6], 64
        $region72: #{tpu_custom_call.1} parent=63 // pred_fallthru
          _
        // Predicated region
        $region73: #{tpu_custom_call.1} parent=63 // pred_check
          %p465 = pneg %p146
        $region74: #{tpu_custom_call.1} parent=63 // pred_check_branch
          %467 = sbr.rel (%p465) target = $region76
        $region75: #{tpu_custom_call.1} parent=63 // pred_region
          %469 = dma.done [#allocation6], 4096
        $region76: #{tpu_custom_call.1} parent=63 // pred_fallthru
          _
        // Predicated region
        $region77: #{tpu_custom_call.1} parent=63 // pred_check
          %p470 = pneg %p167
        $region78: #{tpu_custom_call.1} parent=63 // pred_check_branch
          %472 = sbr.rel (%p470) target = $region80
        $region79: #{tpu_custom_call.1} parent=63 // pred_region
          %474 = dma.done [#allocation9], 4096
        $region80: #{tpu_custom_call.1} parent=63 // pred_fallthru
          _
        // Predicated region
        $region81: #{tpu_custom_call.1} parent=63 // pred_check
          %p475 = pneg %p209
        $region82: #{tpu_custom_call.1} parent=63 // pred_check_branch
          %477 = sbr.rel (%p475) target = $region84
        $region83: #{tpu_custom_call.1} parent=63 // pred_region
          %479 = dma.done [#allocation9], 32768
        $region84: #{tpu_custom_call.1} parent=63 // pred_fallthru
          _
        // Predicated region
        $region85: #{tpu_custom_call.1} parent=63 // pred_check
          %p480 = pneg %p230
        $region86: #{tpu_custom_call.1} parent=63 // pred_check_branch
          %482 = sbr.rel (%p480) target = $region88
        $region87: #{tpu_custom_call.1} parent=63 // pred_region
          %484 = dma.done [#allocation12], 64
        $region88: #{tpu_custom_call.1} parent=63 // pred_fallthru
          _
        // Predicated region
        $region89: #{tpu_custom_call.1} parent=63 // pred_check
          %p485 = pneg %p251
        $region90: #{tpu_custom_call.1} parent=63 // pred_check_branch
          %487 = sbr.rel (%p485) target = $region92
        $region91: #{tpu_custom_call.1} parent=63 // pred_region
          %489 = dma.done [#allocation12], 8192
        $region92: #{tpu_custom_call.1} parent=63 // pred_fallthru
          _
        %s490 = smul.u32 2, %s31
        %p491 = scmp.lt.s32.totalorder %s490, 3
        %s492 = scalar_select %p491, %s490, 3
        %s493 = smul.addr %s492, 8
        %s494 = scalar_lea.vmem %s0, %s493
        %p495 = pneg %p52
        %p496 = pneg %p49
        %s497 = sand.u32 %s65, 1
        %s498 = scalar_lea.sflag [#allocation3], %s497
        %s499 = sand.u32 %s65, 1
        %s500 = smul.addr %s499, 16
        %s501 = scalar_lea.vmem [#allocation2], %s500
        %p502 = pneg %p78
        %p503 = pneg %p75
        %s504 = smul.u32 2, %s31
        %p505 = scmp.lt.s32.totalorder %s504, 3
        %s506 = scalar_select %p505, %s504, 3
        %s507 = smul.addr %s506, 8
        %s508 = scalar_lea.vmem %s2, %s507
        %p509 = pneg %p104
        %p510 = pneg %p101
        %p511 = pneg %p125
        %p512 = pneg %p122
        %p513 = pneg %p146
        %p514 = pneg %p143
        %p515 = pneg %p167
        %p516 = pneg %p164
        %p517 = pneg %p188
        %p518 = pneg %p185
        %p519 = pneg %p209
        %p520 = pneg %p206
        %p521 = pneg %p230
        %p522 = pneg %p227
        %p523 = pneg %p251
        %p524 = pneg %p248
        %p525 = pneg %p272
        %p526 = pneg %p269
        %p527 = pneg %p298
        %p528 = pneg %p295
        %s529 = sand.u32 %s285, 1
        %s530 = scalar_lea.sflag [#allocation4], %s529
        %s531 = sand.u32 %s285, 1
        %s532 = smul.addr %s531, 16
        %s533 = scalar_lea.vmem [#allocation14], %s532
        %s534 = smul.u32 2, %s31
        %p535 = scmp.lt.s32.totalorder %s534, 3
        %s536 = scalar_select %p535, %s534, 3
        %s537 = smul.addr %s536, 8
        %s538 = scalar_lea.vmem %s0, %s537
        %s539 = smul.u32 2, %s31
        %s540 = smul.u32 2, %s31
        %s541 = smul.u32 2, %s31
        %p542 = scmp.lt.s32.totalorder %s541, 3
        %s543 = scalar_select %p542, %s541, 3
        %s544 = smul.addr %s543, 8
        %s545 = scalar_lea.vmem %s2, %s544
        %s546 = smul.u32 2, %s31
        %s547 = smul.u32 2, %s31
        %v548 = vld [vmem:[%s538] sm:$0xff]
        %v549 = vld [vmem:[%s538 + $0x8] sm:$0xff]
        %v550 = vld [vmem:[#allocation7] sm:$0xff]
        %v551 = vld [vmem:[#allocation7 + $0x8] sm:$0xff]
        %v552 = vld [vmem:[#allocation7 + $0x10] sm:$0xff]
        %v553 = vld [vmem:[#allocation7 + $0x18] sm:$0xff]
        %v554 = vld [vmem:[#allocation7 + $0x20] sm:$0xff]
        %v555 = vld [vmem:[#allocation7 + $0x28] sm:$0xff]
        %v556 = vld [vmem:[#allocation7 + $0x30] sm:$0xff]
        %v557 = vld [vmem:[#allocation7 + $0x38] sm:$0xff]
        %v558 = vld [vmem:[#allocation7 + $0x40] sm:$0xff]
        %v559 = vld [vmem:[#allocation7 + $0x48] sm:$0xff]
        %v560 = vld [vmem:[#allocation7 + $0x50] sm:$0xff]
        %v561 = vld [vmem:[#allocation7 + $0x58] sm:$0xff]
        %v562 = vld [vmem:[#allocation7 + $0x60] sm:$0xff]
        %v563 = vld [vmem:[#allocation7 + $0x68] sm:$0xff]
        %v564 = vld [vmem:[#allocation7 + $0x70] sm:$0xff]
        %v565 = vld [vmem:[#allocation7 + $0x78] sm:$0xff]
        %v566 = vld [vmem:[#allocation7 + $0x80] sm:$0xff]
        %v567 = vld [vmem:[#allocation7 + $0x88] sm:$0xff]
        %v568 = vld [vmem:[#allocation7 + $0x90] sm:$0xff]
        %v569 = vld [vmem:[#allocation7 + $0x98] sm:$0xff]
        %v570 = vld [vmem:[#allocation7 + $0xa0] sm:$0xff]
        %v571 = vld [vmem:[#allocation7 + $0xa8] sm:$0xff]
        %v572 = vld [vmem:[#allocation7 + $0xb0] sm:$0xff]
        %v573 = vld [vmem:[#allocation7 + $0xb8] sm:$0xff]
        %v574 = vld [vmem:[#allocation7 + $0xc0] sm:$0xff]
        %v575 = vld [vmem:[#allocation7 + $0xc8] sm:$0xff]
        %v576 = vld [vmem:[#allocation7 + $0xd0] sm:$0xff]
        %v577 = vld [vmem:[#allocation7 + $0xd8] sm:$0xff]
        %v578 = vld [vmem:[#allocation7 + $0xe0] sm:$0xff]
        %v579 = vld [vmem:[#allocation7 + $0xe8] sm:$0xff]
        %v580 = vld [vmem:[#allocation7 + $0xf0] sm:$0xff]
        %v581 = vld [vmem:[#allocation7 + $0xf8] sm:$0xff]
        %v582 = vld [vmem:[%s454] sm:$0xff]
        %v583 = vld [vmem:[%s454 + $0x8] sm:$0xff]
        %v584 = vld [vmem:[#allocation8] sm:$0xff]
        %v585 = vld [vmem:[#allocation8 + $0x8] sm:$0xff]
        %v586 = vld [vmem:[#allocation8 + $0x10] sm:$0xff]
        %v587 = vld [vmem:[#allocation8 + $0x18] sm:$0xff]
        %v588 = vld [vmem:[#allocation8 + $0x20] sm:$0xff]
        %v589 = vld [vmem:[#allocation8 + $0x28] sm:$0xff]
        %v590 = vld [vmem:[#allocation8 + $0x30] sm:$0xff]
        %v591 = vld [vmem:[#allocation8 + $0x38] sm:$0xff]
        %v592 = vld [vmem:[#allocation8 + $0x40] sm:$0xff]
        %v593 = vld [vmem:[#allocation8 + $0x48] sm:$0xff]
        %v594 = vld [vmem:[#allocation8 + $0x50] sm:$0xff]
        %v595 = vld [vmem:[#allocation8 + $0x58] sm:$0xff]
        %v596 = vld [vmem:[#allocation8 + $0x60] sm:$0xff]
        %v597 = vld [vmem:[#allocation8 + $0x68] sm:$0xff]
        %v598 = vld [vmem:[#allocation8 + $0x70] sm:$0xff]
        %v599 = vld [vmem:[#allocation8 + $0x78] sm:$0xff]
        %v600 = vld [vmem:[#allocation8 + $0x80] sm:$0xff]
        %v601 = vld [vmem:[#allocation8 + $0x88] sm:$0xff]
        %v602 = vld [vmem:[#allocation8 + $0x90] sm:$0xff]
        %v603 = vld [vmem:[#allocation8 + $0x98] sm:$0xff]
        %v604 = vld [vmem:[#allocation8 + $0xa0] sm:$0xff]
        %v605 = vld [vmem:[#allocation8 + $0xa8] sm:$0xff]
        %v606 = vld [vmem:[#allocation8 + $0xb0] sm:$0xff]
        %v607 = vld [vmem:[#allocation8 + $0xb8] sm:$0xff]
        %v608 = vld [vmem:[#allocation8 + $0xc0] sm:$0xff]
        %v609 = vld [vmem:[#allocation8 + $0xc8] sm:$0xff]
        %v610 = vld [vmem:[#allocation8 + $0xd0] sm:$0xff]
        %v611 = vld [vmem:[#allocation8 + $0xd8] sm:$0xff]
        %v612 = vld [vmem:[#allocation8 + $0xe0] sm:$0xff]
        %v613 = vld [vmem:[#allocation8 + $0xe8] sm:$0xff]
        %v614 = vld [vmem:[#allocation8 + $0xf0] sm:$0xff]
        %v615 = vld [vmem:[#allocation8 + $0xf8] sm:$0xff]
        %vm616 = vcmask 523264
        %v618 = vsel %vm616, %v582, 0
        %v621 = vsel %vm616, %v583, 0
        %623 = vmatpush.msra.mxu0 0.0
        %624 = vmatpush.msra.mxu0 0.0
        %625 = vmatpush.msra.mxu0 0.0
        %626 = vmatpush.msra.mxu0 0.0
        %627 = vmatpush.msra.mxu0 0.0
        %628 = vmatpush.msra.mxu0 0.0
        %629 = vmatpush.msra.mxu0 0.0
        %630 = vmatpush.msra.mxu0 0.0
        %631 = vmatpush.msra.mxu0 %v612
        %632 = vmatpush.msra.mxu0 %v608
        %633 = vmatpush.msra.mxu0 %v604
        %634 = vmatpush.msra.mxu0 %v600
        %635 = vmatpush.msra.mxu0 %v596
        %636 = vmatpush.msra.mxu0 %v592
        %637 = vmatpush.msra.mxu0 %v588
        %638 = vmatpush.msra.mxu0 %v584
        %639 = vmatmul.f32.gmra.mxu0 %v618
        %v640 = vpop.f32.mrf.mxu0
        %v641 = vadd.f32 0.0, %v640
        %642 = vmatmul.f32.gmra.mxu0 %v621
        %v643 = vpop.f32.mrf.mxu0
        %v644 = vadd.f32 0.0, %v643
        %645 = vdwg.mxu0
        %646 = vmatpush.msra.mxu0 0.0
        %647 = vmatpush.msra.mxu0 0.0
        %648 = vmatpush.msra.mxu0 0.0
        %649 = vmatpush.msra.mxu0 0.0
        %650 = vmatpush.msra.mxu0 0.0
        %651 = vmatpush.msra.mxu0 0.0
        %652 = vmatpush.msra.mxu0 0.0
        %653 = vmatpush.msra.mxu0 0.0
        %654 = vmatpush.msra.mxu0 %v613
        %655 = vmatpush.msra.mxu0 %v609
        %656 = vmatpush.msra.mxu0 %v605
        %657 = vmatpush.msra.mxu0 %v601
        %658 = vmatpush.msra.mxu0 %v597
        %659 = vmatpush.msra.mxu0 %v593
        %660 = vmatpush.msra.mxu0 %v589
        %661 = vmatpush.msra.mxu0 %v585
        %662 = vmatmul.f32.gmra.mxu0 %v618
        %v663 = vpop.f32.mrf.mxu0
        %v664 = vadd.f32 0.0, %v663
        %665 = vmatmul.f32.gmra.mxu0 %v621
        %v666 = vpop.f32.mrf.mxu0
        %v667 = vadd.f32 0.0, %v666
        %668 = vdwg.mxu0
        %669 = vmatpush.msra.mxu0 0.0
        %670 = vmatpush.msra.mxu0 0.0
        %671 = vmatpush.msra.mxu0 0.0
        %672 = vmatpush.msra.mxu0 0.0
        %673 = vmatpush.msra.mxu0 0.0
        %674 = vmatpush.msra.mxu0 0.0
        %675 = vmatpush.msra.mxu0 0.0
        %676 = vmatpush.msra.mxu0 0.0
        %677 = vmatpush.msra.mxu0 %v614
        %678 = vmatpush.msra.mxu0 %v610
        %679 = vmatpush.msra.mxu0 %v606
        %680 = vmatpush.msra.mxu0 %v602
        %681 = vmatpush.msra.mxu0 %v598
        %682 = vmatpush.msra.mxu0 %v594
        %683 = vmatpush.msra.mxu0 %v590
        %684 = vmatpush.msra.mxu0 %v586
        %685 = vmatmul.f32.gmra.mxu0 %v618
        %v686 = vpop.f32.mrf.mxu0
        %v687 = vadd.f32 0.0, %v686
        %688 = vmatmul.f32.gmra.mxu0 %v621
        %v689 = vpop.f32.mrf.mxu0
        %v690 = vadd.f32 0.0, %v689
        %691 = vdwg.mxu0
        %692 = vmatpush.msra.mxu0 0.0
        %693 = vmatpush.msra.mxu0 0.0
        %694 = vmatpush.msra.mxu0 0.0
        %695 = vmatpush.msra.mxu0 0.0
        %696 = vmatpush.msra.mxu0 0.0
        %697 = vmatpush.msra.mxu0 0.0
        %698 = vmatpush.msra.mxu0 0.0
        %699 = vmatpush.msra.mxu0 0.0
        %700 = vmatpush.msra.mxu0 %v615
        %701 = vmatpush.msra.mxu0 %v611
        %702 = vmatpush.msra.mxu0 %v607
        %703 = vmatpush.msra.mxu0 %v603
        %704 = vmatpush.msra.mxu0 %v599
        %705 = vmatpush.msra.mxu0 %v595
        %706 = vmatpush.msra.mxu0 %v591
        %707 = vmatpush.msra.mxu0 %v587
        %708 = vmatmul.f32.gmra.mxu0 %v618
        %v709 = vpop.f32.mrf.mxu0
        %v710 = vadd.f32 0.0, %v709
        %711 = vmatmul.f32.gmra.mxu0 %v621
        %v712 = vpop.f32.mrf.mxu0
        %v713 = vadd.f32 0.0, %v712
        %714 = vdwg.mxu0
        %v716 = vsel %vm616, %v548, 0
        %v719 = vsel %vm616, %v549, 0
        %721 = vmatpush.msra.mxu0 0.0
        %722 = vmatpush.msra.mxu0 0.0
        %723 = vmatpush.msra.mxu0 0.0
        %724 = vmatpush.msra.mxu0 0.0
        %725 = vmatpush.msra.mxu0 0.0
        %726 = vmatpush.msra.mxu0 0.0
        %727 = vmatpush.msra.mxu0 0.0
        %728 = vmatpush.msra.mxu0 0.0
        %729 = vmatpush.msra.mxu0 %v578
        %730 = vmatpush.msra.mxu0 %v574
        %731 = vmatpush.msra.mxu0 %v570
        %732 = vmatpush.msra.mxu0 %v566
        %733 = vmatpush.msra.mxu0 %v562
        %734 = vmatpush.msra.mxu0 %v558
        %735 = vmatpush.msra.mxu0 %v554
        %736 = vmatpush.msra.mxu0 %v550
        %737 = vmatmul.f32.gmra.mxu0 %v716
        %v738 = vpop.f32.mrf.mxu0
        %v739 = vadd.f32 %v641, %v738
        %740 = vmatmul.f32.gmra.mxu0 %v719
        %v741 = vpop.f32.mrf.mxu0
        %v742 = vadd.f32 %v644, %v741
        %743 = vdwg.mxu0
        %744 = vmatpush.msra.mxu0 0.0
        %745 = vmatpush.msra.mxu0 0.0
        %746 = vmatpush.msra.mxu0 0.0
        %747 = vmatpush.msra.mxu0 0.0
        %748 = vmatpush.msra.mxu0 0.0
        %749 = vmatpush.msra.mxu0 0.0
        %750 = vmatpush.msra.mxu0 0.0
        %751 = vmatpush.msra.mxu0 0.0
        %752 = vmatpush.msra.mxu0 %v579
        %753 = vmatpush.msra.mxu0 %v575
        %754 = vmatpush.msra.mxu0 %v571
        %755 = vmatpush.msra.mxu0 %v567
        %756 = vmatpush.msra.mxu0 %v563
        %757 = vmatpush.msra.mxu0 %v559
        %758 = vmatpush.msra.mxu0 %v555
        %759 = vmatpush.msra.mxu0 %v551
        %760 = vmatmul.f32.gmra.mxu0 %v716
        %v761 = vpop.f32.mrf.mxu0
        %v762 = vadd.f32 %v664, %v761
        %763 = vmatmul.f32.gmra.mxu0 %v719
        %v764 = vpop.f32.mrf.mxu0
        %v765 = vadd.f32 %v667, %v764
        %766 = vdwg.mxu0
        %767 = vmatpush.msra.mxu0 0.0
        %768 = vmatpush.msra.mxu0 0.0
        %769 = vmatpush.msra.mxu0 0.0
        %770 = vmatpush.msra.mxu0 0.0
        %771 = vmatpush.msra.mxu0 0.0
        %772 = vmatpush.msra.mxu0 0.0
        %773 = vmatpush.msra.mxu0 0.0
        %774 = vmatpush.msra.mxu0 0.0
        %775 = vmatpush.msra.mxu0 %v580
        %776 = vmatpush.msra.mxu0 %v576
        %777 = vmatpush.msra.mxu0 %v572
        %778 = vmatpush.msra.mxu0 %v568
        %779 = vmatpush.msra.mxu0 %v564
        %780 = vmatpush.msra.mxu0 %v560
        %781 = vmatpush.msra.mxu0 %v556
        %782 = vmatpush.msra.mxu0 %v552
        %783 = vmatmul.f32.gmra.mxu0 %v716
        %v784 = vpop.f32.mrf.mxu0
        %v785 = vadd.f32 %v687, %v784
        %786 = vmatmul.f32.gmra.mxu0 %v719
        %v787 = vpop.f32.mrf.mxu0
        %v788 = vadd.f32 %v690, %v787
        %789 = vdwg.mxu0
        %790 = vmatpush.msra.mxu0 0.0
        %791 = vmatpush.msra.mxu0 0.0
        %792 = vmatpush.msra.mxu0 0.0
        %793 = vmatpush.msra.mxu0 0.0
        %794 = vmatpush.msra.mxu0 0.0
        %795 = vmatpush.msra.mxu0 0.0
        %796 = vmatpush.msra.mxu0 0.0
        %797 = vmatpush.msra.mxu0 0.0
        %798 = vmatpush.msra.mxu0 %v581
        %799 = vmatpush.msra.mxu0 %v577
        %800 = vmatpush.msra.mxu0 %v573
        %801 = vmatpush.msra.mxu0 %v569
        %802 = vmatpush.msra.mxu0 %v565
        %803 = vmatpush.msra.mxu0 %v561
        %804 = vmatpush.msra.mxu0 %v557
        %805 = vmatpush.msra.mxu0 %v553
        %806 = vmatmul.f32.gmra.mxu0 %v716
        %v807 = vpop.f32.mrf.mxu0
        %v808 = vadd.f32 %v710, %v807
        %809 = vmatmul.f32.gmra.mxu0 %v719
        %v810 = vpop.f32.mrf.mxu0
        %v811 = vadd.f32 %v713, %v810
        %812 = vdwg.mxu0
        %v813 = vld [vmem:[%s6] sm:$0xf]
        %v815 = vperm.slane %v813, 0
        %v816 = vperm.slane %v813, 1
        %v817 = vperm.slane %v813, 2
        %v818 = vperm.slane %v813, 3
        %v823 = vadd.f32 %v739, %v815
        %v824 = vadd.f32 %v762, %v816
        %v825 = vadd.f32 %v785, %v817
        %v826 = vadd.f32 %v808, %v818
        %v827 = vadd.f32 %v742, %v815
        %v828 = vadd.f32 %v765, %v816
        %v829 = vadd.f32 %v788, %v817
        %v830 = vadd.f32 %v811, %v818
        %v831 = vld [vmem:[%s545] sm:$0xff]
        %v832 = vld [vmem:[%s545 + $0x8] sm:$0xff]
        %834 = vset.pattern.permute.xlu0 0
        %835 = vperm.xlu0 %834, %v831
        %v836 = vpop.permute.xlu0 %835
        %839 = vset.pattern.permute.xlu0 0
        %840 = vperm.xlu0 %839, %v832
        %v841 = vpop.permute.xlu0 %840
        %v843 = vmul.f32 %v836, %v823
        %v844 = vmul.f32 %v836, %v824
        %v845 = vmul.f32 %v836, %v825
        %v846 = vmul.f32 %v836, %v826
        %v847 = vmul.f32 %v841, %v827
        %v848 = vmul.f32 %v841, %v828
        %v849 = vmul.f32 %v841, %v829
        %v850 = vmul.f32 %v841, %v830
        %v851 = vsub.f32 1.0, %v831
        %v852 = vsub.f32 1.0, %v832
        %v853 = vld [vmem:[#allocation5] sm:$0xf]
        %855 = vset.pattern.permute.xlu0 0
        %856 = vperm.xlu0 %855, %v851
        %v857 = vpop.permute.xlu0 %856
        %860 = vset.pattern.permute.xlu0 0
        %861 = vperm.xlu0 %860, %v852
        %v862 = vpop.permute.xlu0 %861
        %v865 = vperm.slane %v853, 0
        %v866 = vperm.slane %v853, 1
        %v867 = vperm.slane %v853, 2
        %v868 = vperm.slane %v853, 3
        %v873 = vmul.f32 %v857, %v865
        %v874 = vmul.f32 %v857, %v866
        %v875 = vmul.f32 %v857, %v867
        %v876 = vmul.f32 %v857, %v868
        %v877 = vmul.f32 %v862, %v865
        %v878 = vmul.f32 %v862, %v866
        %v879 = vmul.f32 %v862, %v867
        %v880 = vmul.f32 %v862, %v868
        %v881 = vadd.f32 %v843, %v873
        %v882 = vadd.f32 %v844, %v874
        %v883 = vadd.f32 %v845, %v875
        %v884 = vadd.f32 %v846, %v876
        %v885 = vadd.f32 %v847, %v877
        %v886 = vadd.f32 %v848, %v878
        %v887 = vadd.f32 %v849, %v879
        %v888 = vadd.f32 %v850, %v880
        %v889 = vsub.f32 0.0, %v881
        %v890 = vsub.f32 0.0, %v882
        %v891 = vsub.f32 0.0, %v883
        %v892 = vsub.f32 0.0, %v884
        %v893 = vsub.f32 0.0, %v885
        %v894 = vsub.f32 0.0, %v886
        %v895 = vsub.f32 0.0, %v887
        %v896 = vsub.f32 0.0, %v888
        %v897 = vmul.f32 %v889, 1.442695
        %v898 = vpow.pop %v897
        %v899 = vmul.f32 %v890, 1.442695
        %v900 = vpow.pop %v899
        %v901 = vmul.f32 %v891, 1.442695
        %v902 = vpow.pop %v901
        %v903 = vmul.f32 %v892, 1.442695
        %v904 = vpow.pop %v903
        %v905 = vmul.f32 %v893, 1.442695
        %v906 = vpow.pop %v905
        %v907 = vmul.f32 %v894, 1.442695
        %v908 = vpow.pop %v907
        %v909 = vmul.f32 %v895, 1.442695
        %v910 = vpow.pop %v909
        %v911 = vmul.f32 %v896, 1.442695
        %v912 = vpow.pop %v911
        %v913 = vadd.f32 %v898, 1.0
        %v914 = vadd.f32 %v900, 1.0
        %v915 = vadd.f32 %v902, 1.0
        %v916 = vadd.f32 %v904, 1.0
        %v917 = vadd.f32 %v906, 1.0
        %v918 = vadd.f32 %v908, 1.0
        %v919 = vadd.f32 %v910, 1.0
        %v920 = vadd.f32 %v912, 1.0
        %v921 = vrcp.pop %v913
        %v922 = vrcp.pop %v914
        %v923 = vrcp.pop %v915
        %v924 = vrcp.pop %v916
        %v925 = vrcp.pop %v917
        %v926 = vrcp.pop %v918
        %v927 = vrcp.pop %v919
        %v928 = vrcp.pop %v920
        %v929 = vmul.f32 %v881, %v921
        %v930 = vmul.f32 %v882, %v922
        %v931 = vmul.f32 %v883, %v923
        %v932 = vmul.f32 %v884, %v924
        %v933 = vmul.f32 %v885, %v925
        %v934 = vmul.f32 %v886, %v926
        %v935 = vmul.f32 %v887, %v927
        %v936 = vmul.f32 %v888, %v928
        %v937 = vld [vmem:[#allocation10] sm:$0xff]
        %v938 = vld [vmem:[#allocation10 + $0x8] sm:$0xff]
        %v939 = vld [vmem:[#allocation10 + $0x10] sm:$0xff]
        %v940 = vld [vmem:[#allocation10 + $0x18] sm:$0xff]
        %v941 = vld [vmem:[#allocation10 + $0x20] sm:$0xff]
        %v942 = vld [vmem:[#allocation10 + $0x28] sm:$0xff]
        %v943 = vld [vmem:[#allocation10 + $0x30] sm:$0xff]
        %v944 = vld [vmem:[#allocation10 + $0x38] sm:$0xff]
        %v945 = vld [vmem:[#allocation10 + $0x40] sm:$0xff]
        %v946 = vld [vmem:[#allocation10 + $0x48] sm:$0xff]
        %v947 = vld [vmem:[#allocation10 + $0x50] sm:$0xff]
        %v948 = vld [vmem:[#allocation10 + $0x58] sm:$0xff]
        %v949 = vld [vmem:[#allocation10 + $0x60] sm:$0xff]
        %v950 = vld [vmem:[#allocation10 + $0x68] sm:$0xff]
        %v951 = vld [vmem:[#allocation10 + $0x70] sm:$0xff]
        %v952 = vld [vmem:[#allocation10 + $0x78] sm:$0xff]
        %v953 = vld [vmem:[#allocation10 + $0x80] sm:$0xff]
        %v954 = vld [vmem:[#allocation10 + $0x88] sm:$0xff]
        %v955 = vld [vmem:[#allocation10 + $0x90] sm:$0xff]
        %v956 = vld [vmem:[#allocation10 + $0x98] sm:$0xff]
        %v957 = vld [vmem:[#allocation10 + $0xa0] sm:$0xff]
        %v958 = vld [vmem:[#allocation10 + $0xa8] sm:$0xff]
        %v959 = vld [vmem:[#allocation10 + $0xb0] sm:$0xff]
        %v960 = vld [vmem:[#allocation10 + $0xb8] sm:$0xff]
        %v961 = vld [vmem:[#allocation10 + $0xc0] sm:$0xff]
        %v962 = vld [vmem:[#allocation10 + $0xc8] sm:$0xff]
        %v963 = vld [vmem:[#allocation10 + $0xd0] sm:$0xff]
        %v964 = vld [vmem:[#allocation10 + $0xd8] sm:$0xff]
        %v965 = vld [vmem:[#allocation10 + $0xe0] sm:$0xff]
        %v966 = vld [vmem:[#allocation10 + $0xe8] sm:$0xff]
        %v967 = vld [vmem:[#allocation10 + $0xf0] sm:$0xff]
        %v968 = vld [vmem:[#allocation10 + $0xf8] sm:$0xff]
        %v969 = vld [vmem:[#allocation10 + $0x100] sm:$0xff]
        %v970 = vld [vmem:[#allocation10 + $0x108] sm:$0xff]
        %v971 = vld [vmem:[#allocation10 + $0x110] sm:$0xff]
        %v972 = vld [vmem:[#allocation10 + $0x118] sm:$0xff]
        %v973 = vld [vmem:[#allocation10 + $0x120] sm:$0xff]
        %v974 = vld [vmem:[#allocation10 + $0x128] sm:$0xff]
        %v975 = vld [vmem:[#allocation10 + $0x130] sm:$0xff]
        %v976 = vld [vmem:[#allocation10 + $0x138] sm:$0xff]
        %v977 = vld [vmem:[#allocation10 + $0x140] sm:$0xff]
        %v978 = vld [vmem:[#allocation10 + $0x148] sm:$0xff]
        %v979 = vld [vmem:[#allocation10 + $0x150] sm:$0xff]
        %v980 = vld [vmem:[#allocation10 + $0x158] sm:$0xff]
        %v981 = vld [vmem:[#allocation10 + $0x160] sm:$0xff]
        %v982 = vld [vmem:[#allocation10 + $0x168] sm:$0xff]
        %v983 = vld [vmem:[#allocation10 + $0x170] sm:$0xff]
        %v984 = vld [vmem:[#allocation10 + $0x178] sm:$0xff]
        %v985 = vld [vmem:[#allocation10 + $0x180] sm:$0xff]
        %v986 = vld [vmem:[#allocation10 + $0x188] sm:$0xff]
        %v987 = vld [vmem:[#allocation10 + $0x190] sm:$0xff]
        %v988 = vld [vmem:[#allocation10 + $0x198] sm:$0xff]
        %v989 = vld [vmem:[#allocation10 + $0x1a0] sm:$0xff]
        %v990 = vld [vmem:[#allocation10 + $0x1a8] sm:$0xff]
        %v991 = vld [vmem:[#allocation10 + $0x1b0] sm:$0xff]
        %v992 = vld [vmem:[#allocation10 + $0x1b8] sm:$0xff]
        %v993 = vld [vmem:[#allocation10 + $0x1c0] sm:$0xff]
        %v994 = vld [vmem:[#allocation10 + $0x1c8] sm:$0xff]
        %v995 = vld [vmem:[#allocation10 + $0x1d0] sm:$0xff]
        %v996 = vld [vmem:[#allocation10 + $0x1d8] sm:$0xff]
        %v997 = vld [vmem:[#allocation10 + $0x1e0] sm:$0xff]
        %v998 = vld [vmem:[#allocation10 + $0x1e8] sm:$0xff]
        %v999 = vld [vmem:[#allocation10 + $0x1f0] sm:$0xff]
        %v1000 = vld [vmem:[#allocation10 + $0x1f8] sm:$0xff]
        %v1001 = vld [vmem:[#allocation10 + $0x200] sm:$0xff]
        %v1002 = vld [vmem:[#allocation10 + $0x208] sm:$0xff]
        %v1003 = vld [vmem:[#allocation10 + $0x210] sm:$0xff]
        %v1004 = vld [vmem:[#allocation10 + $0x218] sm:$0xff]
        %v1005 = vld [vmem:[#allocation10 + $0x220] sm:$0xff]
        %v1006 = vld [vmem:[#allocation10 + $0x228] sm:$0xff]
        %v1007 = vld [vmem:[#allocation10 + $0x230] sm:$0xff]
        %v1008 = vld [vmem:[#allocation10 + $0x238] sm:$0xff]
        %v1009 = vld [vmem:[#allocation10 + $0x240] sm:$0xff]
        %v1010 = vld [vmem:[#allocation10 + $0x248] sm:$0xff]
        %v1011 = vld [vmem:[#allocation10 + $0x250] sm:$0xff]
        %v1012 = vld [vmem:[#allocation10 + $0x258] sm:$0xff]
        %v1013 = vld [vmem:[#allocation10 + $0x260] sm:$0xff]
        %v1014 = vld [vmem:[#allocation10 + $0x268] sm:$0xff]
        %v1015 = vld [vmem:[#allocation10 + $0x270] sm:$0xff]
        %v1016 = vld [vmem:[#allocation10 + $0x278] sm:$0xff]
        %v1017 = vld [vmem:[#allocation10 + $0x280] sm:$0xff]
        %v1018 = vld [vmem:[#allocation10 + $0x288] sm:$0xff]
        %v1019 = vld [vmem:[#allocation10 + $0x290] sm:$0xff]
        %v1020 = vld [vmem:[#allocation10 + $0x298] sm:$0xff]
        %v1021 = vld [vmem:[#allocation10 + $0x2a0] sm:$0xff]
        %v1022 = vld [vmem:[#allocation10 + $0x2a8] sm:$0xff]
        %v1023 = vld [vmem:[#allocation10 + $0x2b0] sm:$0xff]
        %v1024 = vld [vmem:[#allocation10 + $0x2b8] sm:$0xff]
        %v1025 = vld [vmem:[#allocation10 + $0x2c0] sm:$0xff]
        %v1026 = vld [vmem:[#allocation10 + $0x2c8] sm:$0xff]
        %v1027 = vld [vmem:[#allocation10 + $0x2d0] sm:$0xff]
        %v1028 = vld [vmem:[#allocation10 + $0x2d8] sm:$0xff]
        %v1029 = vld [vmem:[#allocation10 + $0x2e0] sm:$0xff]
        %v1030 = vld [vmem:[#allocation10 + $0x2e8] sm:$0xff]
        %v1031 = vld [vmem:[#allocation10 + $0x2f0] sm:$0xff]
        %v1032 = vld [vmem:[#allocation10 + $0x2f8] sm:$0xff]
        %v1033 = vld [vmem:[#allocation10 + $0x300] sm:$0xff]
        %v1034 = vld [vmem:[#allocation10 + $0x308] sm:$0xff]
        %v1035 = vld [vmem:[#allocation10 + $0x310] sm:$0xff]
        %v1036 = vld [vmem:[#allocation10 + $0x318] sm:$0xff]
        %v1037 = vld [vmem:[#allocation10 + $0x320] sm:$0xff]
        %v1038 = vld [vmem:[#allocation10 + $0x328] sm:$0xff]
        %v1039 = vld [vmem:[#allocation10 + $0x330] sm:$0xff]
        %v1040 = vld [vmem:[#allocation10 + $0x338] sm:$0xff]
        %v1041 = vld [vmem:[#allocation10 + $0x340] sm:$0xff]
        %v1042 = vld [vmem:[#allocation10 + $0x348] sm:$0xff]
        %v1043 = vld [vmem:[#allocation10 + $0x350] sm:$0xff]
        %v1044 = vld [vmem:[#allocation10 + $0x358] sm:$0xff]
        %v1045 = vld [vmem:[#allocation10 + $0x360] sm:$0xff]
        %v1046 = vld [vmem:[#allocation10 + $0x368] sm:$0xff]
        %v1047 = vld [vmem:[#allocation10 + $0x370] sm:$0xff]
        %v1048 = vld [vmem:[#allocation10 + $0x378] sm:$0xff]
        %v1049 = vld [vmem:[#allocation10 + $0x380] sm:$0xff]
        %v1050 = vld [vmem:[#allocation10 + $0x388] sm:$0xff]
        %v1051 = vld [vmem:[#allocation10 + $0x390] sm:$0xff]
        %v1052 = vld [vmem:[#allocation10 + $0x398] sm:$0xff]
        %v1053 = vld [vmem:[#allocation10 + $0x3a0] sm:$0xff]
        %v1054 = vld [vmem:[#allocation10 + $0x3a8] sm:$0xff]
        %v1055 = vld [vmem:[#allocation10 + $0x3b0] sm:$0xff]
        %v1056 = vld [vmem:[#allocation10 + $0x3b8] sm:$0xff]
        %v1057 = vld [vmem:[#allocation10 + $0x3c0] sm:$0xff]
        %v1058 = vld [vmem:[#allocation10 + $0x3c8] sm:$0xff]
        %v1059 = vld [vmem:[#allocation10 + $0x3d0] sm:$0xff]
        %v1060 = vld [vmem:[#allocation10 + $0x3d8] sm:$0xff]
        %v1061 = vld [vmem:[#allocation10 + $0x3e0] sm:$0xff]
        %v1062 = vld [vmem:[#allocation10 + $0x3e8] sm:$0xff]
        %v1063 = vld [vmem:[#allocation10 + $0x3f0] sm:$0xff]
        %v1064 = vld [vmem:[#allocation10 + $0x3f8] sm:$0xff]
        %v1065 = vld [vmem:[#allocation10 + $0x400] sm:$0xff]
        %v1066 = vld [vmem:[#allocation10 + $0x408] sm:$0xff]
        %v1067 = vld [vmem:[#allocation10 + $0x410] sm:$0xff]
        %v1068 = vld [vmem:[#allocation10 + $0x418] sm:$0xff]
        %v1069 = vld [vmem:[#allocation10 + $0x420] sm:$0xff]
        %v1070 = vld [vmem:[#allocation10 + $0x428] sm:$0xff]
        %v1071 = vld [vmem:[#allocation10 + $0x430] sm:$0xff]
        %v1072 = vld [vmem:[#allocation10 + $0x438] sm:$0xff]
        %v1073 = vld [vmem:[#allocation10 + $0x440] sm:$0xff]
        %v1074 = vld [vmem:[#allocation10 + $0x448] sm:$0xff]
        %v1075 = vld [vmem:[#allocation10 + $0x450] sm:$0xff]
        %v1076 = vld [vmem:[#allocation10 + $0x458] sm:$0xff]
        %v1077 = vld [vmem:[#allocation10 + $0x460] sm:$0xff]
        %v1078 = vld [vmem:[#allocation10 + $0x468] sm:$0xff]
        %v1079 = vld [vmem:[#allocation10 + $0x470] sm:$0xff]
        %v1080 = vld [vmem:[#allocation10 + $0x478] sm:$0xff]
        %v1081 = vld [vmem:[#allocation10 + $0x480] sm:$0xff]
        %v1082 = vld [vmem:[#allocation10 + $0x488] sm:$0xff]
        %v1083 = vld [vmem:[#allocation10 + $0x490] sm:$0xff]
        %v1084 = vld [vmem:[#allocation10 + $0x498] sm:$0xff]
        %v1085 = vld [vmem:[#allocation10 + $0x4a0] sm:$0xff]
        %v1086 = vld [vmem:[#allocation10 + $0x4a8] sm:$0xff]
        %v1087 = vld [vmem:[#allocation10 + $0x4b0] sm:$0xff]
        %v1088 = vld [vmem:[#allocation10 + $0x4b8] sm:$0xff]
        %v1089 = vld [vmem:[#allocation10 + $0x4c0] sm:$0xff]
        %v1090 = vld [vmem:[#allocation10 + $0x4c8] sm:$0xff]
        %v1091 = vld [vmem:[#allocation10 + $0x4d0] sm:$0xff]
        %v1092 = vld [vmem:[#allocation10 + $0x4d8] sm:$0xff]
        %v1093 = vld [vmem:[#allocation10 + $0x4e0] sm:$0xff]
        %v1094 = vld [vmem:[#allocation10 + $0x4e8] sm:$0xff]
        %v1095 = vld [vmem:[#allocation10 + $0x4f0] sm:$0xff]
        %v1096 = vld [vmem:[#allocation10 + $0x4f8] sm:$0xff]
        %v1097 = vld [vmem:[#allocation10 + $0x500] sm:$0xff]
        %v1098 = vld [vmem:[#allocation10 + $0x508] sm:$0xff]
        %v1099 = vld [vmem:[#allocation10 + $0x510] sm:$0xff]
        %v1100 = vld [vmem:[#allocation10 + $0x518] sm:$0xff]
        %v1101 = vld [vmem:[#allocation10 + $0x520] sm:$0xff]
        %v1102 = vld [vmem:[#allocation10 + $0x528] sm:$0xff]
        %v1103 = vld [vmem:[#allocation10 + $0x530] sm:$0xff]
        %v1104 = vld [vmem:[#allocation10 + $0x538] sm:$0xff]
        %v1105 = vld [vmem:[#allocation10 + $0x540] sm:$0xff]
        %v1106 = vld [vmem:[#allocation10 + $0x548] sm:$0xff]
        %v1107 = vld [vmem:[#allocation10 + $0x550] sm:$0xff]
        %v1108 = vld [vmem:[#allocation10 + $0x558] sm:$0xff]
        %v1109 = vld [vmem:[#allocation10 + $0x560] sm:$0xff]
        %v1110 = vld [vmem:[#allocation10 + $0x568] sm:$0xff]
        %v1111 = vld [vmem:[#allocation10 + $0x570] sm:$0xff]
        %v1112 = vld [vmem:[#allocation10 + $0x578] sm:$0xff]
        %v1113 = vld [vmem:[#allocation10 + $0x580] sm:$0xff]
        %v1114 = vld [vmem:[#allocation10 + $0x588] sm:$0xff]
        %v1115 = vld [vmem:[#allocation10 + $0x590] sm:$0xff]
        %v1116 = vld [vmem:[#allocation10 + $0x598] sm:$0xff]
        %v1117 = vld [vmem:[#allocation10 + $0x5a0] sm:$0xff]
        %v1118 = vld [vmem:[#allocation10 + $0x5a8] sm:$0xff]
        %v1119 = vld [vmem:[#allocation10 + $0x5b0] sm:$0xff]
        %v1120 = vld [vmem:[#allocation10 + $0x5b8] sm:$0xff]
        %v1121 = vld [vmem:[#allocation10 + $0x5c0] sm:$0xff]
        %v1122 = vld [vmem:[#allocation10 + $0x5c8] sm:$0xff]
        %v1123 = vld [vmem:[#allocation10 + $0x5d0] sm:$0xff]
        %v1124 = vld [vmem:[#allocation10 + $0x5d8] sm:$0xff]
        %v1125 = vld [vmem:[#allocation10 + $0x5e0] sm:$0xff]
        %v1126 = vld [vmem:[#allocation10 + $0x5e8] sm:$0xff]
        %v1127 = vld [vmem:[#allocation10 + $0x5f0] sm:$0xff]
        %v1128 = vld [vmem:[#allocation10 + $0x5f8] sm:$0xff]
        %v1129 = vld [vmem:[#allocation10 + $0x600] sm:$0xff]
        %v1130 = vld [vmem:[#allocation10 + $0x608] sm:$0xff]
        %v1131 = vld [vmem:[#allocation10 + $0x610] sm:$0xff]
        %v1132 = vld [vmem:[#allocation10 + $0x618] sm:$0xff]
        %v1133 = vld [vmem:[#allocation10 + $0x620] sm:$0xff]
        %v1134 = vld [vmem:[#allocation10 + $0x628] sm:$0xff]
        %v1135 = vld [vmem:[#allocation10 + $0x630] sm:$0xff]
        %v1136 = vld [vmem:[#allocation10 + $0x638] sm:$0xff]
        %v1137 = vld [vmem:[#allocation10 + $0x640] sm:$0xff]
        %v1138 = vld [vmem:[#allocation10 + $0x648] sm:$0xff]
        %v1139 = vld [vmem:[#allocation10 + $0x650] sm:$0xff]
        %v1140 = vld [vmem:[#allocation10 + $0x658] sm:$0xff]
        %v1141 = vld [vmem:[#allocation10 + $0x660] sm:$0xff]
        %v1142 = vld [vmem:[#allocation10 + $0x668] sm:$0xff]
        %v1143 = vld [vmem:[#allocation10 + $0x670] sm:$0xff]
        %v1144 = vld [vmem:[#allocation10 + $0x678] sm:$0xff]
        %v1145 = vld [vmem:[#allocation10 + $0x680] sm:$0xff]
        %v1146 = vld [vmem:[#allocation10 + $0x688] sm:$0xff]
        %v1147 = vld [vmem:[#allocation10 + $0x690] sm:$0xff]
        %v1148 = vld [vmem:[#allocation10 + $0x698] sm:$0xff]
        %v1149 = vld [vmem:[#allocation10 + $0x6a0] sm:$0xff]
        %v1150 = vld [vmem:[#allocation10 + $0x6a8] sm:$0xff]
        %v1151 = vld [vmem:[#allocation10 + $0x6b0] sm:$0xff]
        %v1152 = vld [vmem:[#allocation10 + $0x6b8] sm:$0xff]
        %v1153 = vld [vmem:[#allocation10 + $0x6c0] sm:$0xff]
        %v1154 = vld [vmem:[#allocation10 + $0x6c8] sm:$0xff]
        %v1155 = vld [vmem:[#allocation10 + $0x6d0] sm:$0xff]
        %v1156 = vld [vmem:[#allocation10 + $0x6d8] sm:$0xff]
        %v1157 = vld [vmem:[#allocation10 + $0x6e0] sm:$0xff]
        %v1158 = vld [vmem:[#allocation10 + $0x6e8] sm:$0xff]
        %v1159 = vld [vmem:[#allocation10 + $0x6f0] sm:$0xff]
        %v1160 = vld [vmem:[#allocation10 + $0x6f8] sm:$0xff]
        %v1161 = vld [vmem:[#allocation10 + $0x700] sm:$0xff]
        %v1162 = vld [vmem:[#allocation10 + $0x708] sm:$0xff]
        %v1163 = vld [vmem:[#allocation10 + $0x710] sm:$0xff]
        %v1164 = vld [vmem:[#allocation10 + $0x718] sm:$0xff]
        %v1165 = vld [vmem:[#allocation10 + $0x720] sm:$0xff]
        %v1166 = vld [vmem:[#allocation10 + $0x728] sm:$0xff]
        %v1167 = vld [vmem:[#allocation10 + $0x730] sm:$0xff]
        %v1168 = vld [vmem:[#allocation10 + $0x738] sm:$0xff]
        %v1169 = vld [vmem:[#allocation10 + $0x740] sm:$0xff]
        %v1170 = vld [vmem:[#allocation10 + $0x748] sm:$0xff]
        %v1171 = vld [vmem:[#allocation10 + $0x750] sm:$0xff]
        %v1172 = vld [vmem:[#allocation10 + $0x758] sm:$0xff]
        %v1173 = vld [vmem:[#allocation10 + $0x760] sm:$0xff]
        %v1174 = vld [vmem:[#allocation10 + $0x768] sm:$0xff]
        %v1175 = vld [vmem:[#allocation10 + $0x770] sm:$0xff]
        %v1176 = vld [vmem:[#allocation10 + $0x778] sm:$0xff]
        %v1177 = vld [vmem:[#allocation10 + $0x780] sm:$0xff]
        %v1178 = vld [vmem:[#allocation10 + $0x788] sm:$0xff]
        %v1179 = vld [vmem:[#allocation10 + $0x790] sm:$0xff]
        %v1180 = vld [vmem:[#allocation10 + $0x798] sm:$0xff]
        %v1181 = vld [vmem:[#allocation10 + $0x7a0] sm:$0xff]
        %v1182 = vld [vmem:[#allocation10 + $0x7a8] sm:$0xff]
        %v1183 = vld [vmem:[#allocation10 + $0x7b0] sm:$0xff]
        %v1184 = vld [vmem:[#allocation10 + $0x7b8] sm:$0xff]
        %v1185 = vld [vmem:[#allocation10 + $0x7c0] sm:$0xff]
        %v1186 = vld [vmem:[#allocation10 + $0x7c8] sm:$0xff]
        %v1187 = vld [vmem:[#allocation10 + $0x7d0] sm:$0xff]
        %v1188 = vld [vmem:[#allocation10 + $0x7d8] sm:$0xff]
        %v1189 = vld [vmem:[#allocation10 + $0x7e0] sm:$0xff]
        %v1190 = vld [vmem:[#allocation10 + $0x7e8] sm:$0xff]
        %v1191 = vld [vmem:[#allocation10 + $0x7f0] sm:$0xff]
        %v1192 = vld [vmem:[#allocation10 + $0x7f8] sm:$0xff]
        %v1193 = vld [vmem:[#allocation11] sm:$0xf]
        %v1195 = vperm.slane %v1193, 0
        %v1196 = vperm.slane %v1193, 1
        %v1197 = vperm.slane %v1193, 2
        %v1198 = vperm.slane %v1193, 3
        %1203 = vmatpush.msra.mxu0 %v997
        %1204 = vmatpush.msra.mxu0 %v993
        %1205 = vmatpush.msra.mxu0 %v989
        %1206 = vmatpush.msra.mxu0 %v985
        %1207 = vmatpush.msra.mxu0 %v981
        %1208 = vmatpush.msra.mxu0 %v977
        %1209 = vmatpush.msra.mxu0 %v973
        %1210 = vmatpush.msra.mxu0 %v969
        %1211 = vmatpush.msra.mxu0 %v965
        %1212 = vmatpush.msra.mxu0 %v961
        %1213 = vmatpush.msra.mxu0 %v957
        %1214 = vmatpush.msra.mxu0 %v953
        %1215 = vmatpush.msra.mxu0 %v949
        %1216 = vmatpush.msra.mxu0 %v945
        %1217 = vmatpush.msra.mxu0 %v941
        %1218 = vmatpush.msra.mxu0 %v937
        %1219 = vmatmul.f32.gmra.mxu0 %v929
        %v1220 = vpop.f32.mrf.mxu0
        %v1221 = vadd.f32 %v1195, %v1220
        %1222 = vmatmul.f32.gmra.mxu0 %v933
        %v1223 = vpop.f32.mrf.mxu0
        %v1224 = vadd.f32 %v1195, %v1223
        %1225 = vdwg.mxu0
        %1226 = vmatpush.msra.mxu0 %v1061
        %1227 = vmatpush.msra.mxu0 %v1057
        %1228 = vmatpush.msra.mxu0 %v1053
        %1229 = vmatpush.msra.mxu0 %v1049
        %1230 = vmatpush.msra.mxu0 %v1045
        %1231 = vmatpush.msra.mxu0 %v1041
        %1232 = vmatpush.msra.mxu0 %v1037
        %1233 = vmatpush.msra.mxu0 %v1033
        %1234 = vmatpush.msra.mxu0 %v1029
        %1235 = vmatpush.msra.mxu0 %v1025
        %1236 = vmatpush.msra.mxu0 %v1021
        %1237 = vmatpush.msra.mxu0 %v1017
        %1238 = vmatpush.msra.mxu0 %v1013
        %1239 = vmatpush.msra.mxu0 %v1009
        %1240 = vmatpush.msra.mxu0 %v1005
        %1241 = vmatpush.msra.mxu0 %v1001
        %1242 = vmatmul.f32.gmra.mxu0 %v930
        %v1243 = vpop.f32.mrf.mxu0
        %v1244 = vadd.f32 %v1221, %v1243
        %1245 = vmatmul.f32.gmra.mxu0 %v934
        %v1246 = vpop.f32.mrf.mxu0
        %v1247 = vadd.f32 %v1224, %v1246
        %1248 = vdwg.mxu0
        %1249 = vmatpush.msra.mxu0 %v1125
        %1250 = vmatpush.msra.mxu0 %v1121
        %1251 = vmatpush.msra.mxu0 %v1117
        %1252 = vmatpush.msra.mxu0 %v1113
        %1253 = vmatpush.msra.mxu0 %v1109
        %1254 = vmatpush.msra.mxu0 %v1105
        %1255 = vmatpush.msra.mxu0 %v1101
        %1256 = vmatpush.msra.mxu0 %v1097
        %1257 = vmatpush.msra.mxu0 %v1093
        %1258 = vmatpush.msra.mxu0 %v1089
        %1259 = vmatpush.msra.mxu0 %v1085
        %1260 = vmatpush.msra.mxu0 %v1081
        %1261 = vmatpush.msra.mxu0 %v1077
        %1262 = vmatpush.msra.mxu0 %v1073
        %1263 = vmatpush.msra.mxu0 %v1069
        %1264 = vmatpush.msra.mxu0 %v1065
        %1265 = vmatmul.f32.gmra.mxu0 %v931
        %v1266 = vpop.f32.mrf.mxu0
        %v1267 = vadd.f32 %v1244, %v1266
        %1268 = vmatmul.f32.gmra.mxu0 %v935
        %v1269 = vpop.f32.mrf.mxu0
        %v1270 = vadd.f32 %v1247, %v1269
        %1271 = vdwg.mxu0
        %1272 = vmatpush.msra.mxu0 %v1189
        %1273 = vmatpush.msra.mxu0 %v1185
        %1274 = vmatpush.msra.mxu0 %v1181
        %1275 = vmatpush.msra.mxu0 %v1177
        %1276 = vmatpush.msra.mxu0 %v1173
        %1277 = vmatpush.msra.mxu0 %v1169
        %1278 = vmatpush.msra.mxu0 %v1165
        %1279 = vmatpush.msra.mxu0 %v1161
        %1280 = vmatpush.msra.mxu0 %v1157
        %1281 = vmatpush.msra.mxu0 %v1153
        %1282 = vmatpush.msra.mxu0 %v1149
        %1283 = vmatpush.msra.mxu0 %v1145
        %1284 = vmatpush.msra.mxu0 %v1141
        %1285 = vmatpush.msra.mxu0 %v1137
        %1286 = vmatpush.msra.mxu0 %v1133
        %1287 = vmatpush.msra.mxu0 %v1129
        %1288 = vmatmul.f32.gmra.mxu0 %v932
        %v1289 = vpop.f32.mrf.mxu0
        %v1290 = vadd.f32 %v1267, %v1289
        %1291 = vmatmul.f32.gmra.mxu0 %v936
        %v1292 = vpop.f32.mrf.mxu0
        %v1293 = vadd.f32 %v1270, %v1292
        %1294 = vdwg.mxu0
        %1295 = vmatpush.msra.mxu0 %v998
        %1296 = vmatpush.msra.mxu0 %v994
        %1297 = vmatpush.msra.mxu0 %v990
        %1298 = vmatpush.msra.mxu0 %v986
        %1299 = vmatpush.msra.mxu0 %v982
        %1300 = vmatpush.msra.mxu0 %v978
        %1301 = vmatpush.msra.mxu0 %v974
        %1302 = vmatpush.msra.mxu0 %v970
        %1303 = vmatpush.msra.mxu0 %v966
        %1304 = vmatpush.msra.mxu0 %v962
        %1305 = vmatpush.msra.mxu0 %v958
        %1306 = vmatpush.msra.mxu0 %v954
        %1307 = vmatpush.msra.mxu0 %v950
        %1308 = vmatpush.msra.mxu0 %v946
        %1309 = vmatpush.msra.mxu0 %v942
        %1310 = vmatpush.msra.mxu0 %v938
        %1311 = vmatmul.f32.gmra.mxu0 %v929
        %v1312 = vpop.f32.mrf.mxu0
        %v1313 = vadd.f32 %v1196, %v1312
        %1314 = vmatmul.f32.gmra.mxu0 %v933
        %v1315 = vpop.f32.mrf.mxu0
        %v1316 = vadd.f32 %v1196, %v1315
        %1317 = vdwg.mxu0
        %1318 = vmatpush.msra.mxu0 %v1062
        %1319 = vmatpush.msra.mxu0 %v1058
        %1320 = vmatpush.msra.mxu0 %v1054
        %1321 = vmatpush.msra.mxu0 %v1050
        %1322 = vmatpush.msra.mxu0 %v1046
        %1323 = vmatpush.msra.mxu0 %v1042
        %1324 = vmatpush.msra.mxu0 %v1038
        %1325 = vmatpush.msra.mxu0 %v1034
        %1326 = vmatpush.msra.mxu0 %v1030
        %1327 = vmatpush.msra.mxu0 %v1026
        %1328 = vmatpush.msra.mxu0 %v1022
        %1329 = vmatpush.msra.mxu0 %v1018
        %1330 = vmatpush.msra.mxu0 %v1014
        %1331 = vmatpush.msra.mxu0 %v1010
        %1332 = vmatpush.msra.mxu0 %v1006
        %1333 = vmatpush.msra.mxu0 %v1002
        %1334 = vmatmul.f32.gmra.mxu0 %v930
        %v1335 = vpop.f32.mrf.mxu0
        %v1336 = vadd.f32 %v1313, %v1335
        %1337 = vmatmul.f32.gmra.mxu0 %v934
        %v1338 = vpop.f32.mrf.mxu0
        %v1339 = vadd.f32 %v1316, %v1338
        %1340 = vdwg.mxu0
        %1341 = vmatpush.msra.mxu0 %v1126
        %1342 = vmatpush.msra.mxu0 %v1122
        %1343 = vmatpush.msra.mxu0 %v1118
        %1344 = vmatpush.msra.mxu0 %v1114
        %1345 = vmatpush.msra.mxu0 %v1110
        %1346 = vmatpush.msra.mxu0 %v1106
        %1347 = vmatpush.msra.mxu0 %v1102
        %1348 = vmatpush.msra.mxu0 %v1098
        %1349 = vmatpush.msra.mxu0 %v1094
        %1350 = vmatpush.msra.mxu0 %v1090
        %1351 = vmatpush.msra.mxu0 %v1086
        %1352 = vmatpush.msra.mxu0 %v1082
        %1353 = vmatpush.msra.mxu0 %v1078
        %1354 = vmatpush.msra.mxu0 %v1074
        %1355 = vmatpush.msra.mxu0 %v1070
        %1356 = vmatpush.msra.mxu0 %v1066
        %1357 = vmatmul.f32.gmra.mxu0 %v931
        %v1358 = vpop.f32.mrf.mxu0
        %v1359 = vadd.f32 %v1336, %v1358
        %1360 = vmatmul.f32.gmra.mxu0 %v935
        %v1361 = vpop.f32.mrf.mxu0
        %v1362 = vadd.f32 %v1339, %v1361
        %1363 = vdwg.mxu0
        %1364 = vmatpush.msra.mxu0 %v1190
        %1365 = vmatpush.msra.mxu0 %v1186
        %1366 = vmatpush.msra.mxu0 %v1182
        %1367 = vmatpush.msra.mxu0 %v1178
        %1368 = vmatpush.msra.mxu0 %v1174
        %1369 = vmatpush.msra.mxu0 %v1170
        %1370 = vmatpush.msra.mxu0 %v1166
        %1371 = vmatpush.msra.mxu0 %v1162
        %1372 = vmatpush.msra.mxu0 %v1158
        %1373 = vmatpush.msra.mxu0 %v1154
        %1374 = vmatpush.msra.mxu0 %v1150
        %1375 = vmatpush.msra.mxu0 %v1146
        %1376 = vmatpush.msra.mxu0 %v1142
        %1377 = vmatpush.msra.mxu0 %v1138
        %1378 = vmatpush.msra.mxu0 %v1134
        %1379 = vmatpush.msra.mxu0 %v1130
        %1380 = vmatmul.f32.gmra.mxu0 %v932
        %v1381 = vpop.f32.mrf.mxu0
        %v1382 = vadd.f32 %v1359, %v1381
        %1383 = vmatmul.f32.gmra.mxu0 %v936
        %v1384 = vpop.f32.mrf.mxu0
        %v1385 = vadd.f32 %v1362, %v1384
        %1386 = vdwg.mxu0
        %1387 = vmatpush.msra.mxu0 %v999
        %1388 = vmatpush.msra.mxu0 %v995
        %1389 = vmatpush.msra.mxu0 %v991
        %1390 = vmatpush.msra.mxu0 %v987
        %1391 = vmatpush.msra.mxu0 %v983
        %1392 = vmatpush.msra.mxu0 %v979
        %1393 = vmatpush.msra.mxu0 %v975
        %1394 = vmatpush.msra.mxu0 %v971
        %1395 = vmatpush.msra.mxu0 %v967
        %1396 = vmatpush.msra.mxu0 %v963
        %1397 = vmatpush.msra.mxu0 %v959
        %1398 = vmatpush.msra.mxu0 %v955
        %1399 = vmatpush.msra.mxu0 %v951
        %1400 = vmatpush.msra.mxu0 %v947
        %1401 = vmatpush.msra.mxu0 %v943
        %1402 = vmatpush.msra.mxu0 %v939
        %1403 = vmatmul.f32.gmra.mxu0 %v929
        %v1404 = vpop.f32.mrf.mxu0
        %v1405 = vadd.f32 %v1197, %v1404
        %1406 = vmatmul.f32.gmra.mxu0 %v933
        %v1407 = vpop.f32.mrf.mxu0
        %v1408 = vadd.f32 %v1197, %v1407
        %1409 = vdwg.mxu0
        %1410 = vmatpush.msra.mxu0 %v1063
        %1411 = vmatpush.msra.mxu0 %v1059
        %1412 = vmatpush.msra.mxu0 %v1055
        %1413 = vmatpush.msra.mxu0 %v1051
        %1414 = vmatpush.msra.mxu0 %v1047
        %1415 = vmatpush.msra.mxu0 %v1043
        %1416 = vmatpush.msra.mxu0 %v1039
        %1417 = vmatpush.msra.mxu0 %v1035
        %1418 = vmatpush.msra.mxu0 %v1031
        %1419 = vmatpush.msra.mxu0 %v1027
        %1420 = vmatpush.msra.mxu0 %v1023
        %1421 = vmatpush.msra.mxu0 %v1019
        %1422 = vmatpush.msra.mxu0 %v1015
        %1423 = vmatpush.msra.mxu0 %v1011
        %1424 = vmatpush.msra.mxu0 %v1007
        %1425 = vmatpush.msra.mxu0 %v1003
        %1426 = vmatmul.f32.gmra.mxu0 %v930
        %v1427 = vpop.f32.mrf.mxu0
        %v1428 = vadd.f32 %v1405, %v1427
        %1429 = vmatmul.f32.gmra.mxu0 %v934
        %v1430 = vpop.f32.mrf.mxu0
        %v1431 = vadd.f32 %v1408, %v1430
        %1432 = vdwg.mxu0
        %1433 = vmatpush.msra.mxu0 %v1127
        %1434 = vmatpush.msra.mxu0 %v1123
        %1435 = vmatpush.msra.mxu0 %v1119
        %1436 = vmatpush.msra.mxu0 %v1115
        %1437 = vmatpush.msra.mxu0 %v1111
        %1438 = vmatpush.msra.mxu0 %v1107
        %1439 = vmatpush.msra.mxu0 %v1103
        %1440 = vmatpush.msra.mxu0 %v1099
        %1441 = vmatpush.msra.mxu0 %v1095
        %1442 = vmatpush.msra.mxu0 %v1091
        %1443 = vmatpush.msra.mxu0 %v1087
        %1444 = vmatpush.msra.mxu0 %v1083
        %1445 = vmatpush.msra.mxu0 %v1079
        %1446 = vmatpush.msra.mxu0 %v1075
        %1447 = vmatpush.msra.mxu0 %v1071
        %1448 = vmatpush.msra.mxu0 %v1067
        %1449 = vmatmul.f32.gmra.mxu0 %v931
        %v1450 = vpop.f32.mrf.mxu0
        %v1451 = vadd.f32 %v1428, %v1450
        %1452 = vmatmul.f32.gmra.mxu0 %v935
        %v1453 = vpop.f32.mrf.mxu0
        %v1454 = vadd.f32 %v1431, %v1453
        %1455 = vdwg.mxu0
        %1456 = vmatpush.msra.mxu0 %v1191
        %1457 = vmatpush.msra.mxu0 %v1187
        %1458 = vmatpush.msra.mxu0 %v1183
        %1459 = vmatpush.msra.mxu0 %v1179
        %1460 = vmatpush.msra.mxu0 %v1175
        %1461 = vmatpush.msra.mxu0 %v1171
        %1462 = vmatpush.msra.mxu0 %v1167
        %1463 = vmatpush.msra.mxu0 %v1163
        %1464 = vmatpush.msra.mxu0 %v1159
        %1465 = vmatpush.msra.mxu0 %v1155
        %1466 = vmatpush.msra.mxu0 %v1151
        %1467 = vmatpush.msra.mxu0 %v1147
        %1468 = vmatpush.msra.mxu0 %v1143
        %1469 = vmatpush.msra.mxu0 %v1139
        %1470 = vmatpush.msra.mxu0 %v1135
        %1471 = vmatpush.msra.mxu0 %v1131
        %1472 = vmatmul.f32.gmra.mxu0 %v932
        %v1473 = vpop.f32.mrf.mxu0
        %v1474 = vadd.f32 %v1451, %v1473
        %1475 = vmatmul.f32.gmra.mxu0 %v936
        %v1476 = vpop.f32.mrf.mxu0
        %v1477 = vadd.f32 %v1454, %v1476
        %1478 = vdwg.mxu0
        %1479 = vmatpush.msra.mxu0 %v1000
        %1480 = vmatpush.msra.mxu0 %v996
        %1481 = vmatpush.msra.mxu0 %v992
        %1482 = vmatpush.msra.mxu0 %v988
        %1483 = vmatpush.msra.mxu0 %v984
        %1484 = vmatpush.msra.mxu0 %v980
        %1485 = vmatpush.msra.mxu0 %v976
        %1486 = vmatpush.msra.mxu0 %v972
        %1487 = vmatpush.msra.mxu0 %v968
        %1488 = vmatpush.msra.mxu0 %v964
        %1489 = vmatpush.msra.mxu0 %v960
        %1490 = vmatpush.msra.mxu0 %v956
        %1491 = vmatpush.msra.mxu0 %v952
        %1492 = vmatpush.msra.mxu0 %v948
        %1493 = vmatpush.msra.mxu0 %v944
        %1494 = vmatpush.msra.mxu0 %v940
        %1495 = vmatmul.f32.gmra.mxu0 %v929
        %v1496 = vpop.f32.mrf.mxu0
        %v1497 = vadd.f32 %v1198, %v1496
        %1498 = vmatmul.f32.gmra.mxu0 %v933
        %v1499 = vpop.f32.mrf.mxu0
        %v1500 = vadd.f32 %v1198, %v1499
        %1501 = vdwg.mxu0
        %1502 = vmatpush.msra.mxu0 %v1064
        %1503 = vmatpush.msra.mxu0 %v1060
        %1504 = vmatpush.msra.mxu0 %v1056
        %1505 = vmatpush.msra.mxu0 %v1052
        %1506 = vmatpush.msra.mxu0 %v1048
        %1507 = vmatpush.msra.mxu0 %v1044
        %1508 = vmatpush.msra.mxu0 %v1040
        %1509 = vmatpush.msra.mxu0 %v1036
        %1510 = vmatpush.msra.mxu0 %v1032
        %1511 = vmatpush.msra.mxu0 %v1028
        %1512 = vmatpush.msra.mxu0 %v1024
        %1513 = vmatpush.msra.mxu0 %v1020
        %1514 = vmatpush.msra.mxu0 %v1016
        %1515 = vmatpush.msra.mxu0 %v1012
        %1516 = vmatpush.msra.mxu0 %v1008
        %1517 = vmatpush.msra.mxu0 %v1004
        %1518 = vmatmul.f32.gmra.mxu0 %v930
        %v1519 = vpop.f32.mrf.mxu0
        %v1520 = vadd.f32 %v1497, %v1519
        %1521 = vmatmul.f32.gmra.mxu0 %v934
        %v1522 = vpop.f32.mrf.mxu0
        %v1523 = vadd.f32 %v1500, %v1522
        %1524 = vdwg.mxu0
        %1525 = vmatpush.msra.mxu0 %v1128
        %1526 = vmatpush.msra.mxu0 %v1124
        %1527 = vmatpush.msra.mxu0 %v1120
        %1528 = vmatpush.msra.mxu0 %v1116
        %1529 = vmatpush.msra.mxu0 %v1112
        %1530 = vmatpush.msra.mxu0 %v1108
        %1531 = vmatpush.msra.mxu0 %v1104
        %1532 = vmatpush.msra.mxu0 %v1100
        %1533 = vmatpush.msra.mxu0 %v1096
        %1534 = vmatpush.msra.mxu0 %v1092
        %1535 = vmatpush.msra.mxu0 %v1088
        %1536 = vmatpush.msra.mxu0 %v1084
        %1537 = vmatpush.msra.mxu0 %v1080
        %1538 = vmatpush.msra.mxu0 %v1076
        %1539 = vmatpush.msra.mxu0 %v1072
        %1540 = vmatpush.msra.mxu0 %v1068
        %1541 = vmatmul.f32.gmra.mxu0 %v931
        %v1542 = vpop.f32.mrf.mxu0
        %v1543 = vadd.f32 %v1520, %v1542
        %1544 = vmatmul.f32.gmra.mxu0 %v935
        %v1545 = vpop.f32.mrf.mxu0
        %v1546 = vadd.f32 %v1523, %v1545
        %1547 = vdwg.mxu0
        %1548 = vmatpush.msra.mxu0 %v1192
        %1549 = vmatpush.msra.mxu0 %v1188
        %1550 = vmatpush.msra.mxu0 %v1184
        %1551 = vmatpush.msra.mxu0 %v1180
        %1552 = vmatpush.msra.mxu0 %v1176
        %1553 = vmatpush.msra.mxu0 %v1172
        %1554 = vmatpush.msra.mxu0 %v1168
        %1555 = vmatpush.msra.mxu0 %v1164
        %1556 = vmatpush.msra.mxu0 %v1160
        %1557 = vmatpush.msra.mxu0 %v1156
        %1558 = vmatpush.msra.mxu0 %v1152
        %1559 = vmatpush.msra.mxu0 %v1148
        %1560 = vmatpush.msra.mxu0 %v1144
        %1561 = vmatpush.msra.mxu0 %v1140
        %1562 = vmatpush.msra.mxu0 %v1136
        %1563 = vmatpush.msra.mxu0 %v1132
        %1564 = vmatmul.f32.gmra.mxu0 %v932
        %v1565 = vpop.f32.mrf.mxu0
        %v1566 = vadd.f32 %v1543, %v1565
        %1567 = vmatmul.f32.gmra.mxu0 %v936
        %v1568 = vpop.f32.mrf.mxu0
        %v1569 = vadd.f32 %v1546, %v1568
        %1570 = vdwg.mxu0
        %v1571 = vsub.f32 0.0, %v1290
        %v1572 = vsub.f32 0.0, %v1382
        %v1573 = vsub.f32 0.0, %v1474
        %v1574 = vsub.f32 0.0, %v1566
        %v1575 = vsub.f32 0.0, %v1293
        %v1576 = vsub.f32 0.0, %v1385
        %v1577 = vsub.f32 0.0, %v1477
        %v1578 = vsub.f32 0.0, %v1569
        %v1579 = vmul.f32 %v1571, 1.442695
        %v1580 = vpow.pop %v1579
        %v1581 = vmul.f32 %v1572, 1.442695
        %v1582 = vpow.pop %v1581
        %v1583 = vmul.f32 %v1573, 1.442695
        %v1584 = vpow.pop %v1583
        %v1585 = vmul.f32 %v1574, 1.442695
        %v1586 = vpow.pop %v1585
        %v1587 = vmul.f32 %v1575, 1.442695
        %v1588 = vpow.pop %v1587
        %v1589 = vmul.f32 %v1576, 1.442695
        %v1590 = vpow.pop %v1589
        %v1591 = vmul.f32 %v1577, 1.442695
        %v1592 = vpow.pop %v1591
        %v1593 = vmul.f32 %v1578, 1.442695
        %v1594 = vpow.pop %v1593
        %v1595 = vadd.f32 %v1580, 1.0
        %v1596 = vadd.f32 %v1582, 1.0
        %v1597 = vadd.f32 %v1584, 1.0
        %v1598 = vadd.f32 %v1586, 1.0
        %v1599 = vadd.f32 %v1588, 1.0
        %v1600 = vadd.f32 %v1590, 1.0
        %v1601 = vadd.f32 %v1592, 1.0
        %v1602 = vadd.f32 %v1594, 1.0
        %v1603 = vrcp.pop %v1595
        %v1604 = vrcp.pop %v1596
        %v1605 = vrcp.pop %v1597
        %v1606 = vrcp.pop %v1598
        %v1607 = vrcp.pop %v1599
        %v1608 = vrcp.pop %v1600
        %v1609 = vrcp.pop %v1601
        %v1610 = vrcp.pop %v1602
        %v1611 = vmul.f32 %v1290, %v1603
        %v1612 = vmul.f32 %v1382, %v1604
        %v1613 = vmul.f32 %v1474, %v1605
        %v1614 = vmul.f32 %v1566, %v1606
        %v1615 = vmul.f32 %v1293, %v1607
        %v1616 = vmul.f32 %v1385, %v1608
        %v1617 = vmul.f32 %v1477, %v1609
        %v1618 = vmul.f32 %v1569, %v1610
        %v1619 = vld [vmem:[#allocation13] sm:$0xff]
        %v1620 = vld [vmem:[#allocation13 + $0x8] sm:$0xff]
        %v1621 = vld [vmem:[#allocation13 + $0x10] sm:$0xff]
        %v1622 = vld [vmem:[#allocation13 + $0x18] sm:$0xff]
        %v1623 = vld [vmem:[#allocation13 + $0x20] sm:$0xff]
        %v1624 = vld [vmem:[#allocation13 + $0x28] sm:$0xff]
        %v1625 = vld [vmem:[#allocation13 + $0x30] sm:$0xff]
        %v1626 = vld [vmem:[#allocation13 + $0x38] sm:$0xff]
        %v1627 = vld [vmem:[#allocation13 + $0x40] sm:$0xff]
        %v1628 = vld [vmem:[#allocation13 + $0x48] sm:$0xff]
        %v1629 = vld [vmem:[#allocation13 + $0x50] sm:$0xff]
        %v1630 = vld [vmem:[#allocation13 + $0x58] sm:$0xff]
        %v1631 = vld [vmem:[#allocation13 + $0x60] sm:$0xff]
        %v1632 = vld [vmem:[#allocation13 + $0x68] sm:$0xff]
        %v1633 = vld [vmem:[#allocation13 + $0x70] sm:$0xff]
        %v1634 = vld [vmem:[#allocation13 + $0x78] sm:$0xff]
        %v1635 = vld [vmem:[#allocation13 + $0x80] sm:$0xff]
        %v1636 = vld [vmem:[#allocation13 + $0x88] sm:$0xff]
        %v1637 = vld [vmem:[#allocation13 + $0x90] sm:$0xff]
        %v1638 = vld [vmem:[#allocation13 + $0x98] sm:$0xff]
        %v1639 = vld [vmem:[#allocation13 + $0xa0] sm:$0xff]
        %v1640 = vld [vmem:[#allocation13 + $0xa8] sm:$0xff]
        %v1641 = vld [vmem:[#allocation13 + $0xb0] sm:$0xff]
        %v1642 = vld [vmem:[#allocation13 + $0xb8] sm:$0xff]
        %v1643 = vld [vmem:[#allocation13 + $0xc0] sm:$0xff]
        %v1644 = vld [vmem:[#allocation13 + $0xc8] sm:$0xff]
        %v1645 = vld [vmem:[#allocation13 + $0xd0] sm:$0xff]
        %v1646 = vld [vmem:[#allocation13 + $0xd8] sm:$0xff]
        %v1647 = vld [vmem:[#allocation13 + $0xe0] sm:$0xff]
        %v1648 = vld [vmem:[#allocation13 + $0xe8] sm:$0xff]
        %v1649 = vld [vmem:[#allocation13 + $0xf0] sm:$0xff]
        %v1650 = vld [vmem:[#allocation13 + $0xf8] sm:$0xff]
        %v1651 = vld [vmem:[#allocation13 + $0x100] sm:$0xff]
        %v1652 = vld [vmem:[#allocation13 + $0x108] sm:$0xff]
        %v1653 = vld [vmem:[#allocation13 + $0x110] sm:$0xff]
        %v1654 = vld [vmem:[#allocation13 + $0x118] sm:$0xff]
        %v1655 = vld [vmem:[#allocation13 + $0x120] sm:$0xff]
        %v1656 = vld [vmem:[#allocation13 + $0x128] sm:$0xff]
        %v1657 = vld [vmem:[#allocation13 + $0x130] sm:$0xff]
        %v1658 = vld [vmem:[#allocation13 + $0x138] sm:$0xff]
        %v1659 = vld [vmem:[#allocation13 + $0x140] sm:$0xff]
        %v1660 = vld [vmem:[#allocation13 + $0x148] sm:$0xff]
        %v1661 = vld [vmem:[#allocation13 + $0x150] sm:$0xff]
        %v1662 = vld [vmem:[#allocation13 + $0x158] sm:$0xff]
        %v1663 = vld [vmem:[#allocation13 + $0x160] sm:$0xff]
        %v1664 = vld [vmem:[#allocation13 + $0x168] sm:$0xff]
        %v1665 = vld [vmem:[#allocation13 + $0x170] sm:$0xff]
        %v1666 = vld [vmem:[#allocation13 + $0x178] sm:$0xff]
        %v1667 = vld [vmem:[#allocation13 + $0x180] sm:$0xff]
        %v1668 = vld [vmem:[#allocation13 + $0x188] sm:$0xff]
        %v1669 = vld [vmem:[#allocation13 + $0x190] sm:$0xff]
        %v1670 = vld [vmem:[#allocation13 + $0x198] sm:$0xff]
        %v1671 = vld [vmem:[#allocation13 + $0x1a0] sm:$0xff]
        %v1672 = vld [vmem:[#allocation13 + $0x1a8] sm:$0xff]
        %v1673 = vld [vmem:[#allocation13 + $0x1b0] sm:$0xff]
        %v1674 = vld [vmem:[#allocation13 + $0x1b8] sm:$0xff]
        %v1675 = vld [vmem:[#allocation13 + $0x1c0] sm:$0xff]
        %v1676 = vld [vmem:[#allocation13 + $0x1c8] sm:$0xff]
        %v1677 = vld [vmem:[#allocation13 + $0x1d0] sm:$0xff]
        %v1678 = vld [vmem:[#allocation13 + $0x1d8] sm:$0xff]
        %v1679 = vld [vmem:[#allocation13 + $0x1e0] sm:$0xff]
        %v1680 = vld [vmem:[#allocation13 + $0x1e8] sm:$0xff]
        %v1681 = vld [vmem:[#allocation13 + $0x1f0] sm:$0xff]
        %v1682 = vld [vmem:[#allocation13 + $0x1f8] sm:$0xff]
        %v1683 = vld [vmem:[%s10] sm:$0x1]
        %v1685 = vperm.slane %v1683, 0
        %1687 = vmatpush.msra.mxu0 %v1634
        %1688 = vmatpush.msra.mxu0 %v1633
        %1689 = vmatpush.msra.mxu0 %v1632
        %1690 = vmatpush.msra.mxu0 %v1631
        %1691 = vmatpush.msra.mxu0 %v1630
        %1692 = vmatpush.msra.mxu0 %v1629
        %1693 = vmatpush.msra.mxu0 %v1628
        %1694 = vmatpush.msra.mxu0 %v1627
        %1695 = vmatpush.msra.mxu0 %v1626
        %1696 = vmatpush.msra.mxu0 %v1625
        %1697 = vmatpush.msra.mxu0 %v1624
        %1698 = vmatpush.msra.mxu0 %v1623
        %1699 = vmatpush.msra.mxu0 %v1622
        %1700 = vmatpush.msra.mxu0 %v1621
        %1701 = vmatpush.msra.mxu0 %v1620
        %1702 = vmatpush.msra.mxu0 %v1619
        %1703 = vmatmul.f32.gmra.mxu0 %v1611
        %v1704 = vpop.f32.mrf.mxu0
        %v1705 = vadd.f32 %v1685, %v1704
        %1706 = vmatmul.f32.gmra.mxu0 %v1615
        %v1707 = vpop.f32.mrf.mxu0
        %v1708 = vadd.f32 %v1685, %v1707
        %1709 = vdwg.mxu0
        %1710 = vmatpush.msra.mxu0 %v1650
        %1711 = vmatpush.msra.mxu0 %v1649
        %1712 = vmatpush.msra.mxu0 %v1648
        %1713 = vmatpush.msra.mxu0 %v1647
        %1714 = vmatpush.msra.mxu0 %v1646
        %1715 = vmatpush.msra.mxu0 %v1645
        %1716 = vmatpush.msra.mxu0 %v1644
        %1717 = vmatpush.msra.mxu0 %v1643
        %1718 = vmatpush.msra.mxu0 %v1642
        %1719 = vmatpush.msra.mxu0 %v1641
        %1720 = vmatpush.msra.mxu0 %v1640
        %1721 = vmatpush.msra.mxu0 %v1639
        %1722 = vmatpush.msra.mxu0 %v1638
        %1723 = vmatpush.msra.mxu0 %v1637
        %1724 = vmatpush.msra.mxu0 %v1636
        %1725 = vmatpush.msra.mxu0 %v1635
        %1726 = vmatmul.f32.gmra.mxu0 %v1612
        %v1727 = vpop.f32.mrf.mxu0
        %v1728 = vadd.f32 %v1705, %v1727
        %1729 = vmatmul.f32.gmra.mxu0 %v1616
        %v1730 = vpop.f32.mrf.mxu0
        %v1731 = vadd.f32 %v1708, %v1730
        %1732 = vdwg.mxu0
        %1733 = vmatpush.msra.mxu0 %v1666
        %1734 = vmatpush.msra.mxu0 %v1665
        %1735 = vmatpush.msra.mxu0 %v1664
        %1736 = vmatpush.msra.mxu0 %v1663
        %1737 = vmatpush.msra.mxu0 %v1662
        %1738 = vmatpush.msra.mxu0 %v1661
        %1739 = vmatpush.msra.mxu0 %v1660
        %1740 = vmatpush.msra.mxu0 %v1659
        %1741 = vmatpush.msra.mxu0 %v1658
        %1742 = vmatpush.msra.mxu0 %v1657
        %1743 = vmatpush.msra.mxu0 %v1656
        %1744 = vmatpush.msra.mxu0 %v1655
        %1745 = vmatpush.msra.mxu0 %v1654
        %1746 = vmatpush.msra.mxu0 %v1653
        %1747 = vmatpush.msra.mxu0 %v1652
        %1748 = vmatpush.msra.mxu0 %v1651
        %1749 = vmatmul.f32.gmra.mxu0 %v1613
        %v1750 = vpop.f32.mrf.mxu0
        %v1751 = vadd.f32 %v1728, %v1750
        %1752 = vmatmul.f32.gmra.mxu0 %v1617
        %v1753 = vpop.f32.mrf.mxu0
        %v1754 = vadd.f32 %v1731, %v1753
        %1755 = vdwg.mxu0
        %1756 = vmatpush.msra.mxu0 %v1682
        %1757 = vmatpush.msra.mxu0 %v1681
        %1758 = vmatpush.msra.mxu0 %v1680
        %1759 = vmatpush.msra.mxu0 %v1679
        %1760 = vmatpush.msra.mxu0 %v1678
        %1761 = vmatpush.msra.mxu0 %v1677
        %1762 = vmatpush.msra.mxu0 %v1676
        %1763 = vmatpush.msra.mxu0 %v1675
        %1764 = vmatpush.msra.mxu0 %v1674
        %1765 = vmatpush.msra.mxu0 %v1673
        %1766 = vmatpush.msra.mxu0 %v1672
        %1767 = vmatpush.msra.mxu0 %v1671
        %1768 = vmatpush.msra.mxu0 %v1670
        %1769 = vmatpush.msra.mxu0 %v1669
        %1770 = vmatpush.msra.mxu0 %v1668
        %1771 = vmatpush.msra.mxu0 %v1667
        %1772 = vmatmul.f32.gmra.mxu0 %v1614
        %v1773 = vpop.f32.mrf.mxu0
        %v1774 = vadd.f32 %v1751, %v1773
        %1775 = vmatmul.f32.gmra.mxu0 %v1618
        %v1776 = vpop.f32.mrf.mxu0
        %v1777 = vadd.f32 %v1754, %v1776
        %1778 = vdwg.mxu0
        %1779 = vst [vmem:[%s533] sm:$0xff] %v1774
        %1780 = vst [vmem:[%s533 + $0x8] sm:$0xff] %v1777
        %s1781 = sand.u32 %s285, 1
        %s1782 = scalar_lea.sflag [#allocation4], %s1781
        %s1783 = sand.u32 %s285, 1
        %s1784 = smul.addr %s1783, 16
        %s1785 = scalar_lea.vmem [#allocation14], %s1784
        // Predicated region
        $region93: #{tpu_custom_call.1} parent=63 // pred_check
          %p1786 = pneg %p295
        $region94: #{tpu_custom_call.1} parent=63 // pred_check_branch
          %1788 = sbr.rel (%p1786) target = $region96
        $region95: #{tpu_custom_call.1} parent=63 // pred_region
          %s1789 = smul.u32 2, %s31
          %1791 = vsyncadd %s1782, 0
          %s1792 = smul.addr %s1789, 8
          %s1793 = scalar_lea.hbm %s11, %s1792
          %s1794 = sshll.u32 %s1785, 4
          %s1795 = int_to_ptr.vmem [resolvable:$true] %s1794
          %s1796 = sshll.u32 %s1793, 4
          %s1797 = int_to_ptr.hbm [resolvable:$true] %s1796
          %1802 = dma.vmem_to_hbm [thread:$0]  %s1795, 256, %s1797, %s1782, 128, 128, 8
        $region96: #{tpu_custom_call.1} parent=63 // pred_fallthru
          _
      $region64: #{tpu_custom_call.1} parent=5 // pred_fallthru
        _
      %p1803 = scmp.le.s32.totalorder 2, %s26
      // Predicated region
      $region97: #{tpu_custom_call.1} parent=5 // pred_check
        %p1804 = pneg %p1803
      $region98: #{tpu_custom_call.1} parent=5 // pred_check_branch
        %1806 = sbr.rel (%p1804) target = $region100
      $region99: #{tpu_custom_call.1} parent=5 // pred_region
        %s1807 = ssub.s32 %s26, 2
        // Predicated region
        $region101: #{tpu_custom_call.1} parent=99 // pred_check
          %p1808 = pneg %p301
        $region102: #{tpu_custom_call.1} parent=99 // pred_check_branch
          %1810 = sbr.rel (%p1808) target = $region104
        $region103: #{tpu_custom_call.1} parent=99 // pred_region
          %s1811 = sand.u32 %s286, 1
          %s1812 = scalar_lea.sflag [#allocation4], %s1811
          %s1813 = sand.u32 %s286, 1
          %s1814 = smul.addr %s1813, 16
          %s1815 = scalar_lea.vmem [#allocation14], %s1814
          %1817 = dma.done %s1812, 256
        $region104: #{tpu_custom_call.1} parent=99 // pred_fallthru
          _
      $region100: #{tpu_custom_call.1} parent=5 // pred_fallthru
        _
    $region6: #{tpu_custom_call.1} parent=1 // loop_footer
      %s30 = sadd.s32 1, %s26
    $region7: #{tpu_custom_call.1} parent=1 // loop_footer_branch
      %25 = sbr.rel target = $region3
    $region8: #{tpu_custom_call.1} parent=1 // loop_exit
      _
    %1818 = vsyncpa [#allocation3], 1
    %s1819 = scalar_lea.sflag [#allocation3], 1
    %1820 = vsyncpa %s1819, 1
    %1821 = vsyncpa [#allocation6], 1
    %1822 = vsyncpa [#allocation9], 1
    %1823 = vsyncpa [#allocation12], 1
    %1824 = vsyncpa [#allocation4], 1
    %s1825 = scalar_lea.sflag [#allocation4], 1
    %1826 = vsyncpa %s1825, 1

// kernel: tpu_custom_call.1
$region0: #{tpu_custom_call.1}
  #allocation0 [shape = 'u32[]', space=smem, size = 0x4, offset = 0x4, fixed_abs, tag = 'smem constant byte address 0x4 - core index']
  #allocation1 [shape = 'u32[72,128]{1,0:T(1,128)}', space=vmem, size = 0x9000, scoped, tag = 'internal scratch']
  %s0 = inlined_call_operand.vmem [shape: f32[28,64], index: 0, kind: input, shape index: {}]
  %s1 = inlined_call_operand.hbm [shape: f32[28,64], index: 1, kind: input, shape index: {}]
  %s2 = inlined_call_operand.vmem [shape: f32[28,1], index: 2, kind: input, shape index: {}]
  %s3 = inlined_call_operand.hbm [shape: f32[1,512], index: 3, kind: input, shape index: {}]
  %s4 = inlined_call_operand.hbm [shape: f32[64,512], index: 4, kind: input, shape index: {}]
  %s5 = inlined_call_operand.hbm [shape: f32[64,512], index: 5, kind: input, shape index: {}]
  %s6 = inlined_call_operand.vmem [shape: f32[1,512], index: 6, kind: input, shape index: {}]
  %s7 = inlined_call_operand.hbm [shape: f32[512,512], index: 7, kind: input, shape index: {}]
  %s8 = inlined_call_operand.hbm [shape: f32[1,512], index: 8, kind: input, shape index: {}]
  %s9 = inlined_call_operand.hbm [shape: f32[512,128], index: 9, kind: input, shape index: {}]
  %s10 = inlined_call_operand.vmem [shape: f32[1,128], index: 10, kind: input, shape index: {}]
  %s11 = inlined_call_operand.hbm [shape: f32[28,128], index: 11, kind: output, shape index: {}]
  %s12 = sld [smem:[#allocation0]]
  $region105: #{tpu_custom_call.1} parent=0
    _
  %s14 = ssub.s32 1, %s12
  %s15 = scalar_select 0, %s14, %s12
  $region1: #{tpu_custom_call.1} parent=0
    #allocation2 [shape = 'u8[16384]{0}', space=vmem, size = 0x4000, scoped, tag = 'input window, operand 1']
    #allocation3 [shape = 's32[2]{0}', space=sflag, size = 0x8, scoped, tag = 'scoped memory for tpu_custom_call.1']
    #allocation4 [shape = 's32[2]{0}', space=sflag, size = 0x8, scoped, tag = 'scoped memory for tpu_custom_call.1']
    #allocation5 [shape = 'u8[2048]{0}', space=vmem, size = 0x800, scoped, tag = 'input window, operand 3, single buffered']
    #allocation6 [shape = 's32[1]{0}', space=sflag, size = 0x4, scoped, tag = 'scoped memory for tpu_custom_call.1']
    #allocation7 [shape = 'u8[131072]{0}', space=vmem, size = 0x20000, scoped, tag = 'input window, operand 4, single buffered']
    #allocation8 [shape = 'u8[131072]{0}', space=vmem, size = 0x20000, scoped, tag = 'input window, operand 5, single buffered']
    #allocation9 [shape = 's32[1]{0}', space=sflag, size = 0x4, scoped, tag = 'scoped memory for tpu_custom_call.1']
    #allocation10 [shape = 'u8[1048576]{0}', space=vmem, size = 0x100000, scoped, tag = 'input window, operand 7, single buffered']
    #allocation11 [shape = 'u8[2048]{0}', space=vmem, size = 0x800, scoped, tag = 'input window, operand 8, single buffered']
    #allocation12 [shape = 's32[1]{0}', space=sflag, size = 0x4, scoped, tag = 'scoped memory for tpu_custom_call.1']
    #allocation13 [shape = 'u8[262144]{0}', space=vmem, size = 0x40000, scoped, tag = 'input window, operand 9, single buffered']
    #allocation14 [shape = 'u8[16384]{0}', space=vmem, size = 0x4000, scoped, tag = 'output window, operand 0']
    %16 = vsyncpa [#allocation3], 0
    %s17 = scalar_lea.sflag [#allocation3], 1
    %18 = vsyncpa %s17, 0
    %19 = vsyncpa [#allocation6], 0
    %20 = vsyncpa [#allocation9], 0
    %21 = vsyncpa [#allocation12], 0
    %22 = vsyncpa [#allocation4], 0
    %s23 = scalar_lea.sflag [#allocation4], 1
    %24 = vsyncpa %s23, 0
    loop: start=0, step=1, limit=4
    $region2: #{tpu_custom_call.1} parent=1 // loop_pre_header
      _
    $region3: #{tpu_custom_call.1} parent=1 // loop_header
      %s26 = sphi 0, %s30
      %p27 = scmp.ge.s32.totalorder %s26, 4
      %s36 = sphi 0, %s38
      %s39 = sphi 0, %s36
      %s40 = sphi 0, %s39
      %s56 = sphi 0, %s40
      %s62 = sphi 0, %s64
      %s65 = sphi 0, %s62
      %s66 = sphi 0, %s65
      %s82 = sphi 0, %s66
      %s88 = sphi 0, %s90
      %s91 = sphi 0, %s88
      %s92 = sphi 0, %s91
      %s108 = sphi 0, %s92
      %s112 = sphi 0, %s112
      %s114 = sphi 0, %s112
      %s115 = sphi 0, %s114
      %s129 = sphi 0, %s115
      %s133 = sphi 0, %s133
      %s135 = sphi 0, %s133
      %s136 = sphi 0, %s135
      %s150 = sphi 0, %s136
      %s154 = sphi 0, %s154
      %s156 = sphi 0, %s154
      %s157 = sphi 0, %s156
      %s171 = sphi 0, %s157
      %s175 = sphi 0, %s175
      %s177 = sphi 0, %s175
      %s178 = sphi 0, %s177
      %s192 = sphi 0, %s178
      %s196 = sphi 0, %s196
      %s198 = sphi 0, %s196
      %s199 = sphi 0, %s198
      %s213 = sphi 0, %s199
      %s217 = sphi 0, %s217
      %s219 = sphi 0, %s217
      %s220 = sphi 0, %s219
      %s234 = sphi 0, %s220
      %s238 = sphi 0, %s238
      %s240 = sphi 0, %s238
      %s241 = sphi 0, %s240
      %s255 = sphi 0, %s241
      %s259 = sphi 0, %s259
      %s261 = sphi 0, %s259
      %s262 = sphi 0, %s261
      %s276 = sphi 0, %s262
      %s282 = sphi 0, %s284
      %s285 = sphi 0, %s282
      %s286 = sphi 0, %s285
      %s302 = sphi 0, %s286
    $region4: #{tpu_custom_call.1} parent=1 // loop_header_branch
      %29 = sbr.rel (%p27) target = $region8
    $region5: #{tpu_custom_call.1} parent=1 // loop_body
      %s31 = ssub.s32 %s26, 1
      %s32 = ssub.s32 %s26, 2
      %s33 = sadd.s32 %s26, 1
      %s34 = ssub.s32 %s26, %s33
      %p35 = scmp.eq.s32.totalorder %s34, 0
      %s37 = sadd.s32 %s36, 1
      %s38 = scalar_select %p35, %s36, %s37
      %p41 = pneg %p35
      %p42 = scmp.eq.s32.totalorder %s26, 1
      %p43 = por %p41, %p42
      %p44 = scmp.ne.s32.totalorder %s36, %s39
      %p45 = scmp.eq.s32.totalorder %s26, 0
      %p46 = por %p44, %p45
      %p47 = scmp.ne.s32.totalorder %s36, %s39
      %p48 = scmp.eq.s32.totalorder %s31, 1
      %p49 = por %p47, %p48
      %p50 = scmp.ne.s32.totalorder %s39, %s40
      %p51 = scmp.eq.s32.totalorder %s31, 0
      %p52 = por %p50, %p51
      %p53 = scmp.ne.s32.totalorder %s39, %s40
      %p54 = scmp.eq.s32.totalorder %s32, 1
      %p55 = por %p53, %p54
      %p57 = scmp.ne.s32.totalorder %s40, %s56
      %p58 = scmp.eq.s32.totalorder %s32, 0
      %p59 = por %p57, %p58
      %s60 = ssub.s32 %s26, %s33
      %p61 = scmp.eq.s32.totalorder %s60, 0
      %s63 = sadd.s32 %s62, 1
      %s64 = scalar_select %p61, %s62, %s63
      %p67 = pneg %p61
      %p68 = scmp.eq.s32.totalorder %s26, 1
      %p69 = por %p67, %p68
      %p70 = scmp.ne.s32.totalorder %s62, %s65
      %p71 = scmp.eq.s32.totalorder %s26, 0
      %p72 = por %p70, %p71
      %p73 = scmp.ne.s32.totalorder %s62, %s65
      %p74 = scmp.eq.s32.totalorder %s31, 1
      %p75 = por %p73, %p74
      %p76 = scmp.ne.s32.totalorder %s65, %s66
      %p77 = scmp.eq.s32.totalorder %s31, 0
      %p78 = por %p76, %p77
      %p79 = scmp.ne.s32.totalorder %s65, %s66
      %p80 = scmp.eq.s32.totalorder %s32, 1
      %p81 = por %p79, %p80
      %p83 = scmp.ne.s32.totalorder %s66, %s82
      %p84 = scmp.eq.s32.totalorder %s32, 0
      %p85 = por %p83, %p84
      %s86 = ssub.s32 %s26, %s33
      %p87 = scmp.eq.s32.totalorder %s86, 0
      %s89 = sadd.s32 %s88, 1
      %s90 = scalar_select %p87, %s88, %s89
      %p93 = pneg %p87
      %p94 = scmp.eq.s32.totalorder %s26, 1
      %p95 = por %p93, %p94
      %p96 = scmp.ne.s32.totalorder %s88, %s91
      %p97 = scmp.eq.s32.totalorder %s26, 0
      %p98 = por %p96, %p97
      %p99 = scmp.ne.s32.totalorder %s88, %s91
      %p100 = scmp.eq.s32.totalorder %s31, 1
      %p101 = por %p99, %p100
      %p102 = scmp.ne.s32.totalorder %s91, %s92
      %p103 = scmp.eq.s32.totalorder %s31, 0
      %p104 = por %p102, %p103
      %p105 = scmp.ne.s32.totalorder %s91, %s92
      %p106 = scmp.eq.s32.totalorder %s32, 1
      %p107 = por %p105, %p106
      %p109 = scmp.ne.s32.totalorder %s92, %s108
      %p110 = scmp.eq.s32.totalorder %s32, 0
      %p111 = por %p109, %p110
      %s113 = sadd.s32 %s112, 1
      %p116 = scmp.eq.s32.totalorder %s26, 1
      %p117 = scmp.ne.s32.totalorder %s112, %s114
      %p118 = scmp.eq.s32.totalorder %s26, 0
      %p119 = por %p117, %p118
      %p120 = scmp.ne.s32.totalorder %s112, %s114
      %p121 = scmp.eq.s32.totalorder %s31, 1
      %p122 = por %p120, %p121
      %p123 = scmp.ne.s32.totalorder %s114, %s115
      %p124 = scmp.eq.s32.totalorder %s31, 0
      %p125 = por %p123, %p124
      %p126 = scmp.ne.s32.totalorder %s114, %s115
      %p127 = scmp.eq.s32.totalorder %s32, 1
      %p128 = por %p126, %p127
      %p130 = scmp.ne.s32.totalorder %s115, %s129
      %p131 = scmp.eq.s32.totalorder %s32, 0
      %p132 = por %p130, %p131
      %s134 = sadd.s32 %s133, 1
      %p137 = scmp.eq.s32.totalorder %s26, 1
      %p138 = scmp.ne.s32.totalorder %s133, %s135
      %p139 = scmp.eq.s32.totalorder %s26, 0
      %p140 = por %p138, %p139
      %p141 = scmp.ne.s32.totalorder %s133, %s135
      %p142 = scmp.eq.s32.totalorder %s31, 1
      %p143 = por %p141, %p142
      %p144 = scmp.ne.s32.totalorder %s135, %s136
      %p145 = scmp.eq.s32.totalorder %s31, 0
      %p146 = por %p144, %p145
      %p147 = scmp.ne.s32.totalorder %s135, %s136
      %p148 = scmp.eq.s32.totalorder %s32, 1
      %p149 = por %p147, %p148
      %p151 = scmp.ne.s32.totalorder %s136, %s150
      %p152 = scmp.eq.s32.totalorder %s32, 0
      %p153 = por %p151, %p152
      %s155 = sadd.s32 %s154, 1
      %p158 = scmp.eq.s32.totalorder %s26, 1
      %p159 = scmp.ne.s32.totalorder %s154, %s156
      %p160 = scmp.eq.s32.totalorder %s26, 0
      %p161 = por %p159, %p160
      %p162 = scmp.ne.s32.totalorder %s154, %s156
      %p163 = scmp.eq.s32.totalorder %s31, 1
      %p164 = por %p162, %p163
      %p165 = scmp.ne.s32.totalorder %s156, %s157
      %p166 = scmp.eq.s32.totalorder %s31, 0
      %p167 = por %p165, %p166
      %p168 = scmp.ne.s32.totalorder %s156, %s157
      %p169 = scmp.eq.s32.totalorder %s32, 1
      %p170 = por %p168, %p169
      %p172 = scmp.ne.s32.totalorder %s157, %s171
      %p173 = scmp.eq.s32.totalorder %s32, 0
      %p174 = por %p172, %p173
      %s176 = sadd.s32 %s175, 1
      %p179 = scmp.eq.s32.totalorder %s26, 1
      %p180 = scmp.ne.s32.totalorder %s175, %s177
      %p181 = scmp.eq.s32.totalorder %s26, 0
      %p182 = por %p180, %p181
      %p183 = scmp.ne.s32.totalorder %s175, %s177
      %p184 = scmp.eq.s32.totalorder %s31, 1
      %p185 = por %p183, %p184
      %p186 = scmp.ne.s32.totalorder %s177, %s178
      %p187 = scmp.eq.s32.totalorder %s31, 0
      %p188 = por %p186, %p187
      %p189 = scmp.ne.s32.totalorder %s177, %s178
      %p190 = scmp.eq.s32.totalorder %s32, 1
      %p191 = por %p189, %p190
      %p193 = scmp.ne.s32.totalorder %s178, %s192
      %p194 = scmp.eq.s32.totalorder %s32, 0
      %p195 = por %p193, %p194
      %s197 = sadd.s32 %s196, 1
      %p200 = scmp.eq.s32.totalorder %s26, 1
      %p201 = scmp.ne.s32.totalorder %s196, %s198
      %p202 = scmp.eq.s32.totalorder %s26, 0
      %p203 = por %p201, %p202
      %p204 = scmp.ne.s32.totalorder %s196, %s198
      %p205 = scmp.eq.s32.totalorder %s31, 1
      %p206 = por %p204, %p205
      %p207 = scmp.ne.s32.totalorder %s198, %s199
      %p208 = scmp.eq.s32.totalorder %s31, 0
      %p209 = por %p207, %p208
      %p210 = scmp.ne.s32.totalorder %s198, %s199
      %p211 = scmp.eq.s32.totalorder %s32, 1
      %p212 = por %p210, %p211
      %p214 = scmp.ne.s32.totalorder %s199, %s213
      %p215 = scmp.eq.s32.totalorder %s32, 0
      %p216 = por %p214, %p215
      %s218 = sadd.s32 %s217, 1
      %p221 = scmp.eq.s32.totalorder %s26, 1
      %p222 = scmp.ne.s32.totalorder %s217, %s219
      %p223 = scmp.eq.s32.totalorder %s26, 0
      %p224 = por %p222, %p223
      %p225 = scmp.ne.s32.totalorder %s217, %s219
      %p226 = scmp.eq.s32.totalorder %s31, 1
      %p227 = por %p225, %p226
      %p228 = scmp.ne.s32.totalorder %s219, %s220
      %p229 = scmp.eq.s32.totalorder %s31, 0
      %p230 = por %p228, %p229
      %p231 = scmp.ne.s32.totalorder %s219, %s220
      %p232 = scmp.eq.s32.totalorder %s32, 1
      %p233 = por %p231, %p232
      %p235 = scmp.ne.s32.totalorder %s220, %s234
      %p236 = scmp.eq.s32.totalorder %s32, 0
      %p237 = por %p235, %p236
      %s239 = sadd.s32 %s238, 1
      %p242 = scmp.eq.s32.totalorder %s26, 1
      %p243 = scmp.ne.s32.totalorder %s238, %s240
      %p244 = scmp.eq.s32.totalorder %s26, 0
      %p245 = por %p243, %p244
      %p246 = scmp.ne.s32.totalorder %s238, %s240
      %p247 = scmp.eq.s32.totalorder %s31, 1
      %p248 = por %p246, %p247
      %p249 = scmp.ne.s32.totalorder %s240, %s241
      %p250 = scmp.eq.s32.totalorder %s31, 0
      %p251 = por %p249, %p250
      %p252 = scmp.ne.s32.totalorder %s240, %s241
      %p253 = scmp.eq.s32.totalorder %s32, 1
      %p254 = por %p252, %p253
      %p256 = scmp.ne.s32.totalorder %s241, %s255
      %p257 = scmp.eq.s32.totalorder %s32, 0
      %p258 = por %p256, %p257
      %s260 = sadd.s32 %s259, 1
      %p263 = scmp.eq.s32.totalorder %s26, 1
      %p264 = scmp.ne.s32.totalorder %s259, %s261
      %p265 = scmp.eq.s32.totalorder %s26, 0
      %p266 = por %p264, %p265
      %p267 = scmp.ne.s32.totalorder %s259, %s261
      %p268 = scmp.eq.s32.totalorder %s31, 1
      %p269 = por %p267, %p268
      %p270 = scmp.ne.s32.totalorder %s261, %s262
      %p271 = scmp.eq.s32.totalorder %s31, 0
      %p272 = por %p270, %p271
      %p273 = scmp.ne.s32.totalorder %s261, %s262
      %p274 = scmp.eq.s32.totalorder %s32, 1
      %p275 = por %p273, %p274
      %p277 = scmp.ne.s32.totalorder %s262, %s276
      %p278 = scmp.eq.s32.totalorder %s32, 0
      %p279 = por %p277, %p278
      %s280 = ssub.s32 %s26, %s33
      %p281 = scmp.eq.s32.totalorder %s280, 0
      %s283 = sadd.s32 %s282, 1
      %s284 = scalar_select %p281, %s282, %s283
      %p287 = pneg %p281
      %p288 = scmp.eq.s32.totalorder %s26, 1
      %p289 = por %p287, %p288
      %p290 = scmp.ne.s32.totalorder %s282, %s285
      %p291 = scmp.eq.s32.totalorder %s26, 0
      %p292 = por %p290, %p291
      %p293 = scmp.ne.s32.totalorder %s282, %s285
      %p294 = scmp.eq.s32.totalorder %s31, 1
      %p295 = por %p293, %p294
      %p296 = scmp.ne.s32.totalorder %s285, %s286
      %p297 = scmp.eq.s32.totalorder %s31, 0
      %p298 = por %p296, %p297
      %p299 = scmp.ne.s32.totalorder %s285, %s286
      %p300 = scmp.eq.s32.totalorder %s32, 1
      %p301 = por %p299, %p300
      %p303 = scmp.ne.s32.totalorder %s286, %s302
      %p304 = scmp.eq.s32.totalorder %s32, 0
      %p305 = por %p303, %p304
      %p306 = scmp.le.s32.totalorder 1, %s26
      %p307 = scmp.lt.s32.totalorder %s26, 3
      %p308 = pnand %p306, %p307
      %p309 = pneg %p308
      // Predicated region
      $region9: #{tpu_custom_call.1} parent=5 // pred_check
        _
      $region10: #{tpu_custom_call.1} parent=5 // pred_check_branch
        %311 = sbr.rel (%p308) target = $region12
      $region11: #{tpu_custom_call.1} parent=5 // pred_region
        %s312 = ssub.s32 %s26, 1
        // Predicated region
        $region13: #{tpu_custom_call.1} parent=11 // pred_check
          %p313 = pneg %p125
        $region14: #{tpu_custom_call.1} parent=11 // pred_check_branch
          %315 = sbr.rel (%p313) target = $region16
        $region15: #{tpu_custom_call.1} parent=11 // pred_region
          %317 = vsyncadd [#allocation6], 0
          %s319 = sshll.u32 %s3, 4
          %s320 = int_to_ptr.hbm [resolvable:$true] %s319
          %s321 = sshll.u32 [#allocation5], 4
          %s322 = int_to_ptr.vmem [resolvable:$true] %s321
          %324 = dma.hbm_to_vmem [thread:$0]  %s320, 64, %s322, [#allocation6]
        $region16: #{tpu_custom_call.1} parent=11 // pred_fallthru
          _
        // Predicated region
        $region17: #{tpu_custom_call.1} parent=11 // pred_check
          %p325 = pneg %p146
        $region18: #{tpu_custom_call.1} parent=11 // pred_check_branch
          %327 = sbr.rel (%p325) target = $region20
        $region19: #{tpu_custom_call.1} parent=11 // pred_region
          %329 = vsyncadd [#allocation6], 0
          %s330 = sshll.u32 %s4, 4
          %s331 = int_to_ptr.hbm [resolvable:$true] %s330
          %s332 = sshll.u32 [#allocation7], 4
          %s333 = int_to_ptr.vmem [resolvable:$true] %s332
          %338 = dma.hbm_to_vmem [thread:$0]  %s331, 4096, %s333, [#allocation6], 512, 512, 32
        $region20: #{tpu_custom_call.1} parent=11 // pred_fallthru
          _
        // Predicated region
        $region21: #{tpu_custom_call.1} parent=11 // pred_check
          %p339 = pneg %p167
        $region22: #{tpu_custom_call.1} parent=11 // pred_check_branch
          %341 = sbr.rel (%p339) target = $region24
        $region23: #{tpu_custom_call.1} parent=11 // pred_region
          %343 = vsyncadd [#allocation9], 0
          %s344 = sshll.u32 %s5, 4
          %s345 = int_to_ptr.hbm [resolvable:$true] %s344
          %s346 = sshll.u32 [#allocation8], 4
          %s347 = int_to_ptr.vmem [resolvable:$true] %s346
          %352 = dma.hbm_to_vmem [thread:$0]  %s345, 4096, %s347, [#allocation9], 512, 512, 32
        $region24: #{tpu_custom_call.1} parent=11 // pred_fallthru
          _
        // Predicated region
        $region25: #{tpu_custom_call.1} parent=11 // pred_check
          %p353 = pneg %p188
        $region26: #{tpu_custom_call.1} parent=11 // pred_check_branch
          %355 = sbr.rel (%p353) target = $region28
        $region27: #{tpu_custom_call.1} parent=11 // pred_region
          _
        $region28: #{tpu_custom_call.1} parent=11 // pred_fallthru
          _
        // Predicated region
        $region29: #{tpu_custom_call.1} parent=11 // pred_check
          %p356 = pneg %p209
        $region30: #{tpu_custom_call.1} parent=11 // pred_check_branch
          %358 = sbr.rel (%p356) target = $region32
        $region31: #{tpu_custom_call.1} parent=11 // pred_region
          %360 = vsyncadd [#allocation9], 0
          %s361 = sshll.u32 %s7, 4
          %s362 = int_to_ptr.hbm [resolvable:$true] %s361
          %s363 = sshll.u32 [#allocation10], 4
          %s364 = int_to_ptr.vmem [resolvable:$true] %s363
          %369 = dma.hbm_to_vmem [thread:$0]  %s362, 32768, %s364, [#allocation9], 512, 512, 32
        $region32: #{tpu_custom_call.1} parent=11 // pred_fallthru
          _
        // Predicated region
        $region33: #{tpu_custom_call.1} parent=11 // pred_check
          %p370 = pneg %p230
        $region34: #{tpu_custom_call.1} parent=11 // pred_check_branch
          %372 = sbr.rel (%p370) target = $region36
        $region35: #{tpu_custom_call.1} parent=11 // pred_region
          %374 = vsyncadd [#allocation12], 0
          %s376 = sshll.u32 %s8, 4
          %s377 = int_to_ptr.hbm [resolvable:$true] %s376
          %s378 = sshll.u32 [#allocation11], 4
          %s379 = int_to_ptr.vmem [resolvable:$true] %s378
          %381 = dma.hbm_to_vmem [thread:$0]  %s377, 64, %s379, [#allocation12]
        $region36: #{tpu_custom_call.1} parent=11 // pred_fallthru
          _
        // Predicated region
        $region37: #{tpu_custom_call.1} parent=11 // pred_check
          %p382 = pneg %p251
        $region38: #{tpu_custom_call.1} parent=11 // pred_check_branch
          %384 = sbr.rel (%p382) target = $region40
        $region39: #{tpu_custom_call.1} parent=11 // pred_region
          %386 = vsyncadd [#allocation12], 0
          %s387 = sshll.u32 %s9, 4
          %s388 = int_to_ptr.hbm [resolvable:$true] %s387
          %s389 = sshll.u32 [#allocation13], 4
          %s390 = int_to_ptr.vmem [resolvable:$true] %s389
          %395 = dma.hbm_to_vmem [thread:$0]  %s388, 8192, %s390, [#allocation12], 128, 128, 8
        $region40: #{tpu_custom_call.1} parent=11 // pred_fallthru
          _
        // Predicated region
        $region41: #{tpu_custom_call.1} parent=11 // pred_check
          %p396 = pneg %p272
        $region42: #{tpu_custom_call.1} parent=11 // pred_check_branch
          %398 = sbr.rel (%p396) target = $region44
        $region43: #{tpu_custom_call.1} parent=11 // pred_region
          _
        $region44: #{tpu_custom_call.1} parent=11 // pred_fallthru
          _
      $region12: #{tpu_custom_call.1} parent=5 // pred_fallthru
        _
      %p399 = scmp.lt.s32.totalorder %s26, 2
      // Predicated region
      $region45: #{tpu_custom_call.1} parent=5 // pred_check
        %p400 = pneg %p399
      $region46: #{tpu_custom_call.1} parent=5 // pred_check_branch
        %402 = sbr.rel (%p400) target = $region48
      $region47: #{tpu_custom_call.1} parent=5 // pred_region
        // Predicated region
        $region49: #{tpu_custom_call.1} parent=47 // pred_check
          %p403 = pneg %p46
        $region50: #{tpu_custom_call.1} parent=47 // pred_check_branch
          %405 = sbr.rel (%p403) target = $region52
        $region51: #{tpu_custom_call.1} parent=47 // pred_region
          %s406 = smul.u32 2, %s26
          %p407 = scmp.lt.s32.totalorder %s406, 3
          %s408 = scalar_select %p407, %s406, 3
          %s409 = smul.addr %s408, 8
          %s410 = scalar_lea.vmem %s0, %s409
          %s411 = smul.u32 2, %s26
        $region52: #{tpu_custom_call.1} parent=47 // pred_fallthru
          _
        // Predicated region
        $region53: #{tpu_custom_call.1} parent=47 // pred_check
          %p412 = pneg %p72
        $region54: #{tpu_custom_call.1} parent=47 // pred_check_branch
          %414 = sbr.rel (%p412) target = $region56
        $region55: #{tpu_custom_call.1} parent=47 // pred_region
          %s415 = sand.u32 %s62, 1
          %s416 = scalar_lea.sflag [#allocation3], %s415
          %s417 = sand.u32 %s62, 1
          %s418 = smul.addr %s417, 16
          %s419 = scalar_lea.vmem [#allocation2], %s418
          %s420 = smul.u32 2, %s26
          %422 = vsyncadd %s416, 0
          %s423 = smul.addr %s420, 8
          %s424 = scalar_lea.hbm %s1, %s423
          %s425 = sshll.u32 %s424, 4
          %s426 = int_to_ptr.hbm [resolvable:$true] %s425
          %s427 = sshll.u32 %s419, 4
          %s428 = int_to_ptr.vmem [resolvable:$true] %s427
          %433 = dma.hbm_to_vmem [thread:$0]  %s426, 256, %s428, %s416, 128, 128, 8
        $region56: #{tpu_custom_call.1} parent=47 // pred_fallthru
          _
        // Predicated region
        $region57: #{tpu_custom_call.1} parent=47 // pred_check
          %p434 = pneg %p98
        $region58: #{tpu_custom_call.1} parent=47 // pred_check_branch
          %436 = sbr.rel (%p434) target = $region60
        $region59: #{tpu_custom_call.1} parent=47 // pred_region
          %s437 = smul.u32 2, %s26
          %p438 = scmp.lt.s32.totalorder %s437, 3
          %s439 = scalar_select %p438, %s437, 3
          %s440 = smul.addr %s439, 8
          %s441 = scalar_lea.vmem %s2, %s440
          %s442 = smul.u32 2, %s26
        $region60: #{tpu_custom_call.1} parent=47 // pred_fallthru
          _
      $region48: #{tpu_custom_call.1} parent=5 // pred_fallthru
        _
      %p443 = scmp.le.s32.totalorder 1, %s26
      %p444 = scmp.lt.s32.totalorder %s26, 3
      %p445 = pnand %p443, %p444
      %p446 = pneg %p445
      // Predicated region
      $region61: #{tpu_custom_call.1} parent=5 // pred_check
        _
      $region62: #{tpu_custom_call.1} parent=5 // pred_check_branch
        %448 = sbr.rel (%p445) target = $region64
      $region63: #{tpu_custom_call.1} parent=5 // pred_region
        %s449 = ssub.s32 %s26, 1
        %s450 = sand.u32 %s65, 1
        %s451 = scalar_lea.sflag [#allocation3], %s450
        %s452 = sand.u32 %s65, 1
        %s453 = smul.addr %s452, 16
        %s454 = scalar_lea.vmem [#allocation2], %s453
        // Predicated region
        $region65: #{tpu_custom_call.1} parent=63 // pred_check
          %p455 = pneg %p78
        $region66: #{tpu_custom_call.1} parent=63 // pred_check_branch
          %457 = sbr.rel (%p455) target = $region68
        $region67: #{tpu_custom_call.1} parent=63 // pred_region
          %459 = dma.done %s451, 256
        $region68: #{tpu_custom_call.1} parent=63 // pred_fallthru
          _
        // Predicated region
        $region69: #{tpu_custom_call.1} parent=63 // pred_check
          %p460 = pneg %p125
        $region70: #{tpu_custom_call.1} parent=63 // pred_check_branch
          %462 = sbr.rel (%p460) target = $region72
        $region71: #{tpu_custom_call.1} parent=63 // pred_region
          %464 = dma.done [#allocation6], 64
        $region72: #{tpu_custom_call.1} parent=63 // pred_fallthru
          _
        // Predicated region
        $region73: #{tpu_custom_call.1} parent=63 // pred_check
          %p465 = pneg %p146
        $region74: #{tpu_custom_call.1} parent=63 // pred_check_branch
          %467 = sbr.rel (%p465) target = $region76
        $region75: #{tpu_custom_call.1} parent=63 // pred_region
          %469 = dma.done [#allocation6], 4096
        $region76: #{tpu_custom_call.1} parent=63 // pred_fallthru
          _
        // Predicated region
        $region77: #{tpu_custom_call.1} parent=63 // pred_check
          %p470 = pneg %p167
        $region78: #{tpu_custom_call.1} parent=63 // pred_check_branch
          %472 = sbr.rel (%p470) target = $region80
        $region79: #{tpu_custom_call.1} parent=63 // pred_region
          %474 = dma.done [#allocation9], 4096
        $region80: #{tpu_custom_call.1} parent=63 // pred_fallthru
          _
        // Predicated region
        $region81: #{tpu_custom_call.1} parent=63 // pred_check
          %p475 = pneg %p209
        $region82: #{tpu_custom_call.1} parent=63 // pred_check_branch
          %477 = sbr.rel (%p475) target = $region84
        $region83: #{tpu_custom_call.1} parent=63 // pred_region
          %479 = dma.done [#allocation9], 32768
        $region84: #{tpu_custom_call.1} parent=63 // pred_fallthru
          _
        // Predicated region
        $region85: #{tpu_custom_call.1} parent=63 // pred_check
          %p480 = pneg %p230
        $region86: #{tpu_custom_call.1} parent=63 // pred_check_branch
          %482 = sbr.rel (%p480) target = $region88
        $region87: #{tpu_custom_call.1} parent=63 // pred_region
          %484 = dma.done [#allocation12], 64
        $region88: #{tpu_custom_call.1} parent=63 // pred_fallthru
          _
        // Predicated region
        $region89: #{tpu_custom_call.1} parent=63 // pred_check
          %p485 = pneg %p251
        $region90: #{tpu_custom_call.1} parent=63 // pred_check_branch
          %487 = sbr.rel (%p485) target = $region92
        $region91: #{tpu_custom_call.1} parent=63 // pred_region
          %489 = dma.done [#allocation12], 8192
        $region92: #{tpu_custom_call.1} parent=63 // pred_fallthru
          _
        %s490 = smul.u32 2, %s31
        %p491 = scmp.lt.s32.totalorder %s490, 3
        %s492 = scalar_select %p491, %s490, 3
        %s493 = smul.addr %s492, 8
        %s494 = scalar_lea.vmem %s0, %s493
        %p495 = pneg %p52
        %p496 = pneg %p49
        %s497 = sand.u32 %s65, 1
        %s498 = scalar_lea.sflag [#allocation3], %s497
        %s499 = sand.u32 %s65, 1
        %s500 = smul.addr %s499, 16
        %s501 = scalar_lea.vmem [#allocation2], %s500
        %p502 = pneg %p78
        %p503 = pneg %p75
        %s504 = smul.u32 2, %s31
        %p505 = scmp.lt.s32.totalorder %s504, 3
        %s506 = scalar_select %p505, %s504, 3
        %s507 = smul.addr %s506, 8
        %s508 = scalar_lea.vmem %s2, %s507
        %p509 = pneg %p104
        %p510 = pneg %p101
        %p511 = pneg %p125
        %p512 = pneg %p122
        %p513 = pneg %p146
        %p514 = pneg %p143
        %p515 = pneg %p167
        %p516 = pneg %p164
        %p517 = pneg %p188
        %p518 = pneg %p185
        %p519 = pneg %p209
        %p520 = pneg %p206
        %p521 = pneg %p230
        %p522 = pneg %p227
        %p523 = pneg %p251
        %p524 = pneg %p248
        %p525 = pneg %p272
        %p526 = pneg %p269
        %p527 = pneg %p298
        %p528 = pneg %p295
        %s529 = sand.u32 %s285, 1
        %s530 = scalar_lea.sflag [#allocation4], %s529
        %s531 = sand.u32 %s285, 1
        %s532 = smul.addr %s531, 16
        %s533 = scalar_lea.vmem [#allocation14], %s532
        %s534 = smul.u32 2, %s31
        %p535 = scmp.lt.s32.totalorder %s534, 3
        %s536 = scalar_select %p535, %s534, 3
        %s537 = smul.addr %s536, 8
        %s538 = scalar_lea.vmem %s0, %s537
        %s539 = smul.u32 2, %s31
        %s540 = smul.u32 2, %s31
        %s541 = smul.u32 2, %s31
        %p542 = scmp.lt.s32.totalorder %s541, 3
        %s543 = scalar_select %p542, %s541, 3
        %s544 = smul.addr %s543, 8
        %s545 = scalar_lea.vmem %s2, %s544
        %s546 = smul.u32 2, %s31
        %s547 = smul.u32 2, %s31
        %v548 = vld [vmem:[%s538] sm:$0xff]
        %v549 = vld [vmem:[%s538 + $0x8] sm:$0xff]
        %v550 = vld [vmem:[#allocation7] sm:$0xff]
        %v551 = vld [vmem:[#allocation7 + $0x8] sm:$0xff]
        %v552 = vld [vmem:[#allocation7 + $0x10] sm:$0xff]
        %v553 = vld [vmem:[#allocation7 + $0x18] sm:$0xff]
        %v554 = vld [vmem:[#allocation7 + $0x20] sm:$0xff]
        %v555 = vld [vmem:[#allocation7 + $0x28] sm:$0xff]
        %v556 = vld [vmem:[#allocation7 + $0x30] sm:$0xff]
        %v557 = vld [vmem:[#allocation7 + $0x38] sm:$0xff]
        %v558 = vld [vmem:[#allocation7 + $0x40] sm:$0xff]
        %v559 = vld [vmem:[#allocation7 + $0x48] sm:$0xff]
        %v560 = vld [vmem:[#allocation7 + $0x50] sm:$0xff]
        %v561 = vld [vmem:[#allocation7 + $0x58] sm:$0xff]
        %v562 = vld [vmem:[#allocation7 + $0x60] sm:$0xff]
        %v563 = vld [vmem:[#allocation7 + $0x68] sm:$0xff]
        %v564 = vld [vmem:[#allocation7 + $0x70] sm:$0xff]
        %v565 = vld [vmem:[#allocation7 + $0x78] sm:$0xff]
        %v566 = vld [vmem:[#allocation7 + $0x80] sm:$0xff]
        %v567 = vld [vmem:[#allocation7 + $0x88] sm:$0xff]
        %v568 = vld [vmem:[#allocation7 + $0x90] sm:$0xff]
        %v569 = vld [vmem:[#allocation7 + $0x98] sm:$0xff]
        %v570 = vld [vmem:[#allocation7 + $0xa0] sm:$0xff]
        %v571 = vld [vmem:[#allocation7 + $0xa8] sm:$0xff]
        %v572 = vld [vmem:[#allocation7 + $0xb0] sm:$0xff]
        %v573 = vld [vmem:[#allocation7 + $0xb8] sm:$0xff]
        %v574 = vld [vmem:[#allocation7 + $0xc0] sm:$0xff]
        %v575 = vld [vmem:[#allocation7 + $0xc8] sm:$0xff]
        %v576 = vld [vmem:[#allocation7 + $0xd0] sm:$0xff]
        %v577 = vld [vmem:[#allocation7 + $0xd8] sm:$0xff]
        %v578 = vld [vmem:[#allocation7 + $0xe0] sm:$0xff]
        %v579 = vld [vmem:[#allocation7 + $0xe8] sm:$0xff]
        %v580 = vld [vmem:[#allocation7 + $0xf0] sm:$0xff]
        %v581 = vld [vmem:[#allocation7 + $0xf8] sm:$0xff]
        %v582 = vld [vmem:[%s454] sm:$0xff]
        %v583 = vld [vmem:[%s454 + $0x8] sm:$0xff]
        %v584 = vld [vmem:[#allocation8] sm:$0xff]
        %v585 = vld [vmem:[#allocation8 + $0x8] sm:$0xff]
        %v586 = vld [vmem:[#allocation8 + $0x10] sm:$0xff]
        %v587 = vld [vmem:[#allocation8 + $0x18] sm:$0xff]
        %v588 = vld [vmem:[#allocation8 + $0x20] sm:$0xff]
        %v589 = vld [vmem:[#allocation8 + $0x28] sm:$0xff]
        %v590 = vld [vmem:[#allocation8 + $0x30] sm:$0xff]
        %v591 = vld [vmem:[#allocation8 + $0x38] sm:$0xff]
        %v592 = vld [vmem:[#allocation8 + $0x40] sm:$0xff]
        %v593 = vld [vmem:[#allocation8 + $0x48] sm:$0xff]
        %v594 = vld [vmem:[#allocation8 + $0x50] sm:$0xff]
        %v595 = vld [vmem:[#allocation8 + $0x58] sm:$0xff]
        %v596 = vld [vmem:[#allocation8 + $0x60] sm:$0xff]
        %v597 = vld [vmem:[#allocation8 + $0x68] sm:$0xff]
        %v598 = vld [vmem:[#allocation8 + $0x70] sm:$0xff]
        %v599 = vld [vmem:[#allocation8 + $0x78] sm:$0xff]
        %v600 = vld [vmem:[#allocation8 + $0x80] sm:$0xff]
        %v601 = vld [vmem:[#allocation8 + $0x88] sm:$0xff]
        %v602 = vld [vmem:[#allocation8 + $0x90] sm:$0xff]
        %v603 = vld [vmem:[#allocation8 + $0x98] sm:$0xff]
        %v604 = vld [vmem:[#allocation8 + $0xa0] sm:$0xff]
        %v605 = vld [vmem:[#allocation8 + $0xa8] sm:$0xff]
        %v606 = vld [vmem:[#allocation8 + $0xb0] sm:$0xff]
        %v607 = vld [vmem:[#allocation8 + $0xb8] sm:$0xff]
        %v608 = vld [vmem:[#allocation8 + $0xc0] sm:$0xff]
        %v609 = vld [vmem:[#allocation8 + $0xc8] sm:$0xff]
        %v610 = vld [vmem:[#allocation8 + $0xd0] sm:$0xff]
        %v611 = vld [vmem:[#allocation8 + $0xd8] sm:$0xff]
        %v612 = vld [vmem:[#allocation8 + $0xe0] sm:$0xff]
        %v613 = vld [vmem:[#allocation8 + $0xe8] sm:$0xff]
        %v614 = vld [vmem:[#allocation8 + $0xf0] sm:$0xff]
        %v615 = vld [vmem:[#allocation8 + $0xf8] sm:$0xff]
        %vm616 = vcmask 523264
        %v618 = vsel %vm616, %v582, 0
        %v621 = vsel %vm616, %v583, 0
        %623 = vmatpush.msra.mxu0 0.0
        %624 = vmatpush.msra.mxu0 0.0
        %625 = vmatpush.msra.mxu0 0.0
        %626 = vmatpush.msra.mxu0 0.0
        %627 = vmatpush.msra.mxu0 0.0
        %628 = vmatpush.msra.mxu0 0.0
        %629 = vmatpush.msra.mxu0 0.0
        %630 = vmatpush.msra.mxu0 0.0
        %631 = vmatpush.msra.mxu0 %v612
        %632 = vmatpush.msra.mxu0 %v608
        %633 = vmatpush.msra.mxu0 %v604
        %634 = vmatpush.msra.mxu0 %v600
        %635 = vmatpush.msra.mxu0 %v596
        %636 = vmatpush.msra.mxu0 %v592
        %637 = vmatpush.msra.mxu0 %v588
        %638 = vmatpush.msra.mxu0 %v584
        %639 = vmatmul.f32.gmra.mxu0 %v618
        %v640 = vpop.f32.mrf.mxu0
        %v641 = vadd.f32 0.0, %v640
        %642 = vmatmul.f32.gmra.mxu0 %v621
        %v643 = vpop.f32.mrf.mxu0
        %v644 = vadd.f32 0.0, %v643
        %645 = vdwg.mxu0
        %646 = vmatpush.msra.mxu0 0.0
        %647 = vmatpush.msra.mxu0 0.0
        %648 = vmatpush.msra.mxu0 0.0
        %649 = vmatpush.msra.mxu0 0.0
        %650 = vmatpush.msra.mxu0 0.0
        %651 = vmatpush.msra.mxu0 0.0
        %652 = vmatpush.msra.mxu0 0.0
        %653 = vmatpush.msra.mxu0 0.0
        %654 = vmatpush.msra.mxu0 %v613
        %655 = vmatpush.msra.mxu0 %v609
        %656 = vmatpush.msra.mxu0 %v605
        %657 = vmatpush.msra.mxu0 %v601
        %658 = vmatpush.msra.mxu0 %v597
        %659 = vmatpush.msra.mxu0 %v593
        %660 = vmatpush.msra.mxu0 %v589
        %661 = vmatpush.msra.mxu0 %v585
        %662 = vmatmul.f32.gmra.mxu0 %v618
        %v663 = vpop.f32.mrf.mxu0
        %v664 = vadd.f32 0.0, %v663
        %665 = vmatmul.f32.gmra.mxu0 %v621
        %v666 = vpop.f32.mrf.mxu0
        %v667 = vadd.f32 0.0, %v666
        %668 = vdwg.mxu0
        %669 = vmatpush.msra.mxu0 0.0
        %670 = vmatpush.msra.mxu0 0.0
        %671 = vmatpush.msra.mxu0 0.0
        %672 = vmatpush.msra.mxu0 0.0
        %673 = vmatpush.msra.mxu0 0.0
        %674 = vmatpush.msra.mxu0 0.0
        %675 = vmatpush.msra.mxu0 0.0
        %676 = vmatpush.msra.mxu0 0.0
        %677 = vmatpush.msra.mxu0 %v614
        %678 = vmatpush.msra.mxu0 %v610
        %679 = vmatpush.msra.mxu0 %v606
        %680 = vmatpush.msra.mxu0 %v602
        %681 = vmatpush.msra.mxu0 %v598
        %682 = vmatpush.msra.mxu0 %v594
        %683 = vmatpush.msra.mxu0 %v590
        %684 = vmatpush.msra.mxu0 %v586
        %685 = vmatmul.f32.gmra.mxu0 %v618
        %v686 = vpop.f32.mrf.mxu0
        %v687 = vadd.f32 0.0, %v686
        %688 = vmatmul.f32.gmra.mxu0 %v621
        %v689 = vpop.f32.mrf.mxu0
        %v690 = vadd.f32 0.0, %v689
        %691 = vdwg.mxu0
        %692 = vmatpush.msra.mxu0 0.0
        %693 = vmatpush.msra.mxu0 0.0
        %694 = vmatpush.msra.mxu0 0.0
        %695 = vmatpush.msra.mxu0 0.0
        %696 = vmatpush.msra.mxu0 0.0
        %697 = vmatpush.msra.mxu0 0.0
        %698 = vmatpush.msra.mxu0 0.0
        %699 = vmatpush.msra.mxu0 0.0
        %700 = vmatpush.msra.mxu0 %v615
        %701 = vmatpush.msra.mxu0 %v611
        %702 = vmatpush.msra.mxu0 %v607
        %703 = vmatpush.msra.mxu0 %v603
        %704 = vmatpush.msra.mxu0 %v599
        %705 = vmatpush.msra.mxu0 %v595
        %706 = vmatpush.msra.mxu0 %v591
        %707 = vmatpush.msra.mxu0 %v587
        %708 = vmatmul.f32.gmra.mxu0 %v618
        %v709 = vpop.f32.mrf.mxu0
        %v710 = vadd.f32 0.0, %v709
        %711 = vmatmul.f32.gmra.mxu0 %v621
        %v712 = vpop.f32.mrf.mxu0
        %v713 = vadd.f32 0.0, %v712
        %714 = vdwg.mxu0
        %v716 = vsel %vm616, %v548, 0
        %v719 = vsel %vm616, %v549, 0
        %721 = vmatpush.msra.mxu0 0.0
        %722 = vmatpush.msra.mxu0 0.0
        %723 = vmatpush.msra.mxu0 0.0
        %724 = vmatpush.msra.mxu0 0.0
        %725 = vmatpush.msra.mxu0 0.0
        %726 = vmatpush.msra.mxu0 0.0
        %727 = vmatpush.msra.mxu0 0.0
        %728 = vmatpush.msra.mxu0 0.0
        %729 = vmatpush.msra.mxu0 %v578
        %730 = vmatpush.msra.mxu0 %v574
        %731 = vmatpush.msra.mxu0 %v570
        %732 = vmatpush.msra.mxu0 %v566
        %733 = vmatpush.msra.mxu0 %v562
        %734 = vmatpush.msra.mxu0 %v558
        %735 = vmatpush.msra.mxu0 %v554
        %736 = vmatpush.msra.mxu0 %v550
        %737 = vmatmul.f32.gmra.mxu0 %v716
        %v738 = vpop.f32.mrf.mxu0
        %v739 = vadd.f32 %v641, %v738
        %740 = vmatmul.f32.gmra.mxu0 %v719
        %v741 = vpop.f32.mrf.mxu0
        %v742 = vadd.f32 %v644, %v741
        %743 = vdwg.mxu0
        %744 = vmatpush.msra.mxu0 0.0
        %745 = vmatpush.msra.mxu0 0.0
        %746 = vmatpush.msra.mxu0 0.0
        %747 = vmatpush.msra.mxu0 0.0
        %748 = vmatpush.msra.mxu0 0.0
        %749 = vmatpush.msra.mxu0 0.0
        %750 = vmatpush.msra.mxu0 0.0
        %751 = vmatpush.msra.mxu0 0.0
        %752 = vmatpush.msra.mxu0 %v579
        %753 = vmatpush.msra.mxu0 %v575
        %754 = vmatpush.msra.mxu0 %v571
        %755 = vmatpush.msra.mxu0 %v567
        %756 = vmatpush.msra.mxu0 %v563
        %757 = vmatpush.msra.mxu0 %v559
        %758 = vmatpush.msra.mxu0 %v555
        %759 = vmatpush.msra.mxu0 %v551
        %760 = vmatmul.f32.gmra.mxu0 %v716
        %v761 = vpop.f32.mrf.mxu0
        %v762 = vadd.f32 %v664, %v761
        %763 = vmatmul.f32.gmra.mxu0 %v719
        %v764 = vpop.f32.mrf.mxu0
        %v765 = vadd.f32 %v667, %v764
        %766 = vdwg.mxu0
        %767 = vmatpush.msra.mxu0 0.0
        %768 = vmatpush.msra.mxu0 0.0
        %769 = vmatpush.msra.mxu0 0.0
        %770 = vmatpush.msra.mxu0 0.0
        %771 = vmatpush.msra.mxu0 0.0
        %772 = vmatpush.msra.mxu0 0.0
        %773 = vmatpush.msra.mxu0 0.0
        %774 = vmatpush.msra.mxu0 0.0
        %775 = vmatpush.msra.mxu0 %v580
        %776 = vmatpush.msra.mxu0 %v576
        %777 = vmatpush.msra.mxu0 %v572
        %778 = vmatpush.msra.mxu0 %v568
        %779 = vmatpush.msra.mxu0 %v564
        %780 = vmatpush.msra.mxu0 %v560
        %781 = vmatpush.msra.mxu0 %v556
        %782 = vmatpush.msra.mxu0 %v552
        %783 = vmatmul.f32.gmra.mxu0 %v716
        %v784 = vpop.f32.mrf.mxu0
        %v785 = vadd.f32 %v687, %v784
        %786 = vmatmul.f32.gmra.mxu0 %v719
        %v787 = vpop.f32.mrf.mxu0
        %v788 = vadd.f32 %v690, %v787
        %789 = vdwg.mxu0
        %790 = vmatpush.msra.mxu0 0.0
        %791 = vmatpush.msra.mxu0 0.0
        %792 = vmatpush.msra.mxu0 0.0
        %793 = vmatpush.msra.mxu0 0.0
        %794 = vmatpush.msra.mxu0 0.0
        %795 = vmatpush.msra.mxu0 0.0
        %796 = vmatpush.msra.mxu0 0.0
        %797 = vmatpush.msra.mxu0 0.0
        %798 = vmatpush.msra.mxu0 %v581
        %799 = vmatpush.msra.mxu0 %v577
        %800 = vmatpush.msra.mxu0 %v573
        %801 = vmatpush.msra.mxu0 %v569
        %802 = vmatpush.msra.mxu0 %v565
        %803 = vmatpush.msra.mxu0 %v561
        %804 = vmatpush.msra.mxu0 %v557
        %805 = vmatpush.msra.mxu0 %v553
        %806 = vmatmul.f32.gmra.mxu0 %v716
        %v807 = vpop.f32.mrf.mxu0
        %v808 = vadd.f32 %v710, %v807
        %809 = vmatmul.f32.gmra.mxu0 %v719
        %v810 = vpop.f32.mrf.mxu0
        %v811 = vadd.f32 %v713, %v810
        %812 = vdwg.mxu0
        %v813 = vld [vmem:[%s6] sm:$0xf]
        %v815 = vperm.slane %v813, 0
        %v816 = vperm.slane %v813, 1
        %v817 = vperm.slane %v813, 2
        %v818 = vperm.slane %v813, 3
        %v823 = vadd.f32 %v739, %v815
        %v824 = vadd.f32 %v762, %v816
        %v825 = vadd.f32 %v785, %v817
        %v826 = vadd.f32 %v808, %v818
        %v827 = vadd.f32 %v742, %v815
        %v828 = vadd.f32 %v765, %v816
        %v829 = vadd.f32 %v788, %v817
        %v830 = vadd.f32 %v811, %v818
        %v831 = vld [vmem:[%s545] sm:$0xff]
        %v832 = vld [vmem:[%s545 + $0x8] sm:$0xff]
        %834 = vset.pattern.permute.xlu0 0
        %835 = vperm.xlu0 %834, %v831
        %v836 = vpop.permute.xlu0 %835
        %839 = vset.pattern.permute.xlu0 0
        %840 = vperm.xlu0 %839, %v832
        %v841 = vpop.permute.xlu0 %840
        %v843 = vmul.f32 %v836, %v823
        %v844 = vmul.f32 %v836, %v824
        %v845 = vmul.f32 %v836, %v825
        %v846 = vmul.f32 %v836, %v826
        %v847 = vmul.f32 %v841, %v827
        %v848 = vmul.f32 %v841, %v828
        %v849 = vmul.f32 %v841, %v829
        %v850 = vmul.f32 %v841, %v830
        %v851 = vsub.f32 1.0, %v831
        %v852 = vsub.f32 1.0, %v832
        %v853 = vld [vmem:[#allocation5] sm:$0xf]
        %855 = vset.pattern.permute.xlu0 0
        %856 = vperm.xlu0 %855, %v851
        %v857 = vpop.permute.xlu0 %856
        %860 = vset.pattern.permute.xlu0 0
        %861 = vperm.xlu0 %860, %v852
        %v862 = vpop.permute.xlu0 %861
        %v865 = vperm.slane %v853, 0
        %v866 = vperm.slane %v853, 1
        %v867 = vperm.slane %v853, 2
        %v868 = vperm.slane %v853, 3
        %v873 = vmul.f32 %v857, %v865
        %v874 = vmul.f32 %v857, %v866
        %v875 = vmul.f32 %v857, %v867
        %v876 = vmul.f32 %v857, %v868
        %v877 = vmul.f32 %v862, %v865
        %v878 = vmul.f32 %v862, %v866
        %v879 = vmul.f32 %v862, %v867
        %v880 = vmul.f32 %v862, %v868
        %v881 = vadd.f32 %v843, %v873
        %v882 = vadd.f32 %v844, %v874
        %v883 = vadd.f32 %v845, %v875
        %v884 = vadd.f32 %v846, %v876
        %v885 = vadd.f32 %v847, %v877
        %v886 = vadd.f32 %v848, %v878
        %v887 = vadd.f32 %v849, %v879
        %v888 = vadd.f32 %v850, %v880
        %v889 = vsub.f32 0.0, %v881
        %v890 = vsub.f32 0.0, %v882
        %v891 = vsub.f32 0.0, %v883
        %v892 = vsub.f32 0.0, %v884
        %v893 = vsub.f32 0.0, %v885
        %v894 = vsub.f32 0.0, %v886
        %v895 = vsub.f32 0.0, %v887
        %v896 = vsub.f32 0.0, %v888
        %v897 = vmul.f32 %v889, 1.442695
        %v898 = vpow.pop %v897
        %v899 = vmul.f32 %v890, 1.442695
        %v900 = vpow.pop %v899
        %v901 = vmul.f32 %v891, 1.442695
        %v902 = vpow.pop %v901
        %v903 = vmul.f32 %v892, 1.442695
        %v904 = vpow.pop %v903
        %v905 = vmul.f32 %v893, 1.442695
        %v906 = vpow.pop %v905
        %v907 = vmul.f32 %v894, 1.442695
        %v908 = vpow.pop %v907
        %v909 = vmul.f32 %v895, 1.442695
        %v910 = vpow.pop %v909
        %v911 = vmul.f32 %v896, 1.442695
        %v912 = vpow.pop %v911
        %v913 = vadd.f32 %v898, 1.0
        %v914 = vadd.f32 %v900, 1.0
        %v915 = vadd.f32 %v902, 1.0
        %v916 = vadd.f32 %v904, 1.0
        %v917 = vadd.f32 %v906, 1.0
        %v918 = vadd.f32 %v908, 1.0
        %v919 = vadd.f32 %v910, 1.0
        %v920 = vadd.f32 %v912, 1.0
        %v921 = vrcp.pop %v913
        %v922 = vrcp.pop %v914
        %v923 = vrcp.pop %v915
        %v924 = vrcp.pop %v916
        %v925 = vrcp.pop %v917
        %v926 = vrcp.pop %v918
        %v927 = vrcp.pop %v919
        %v928 = vrcp.pop %v920
        %v929 = vmul.f32 %v881, %v921
        %v930 = vmul.f32 %v882, %v922
        %v931 = vmul.f32 %v883, %v923
        %v932 = vmul.f32 %v884, %v924
        %v933 = vmul.f32 %v885, %v925
        %v934 = vmul.f32 %v886, %v926
        %v935 = vmul.f32 %v887, %v927
        %v936 = vmul.f32 %v888, %v928
        %v937 = vld [vmem:[#allocation10] sm:$0xff]
        %v938 = vld [vmem:[#allocation10 + $0x8] sm:$0xff]
        %v939 = vld [vmem:[#allocation10 + $0x10] sm:$0xff]
        %v940 = vld [vmem:[#allocation10 + $0x18] sm:$0xff]
        %v941 = vld [vmem:[#allocation10 + $0x20] sm:$0xff]
        %v942 = vld [vmem:[#allocation10 + $0x28] sm:$0xff]
        %v943 = vld [vmem:[#allocation10 + $0x30] sm:$0xff]
        %v944 = vld [vmem:[#allocation10 + $0x38] sm:$0xff]
        %v945 = vld [vmem:[#allocation10 + $0x40] sm:$0xff]
        %v946 = vld [vmem:[#allocation10 + $0x48] sm:$0xff]
        %v947 = vld [vmem:[#allocation10 + $0x50] sm:$0xff]
        %v948 = vld [vmem:[#allocation10 + $0x58] sm:$0xff]
        %v949 = vld [vmem:[#allocation10 + $0x60] sm:$0xff]
        %v950 = vld [vmem:[#allocation10 + $0x68] sm:$0xff]
        %v951 = vld [vmem:[#allocation10 + $0x70] sm:$0xff]
        %v952 = vld [vmem:[#allocation10 + $0x78] sm:$0xff]
        %v953 = vld [vmem:[#allocation10 + $0x80] sm:$0xff]
        %v954 = vld [vmem:[#allocation10 + $0x88] sm:$0xff]
        %v955 = vld [vmem:[#allocation10 + $0x90] sm:$0xff]
        %v956 = vld [vmem:[#allocation10 + $0x98] sm:$0xff]
        %v957 = vld [vmem:[#allocation10 + $0xa0] sm:$0xff]
        %v958 = vld [vmem:[#allocation10 + $0xa8] sm:$0xff]
        %v959 = vld [vmem:[#allocation10 + $0xb0] sm:$0xff]
        %v960 = vld [vmem:[#allocation10 + $0xb8] sm:$0xff]
        %v961 = vld [vmem:[#allocation10 + $0xc0] sm:$0xff]
        %v962 = vld [vmem:[#allocation10 + $0xc8] sm:$0xff]
        %v963 = vld [vmem:[#allocation10 + $0xd0] sm:$0xff]
        %v964 = vld [vmem:[#allocation10 + $0xd8] sm:$0xff]
        %v965 = vld [vmem:[#allocation10 + $0xe0] sm:$0xff]
        %v966 = vld [vmem:[#allocation10 + $0xe8] sm:$0xff]
        %v967 = vld [vmem:[#allocation10 + $0xf0] sm:$0xff]
        %v968 = vld [vmem:[#allocation10 + $0xf8] sm:$0xff]
        %v969 = vld [vmem:[#allocation10 + $0x100] sm:$0xff]
        %v970 = vld [vmem:[#allocation10 + $0x108] sm:$0xff]
        %v971 = vld [vmem:[#allocation10 + $0x110] sm:$0xff]
        %v972 = vld [vmem:[#allocation10 + $0x118] sm:$0xff]
        %v973 = vld [vmem:[#allocation10 + $0x120] sm:$0xff]
        %v974 = vld [vmem:[#allocation10 + $0x128] sm:$0xff]
        %v975 = vld [vmem:[#allocation10 + $0x130] sm:$0xff]
        %v976 = vld [vmem:[#allocation10 + $0x138] sm:$0xff]
        %v977 = vld [vmem:[#allocation10 + $0x140] sm:$0xff]
        %v978 = vld [vmem:[#allocation10 + $0x148] sm:$0xff]
        %v979 = vld [vmem:[#allocation10 + $0x150] sm:$0xff]
        %v980 = vld [vmem:[#allocation10 + $0x158] sm:$0xff]
        %v981 = vld [vmem:[#allocation10 + $0x160] sm:$0xff]
        %v982 = vld [vmem:[#allocation10 + $0x168] sm:$0xff]
        %v983 = vld [vmem:[#allocation10 + $0x170] sm:$0xff]
        %v984 = vld [vmem:[#allocation10 + $0x178] sm:$0xff]
        %v985 = vld [vmem:[#allocation10 + $0x180] sm:$0xff]
        %v986 = vld [vmem:[#allocation10 + $0x188] sm:$0xff]
        %v987 = vld [vmem:[#allocation10 + $0x190] sm:$0xff]
        %v988 = vld [vmem:[#allocation10 + $0x198] sm:$0xff]
        %v989 = vld [vmem:[#allocation10 + $0x1a0] sm:$0xff]
        %v990 = vld [vmem:[#allocation10 + $0x1a8] sm:$0xff]
        %v991 = vld [vmem:[#allocation10 + $0x1b0] sm:$0xff]
        %v992 = vld [vmem:[#allocation10 + $0x1b8] sm:$0xff]
        %v993 = vld [vmem:[#allocation10 + $0x1c0] sm:$0xff]
        %v994 = vld [vmem:[#allocation10 + $0x1c8] sm:$0xff]
        %v995 = vld [vmem:[#allocation10 + $0x1d0] sm:$0xff]
        %v996 = vld [vmem:[#allocation10 + $0x1d8] sm:$0xff]
        %v997 = vld [vmem:[#allocation10 + $0x1e0] sm:$0xff]
        %v998 = vld [vmem:[#allocation10 + $0x1e8] sm:$0xff]
        %v999 = vld [vmem:[#allocation10 + $0x1f0] sm:$0xff]
        %v1000 = vld [vmem:[#allocation10 + $0x1f8] sm:$0xff]
        %v1001 = vld [vmem:[#allocation10 + $0x200] sm:$0xff]
        %v1002 = vld [vmem:[#allocation10 + $0x208] sm:$0xff]
        %v1003 = vld [vmem:[#allocation10 + $0x210] sm:$0xff]
        %v1004 = vld [vmem:[#allocation10 + $0x218] sm:$0xff]
        %v1005 = vld [vmem:[#allocation10 + $0x220] sm:$0xff]
        %v1006 = vld [vmem:[#allocation10 + $0x228] sm:$0xff]
        %v1007 = vld [vmem:[#allocation10 + $0x230] sm:$0xff]
        %v1008 = vld [vmem:[#allocation10 + $0x238] sm:$0xff]
        %v1009 = vld [vmem:[#allocation10 + $0x240] sm:$0xff]
        %v1010 = vld [vmem:[#allocation10 + $0x248] sm:$0xff]
        %v1011 = vld [vmem:[#allocation10 + $0x250] sm:$0xff]
        %v1012 = vld [vmem:[#allocation10 + $0x258] sm:$0xff]
        %v1013 = vld [vmem:[#allocation10 + $0x260] sm:$0xff]
        %v1014 = vld [vmem:[#allocation10 + $0x268] sm:$0xff]
        %v1015 = vld [vmem:[#allocation10 + $0x270] sm:$0xff]
        %v1016 = vld [vmem:[#allocation10 + $0x278] sm:$0xff]
        %v1017 = vld [vmem:[#allocation10 + $0x280] sm:$0xff]
        %v1018 = vld [vmem:[#allocation10 + $0x288] sm:$0xff]
        %v1019 = vld [vmem:[#allocation10 + $0x290] sm:$0xff]
        %v1020 = vld [vmem:[#allocation10 + $0x298] sm:$0xff]
        %v1021 = vld [vmem:[#allocation10 + $0x2a0] sm:$0xff]
        %v1022 = vld [vmem:[#allocation10 + $0x2a8] sm:$0xff]
        %v1023 = vld [vmem:[#allocation10 + $0x2b0] sm:$0xff]
        %v1024 = vld [vmem:[#allocation10 + $0x2b8] sm:$0xff]
        %v1025 = vld [vmem:[#allocation10 + $0x2c0] sm:$0xff]
        %v1026 = vld [vmem:[#allocation10 + $0x2c8] sm:$0xff]
        %v1027 = vld [vmem:[#allocation10 + $0x2d0] sm:$0xff]
        %v1028 = vld [vmem:[#allocation10 + $0x2d8] sm:$0xff]
        %v1029 = vld [vmem:[#allocation10 + $0x2e0] sm:$0xff]
        %v1030 = vld [vmem:[#allocation10 + $0x2e8] sm:$0xff]
        %v1031 = vld [vmem:[#allocation10 + $0x2f0] sm:$0xff]
        %v1032 = vld [vmem:[#allocation10 + $0x2f8] sm:$0xff]
        %v1033 = vld [vmem:[#allocation10 + $0x300] sm:$0xff]
        %v1034 = vld [vmem:[#allocation10 + $0x308] sm:$0xff]
        %v1035 = vld [vmem:[#allocation10 + $0x310] sm:$0xff]
        %v1036 = vld [vmem:[#allocation10 + $0x318] sm:$0xff]
        %v1037 = vld [vmem:[#allocation10 + $0x320] sm:$0xff]
        %v1038 = vld [vmem:[#allocation10 + $0x328] sm:$0xff]
        %v1039 = vld [vmem:[#allocation10 + $0x330] sm:$0xff]
        %v1040 = vld [vmem:[#allocation10 + $0x338] sm:$0xff]
        %v1041 = vld [vmem:[#allocation10 + $0x340] sm:$0xff]
        %v1042 = vld [vmem:[#allocation10 + $0x348] sm:$0xff]
        %v1043 = vld [vmem:[#allocation10 + $0x350] sm:$0xff]
        %v1044 = vld [vmem:[#allocation10 + $0x358] sm:$0xff]
        %v1045 = vld [vmem:[#allocation10 + $0x360] sm:$0xff]
        %v1046 = vld [vmem:[#allocation10 + $0x368] sm:$0xff]
        %v1047 = vld [vmem:[#allocation10 + $0x370] sm:$0xff]
        %v1048 = vld [vmem:[#allocation10 + $0x378] sm:$0xff]
        %v1049 = vld [vmem:[#allocation10 + $0x380] sm:$0xff]
        %v1050 = vld [vmem:[#allocation10 + $0x388] sm:$0xff]
        %v1051 = vld [vmem:[#allocation10 + $0x390] sm:$0xff]
        %v1052 = vld [vmem:[#allocation10 + $0x398] sm:$0xff]
        %v1053 = vld [vmem:[#allocation10 + $0x3a0] sm:$0xff]
        %v1054 = vld [vmem:[#allocation10 + $0x3a8] sm:$0xff]
        %v1055 = vld [vmem:[#allocation10 + $0x3b0] sm:$0xff]
        %v1056 = vld [vmem:[#allocation10 + $0x3b8] sm:$0xff]
        %v1057 = vld [vmem:[#allocation10 + $0x3c0] sm:$0xff]
        %v1058 = vld [vmem:[#allocation10 + $0x3c8] sm:$0xff]
        %v1059 = vld [vmem:[#allocation10 + $0x3d0] sm:$0xff]
        %v1060 = vld [vmem:[#allocation10 + $0x3d8] sm:$0xff]
        %v1061 = vld [vmem:[#allocation10 + $0x3e0] sm:$0xff]
        %v1062 = vld [vmem:[#allocation10 + $0x3e8] sm:$0xff]
        %v1063 = vld [vmem:[#allocation10 + $0x3f0] sm:$0xff]
        %v1064 = vld [vmem:[#allocation10 + $0x3f8] sm:$0xff]
        %v1065 = vld [vmem:[#allocation10 + $0x400] sm:$0xff]
        %v1066 = vld [vmem:[#allocation10 + $0x408] sm:$0xff]
        %v1067 = vld [vmem:[#allocation10 + $0x410] sm:$0xff]
        %v1068 = vld [vmem:[#allocation10 + $0x418] sm:$0xff]
        %v1069 = vld [vmem:[#allocation10 + $0x420] sm:$0xff]
        %v1070 = vld [vmem:[#allocation10 + $0x428] sm:$0xff]
        %v1071 = vld [vmem:[#allocation10 + $0x430] sm:$0xff]
        %v1072 = vld [vmem:[#allocation10 + $0x438] sm:$0xff]
        %v1073 = vld [vmem:[#allocation10 + $0x440] sm:$0xff]
        %v1074 = vld [vmem:[#allocation10 + $0x448] sm:$0xff]
        %v1075 = vld [vmem:[#allocation10 + $0x450] sm:$0xff]
        %v1076 = vld [vmem:[#allocation10 + $0x458] sm:$0xff]
        %v1077 = vld [vmem:[#allocation10 + $0x460] sm:$0xff]
        %v1078 = vld [vmem:[#allocation10 + $0x468] sm:$0xff]
        %v1079 = vld [vmem:[#allocation10 + $0x470] sm:$0xff]
        %v1080 = vld [vmem:[#allocation10 + $0x478] sm:$0xff]
        %v1081 = vld [vmem:[#allocation10 + $0x480] sm:$0xff]
        %v1082 = vld [vmem:[#allocation10 + $0x488] sm:$0xff]
        %v1083 = vld [vmem:[#allocation10 + $0x490] sm:$0xff]
        %v1084 = vld [vmem:[#allocation10 + $0x498] sm:$0xff]
        %v1085 = vld [vmem:[#allocation10 + $0x4a0] sm:$0xff]
        %v1086 = vld [vmem:[#allocation10 + $0x4a8] sm:$0xff]
        %v1087 = vld [vmem:[#allocation10 + $0x4b0] sm:$0xff]
        %v1088 = vld [vmem:[#allocation10 + $0x4b8] sm:$0xff]
        %v1089 = vld [vmem:[#allocation10 + $0x4c0] sm:$0xff]
        %v1090 = vld [vmem:[#allocation10 + $0x4c8] sm:$0xff]
        %v1091 = vld [vmem:[#allocation10 + $0x4d0] sm:$0xff]
        %v1092 = vld [vmem:[#allocation10 + $0x4d8] sm:$0xff]
        %v1093 = vld [vmem:[#allocation10 + $0x4e0] sm:$0xff]
        %v1094 = vld [vmem:[#allocation10 + $0x4e8] sm:$0xff]
        %v1095 = vld [vmem:[#allocation10 + $0x4f0] sm:$0xff]
        %v1096 = vld [vmem:[#allocation10 + $0x4f8] sm:$0xff]
        %v1097 = vld [vmem:[#allocation10 + $0x500] sm:$0xff]
        %v1098 = vld [vmem:[#allocation10 + $0x508] sm:$0xff]
        %v1099 = vld [vmem:[#allocation10 + $0x510] sm:$0xff]
        %v1100 = vld [vmem:[#allocation10 + $0x518] sm:$0xff]
        %v1101 = vld [vmem:[#allocation10 + $0x520] sm:$0xff]
        %v1102 = vld [vmem:[#allocation10 + $0x528] sm:$0xff]
        %v1103 = vld [vmem:[#allocation10 + $0x530] sm:$0xff]
        %v1104 = vld [vmem:[#allocation10 + $0x538] sm:$0xff]
        %v1105 = vld [vmem:[#allocation10 + $0x540] sm:$0xff]
        %v1106 = vld [vmem:[#allocation10 + $0x548] sm:$0xff]
        %v1107 = vld [vmem:[#allocation10 + $0x550] sm:$0xff]
        %v1108 = vld [vmem:[#allocation10 + $0x558] sm:$0xff]
        %v1109 = vld [vmem:[#allocation10 + $0x560] sm:$0xff]
        %v1110 = vld [vmem:[#allocation10 + $0x568] sm:$0xff]
        %v1111 = vld [vmem:[#allocation10 + $0x570] sm:$0xff]
        %v1112 = vld [vmem:[#allocation10 + $0x578] sm:$0xff]
        %v1113 = vld [vmem:[#allocation10 + $0x580] sm:$0xff]
        %v1114 = vld [vmem:[#allocation10 + $0x588] sm:$0xff]
        %v1115 = vld [vmem:[#allocation10 + $0x590] sm:$0xff]
        %v1116 = vld [vmem:[#allocation10 + $0x598] sm:$0xff]
        %v1117 = vld [vmem:[#allocation10 + $0x5a0] sm:$0xff]
        %v1118 = vld [vmem:[#allocation10 + $0x5a8] sm:$0xff]
        %v1119 = vld [vmem:[#allocation10 + $0x5b0] sm:$0xff]
        %v1120 = vld [vmem:[#allocation10 + $0x5b8] sm:$0xff]
        %v1121 = vld [vmem:[#allocation10 + $0x5c0] sm:$0xff]
        %v1122 = vld [vmem:[#allocation10 + $0x5c8] sm:$0xff]
        %v1123 = vld [vmem:[#allocation10 + $0x5d0] sm:$0xff]
        %v1124 = vld [vmem:[#allocation10 + $0x5d8] sm:$0xff]
        %v1125 = vld [vmem:[#allocation10 + $0x5e0] sm:$0xff]
        %v1126 = vld [vmem:[#allocation10 + $0x5e8] sm:$0xff]
        %v1127 = vld [vmem:[#allocation10 + $0x5f0] sm:$0xff]
        %v1128 = vld [vmem:[#allocation10 + $0x5f8] sm:$0xff]
        %v1129 = vld [vmem:[#allocation10 + $0x600] sm:$0xff]
        %v1130 = vld [vmem:[#allocation10 + $0x608] sm:$0xff]
        %v1131 = vld [vmem:[#allocation10 + $0x610] sm:$0xff]
        %v1132 = vld [vmem:[#allocation10 + $0x618] sm:$0xff]
        %v1133 = vld [vmem:[#allocation10 + $0x620] sm:$0xff]
        %v1134 = vld [vmem:[#allocation10 + $0x628] sm:$0xff]
        %v1135 = vld [vmem:[#allocation10 + $0x630] sm:$0xff]
        %v1136 = vld [vmem:[#allocation10 + $0x638] sm:$0xff]
        %v1137 = vld [vmem:[#allocation10 + $0x640] sm:$0xff]
        %v1138 = vld [vmem:[#allocation10 + $0x648] sm:$0xff]
        %v1139 = vld [vmem:[#allocation10 + $0x650] sm:$0xff]
        %v1140 = vld [vmem:[#allocation10 + $0x658] sm:$0xff]
        %v1141 = vld [vmem:[#allocation10 + $0x660] sm:$0xff]
        %v1142 = vld [vmem:[#allocation10 + $0x668] sm:$0xff]
        %v1143 = vld [vmem:[#allocation10 + $0x670] sm:$0xff]
        %v1144 = vld [vmem:[#allocation10 + $0x678] sm:$0xff]
        %v1145 = vld [vmem:[#allocation10 + $0x680] sm:$0xff]
        %v1146 = vld [vmem:[#allocation10 + $0x688] sm:$0xff]
        %v1147 = vld [vmem:[#allocation10 + $0x690] sm:$0xff]
        %v1148 = vld [vmem:[#allocation10 + $0x698] sm:$0xff]
        %v1149 = vld [vmem:[#allocation10 + $0x6a0] sm:$0xff]
        %v1150 = vld [vmem:[#allocation10 + $0x6a8] sm:$0xff]
        %v1151 = vld [vmem:[#allocation10 + $0x6b0] sm:$0xff]
        %v1152 = vld [vmem:[#allocation10 + $0x6b8] sm:$0xff]
        %v1153 = vld [vmem:[#allocation10 + $0x6c0] sm:$0xff]
        %v1154 = vld [vmem:[#allocation10 + $0x6c8] sm:$0xff]
        %v1155 = vld [vmem:[#allocation10 + $0x6d0] sm:$0xff]
        %v1156 = vld [vmem:[#allocation10 + $0x6d8] sm:$0xff]
        %v1157 = vld [vmem:[#allocation10 + $0x6e0] sm:$0xff]
        %v1158 = vld [vmem:[#allocation10 + $0x6e8] sm:$0xff]
        %v1159 = vld [vmem:[#allocation10 + $0x6f0] sm:$0xff]
        %v1160 = vld [vmem:[#allocation10 + $0x6f8] sm:$0xff]
        %v1161 = vld [vmem:[#allocation10 + $0x700] sm:$0xff]
        %v1162 = vld [vmem:[#allocation10 + $0x708] sm:$0xff]
        %v1163 = vld [vmem:[#allocation10 + $0x710] sm:$0xff]
        %v1164 = vld [vmem:[#allocation10 + $0x718] sm:$0xff]
        %v1165 = vld [vmem:[#allocation10 + $0x720] sm:$0xff]
        %v1166 = vld [vmem:[#allocation10 + $0x728] sm:$0xff]
        %v1167 = vld [vmem:[#allocation10 + $0x730] sm:$0xff]
        %v1168 = vld [vmem:[#allocation10 + $0x738] sm:$0xff]
        %v1169 = vld [vmem:[#allocation10 + $0x740] sm:$0xff]
        %v1170 = vld [vmem:[#allocation10 + $0x748] sm:$0xff]
        %v1171 = vld [vmem:[#allocation10 + $0x750] sm:$0xff]
        %v1172 = vld [vmem:[#allocation10 + $0x758] sm:$0xff]
        %v1173 = vld [vmem:[#allocation10 + $0x760] sm:$0xff]
        %v1174 = vld [vmem:[#allocation10 + $0x768] sm:$0xff]
        %v1175 = vld [vmem:[#allocation10 + $0x770] sm:$0xff]
        %v1176 = vld [vmem:[#allocation10 + $0x778] sm:$0xff]
        %v1177 = vld [vmem:[#allocation10 + $0x780] sm:$0xff]
        %v1178 = vld [vmem:[#allocation10 + $0x788] sm:$0xff]
        %v1179 = vld [vmem:[#allocation10 + $0x790] sm:$0xff]
        %v1180 = vld [vmem:[#allocation10 + $0x798] sm:$0xff]
        %v1181 = vld [vmem:[#allocation10 + $0x7a0] sm:$0xff]
        %v1182 = vld [vmem:[#allocation10 + $0x7a8] sm:$0xff]
        %v1183 = vld [vmem:[#allocation10 + $0x7b0] sm:$0xff]
        %v1184 = vld [vmem:[#allocation10 + $0x7b8] sm:$0xff]
        %v1185 = vld [vmem:[#allocation10 + $0x7c0] sm:$0xff]
        %v1186 = vld [vmem:[#allocation10 + $0x7c8] sm:$0xff]
        %v1187 = vld [vmem:[#allocation10 + $0x7d0] sm:$0xff]
        %v1188 = vld [vmem:[#allocation10 + $0x7d8] sm:$0xff]
        %v1189 = vld [vmem:[#allocation10 + $0x7e0] sm:$0xff]
        %v1190 = vld [vmem:[#allocation10 + $0x7e8] sm:$0xff]
        %v1191 = vld [vmem:[#allocation10 + $0x7f0] sm:$0xff]
        %v1192 = vld [vmem:[#allocation10 + $0x7f8] sm:$0xff]
        %v1193 = vld [vmem:[#allocation11] sm:$0xf]
        %v1195 = vperm.slane %v1193, 0
        %v1196 = vperm.slane %v1193, 1
        %v1197 = vperm.slane %v1193, 2
        %v1198 = vperm.slane %v1193, 3
        %1203 = vmatpush.msra.mxu0 %v997
        %1204 = vmatpush.msra.mxu0 %v993
        %1205 = vmatpush.msra.mxu0 %v989
        %1206 = vmatpush.msra.mxu0 %v985
        %1207 = vmatpush.msra.mxu0 %v981
        %1208 = vmatpush.msra.mxu0 %v977
        %1209 = vmatpush.msra.mxu0 %v973
        %1210 = vmatpush.msra.mxu0 %v969
        %1211 = vmatpush.msra.mxu0 %v965
        %1212 = vmatpush.msra.mxu0 %v961
        %1213 = vmatpush.msra.mxu0 %v957
        %1214 = vmatpush.msra.mxu0 %v953
        %1215 = vmatpush.msra.mxu0 %v949
        %1216 = vmatpush.msra.mxu0 %v945
        %1217 = vmatpush.msra.mxu0 %v941
        %1218 = vmatpush.msra.mxu0 %v937
        %1219 = vmatmul.f32.gmra.mxu0 %v929
        %v1220 = vpop.f32.mrf.mxu0
        %v1221 = vadd.f32 %v1195, %v1220
        %1222 = vmatmul.f32.gmra.mxu0 %v933
        %v1223 = vpop.f32.mrf.mxu0
        %v1224 = vadd.f32 %v1195, %v1223
        %1225 = vdwg.mxu0
        %1226 = vmatpush.msra.mxu0 %v1061
        %1227 = vmatpush.msra.mxu0 %v1057
        %1228 = vmatpush.msra.mxu0 %v1053
        %1229 = vmatpush.msra.mxu0 %v1049
        %1230 = vmatpush.msra.mxu0 %v1045
        %1231 = vmatpush.msra.mxu0 %v1041
        %1232 = vmatpush.msra.mxu0 %v1037
        %1233 = vmatpush.msra.mxu0 %v1033
        %1234 = vmatpush.msra.mxu0 %v1029
        %1235 = vmatpush.msra.mxu0 %v1025
        %1236 = vmatpush.msra.mxu0 %v1021
        %1237 = vmatpush.msra.mxu0 %v1017
        %1238 = vmatpush.msra.mxu0 %v1013
        %1239 = vmatpush.msra.mxu0 %v1009
        %1240 = vmatpush.msra.mxu0 %v1005
        %1241 = vmatpush.msra.mxu0 %v1001
        %1242 = vmatmul.f32.gmra.mxu0 %v930
        %v1243 = vpop.f32.mrf.mxu0
        %v1244 = vadd.f32 %v1221, %v1243
        %1245 = vmatmul.f32.gmra.mxu0 %v934
        %v1246 = vpop.f32.mrf.mxu0
        %v1247 = vadd.f32 %v1224, %v1246
        %1248 = vdwg.mxu0
        %1249 = vmatpush.msra.mxu0 %v1125
        %1250 = vmatpush.msra.mxu0 %v1121
        %1251 = vmatpush.msra.mxu0 %v1117
        %1252 = vmatpush.msra.mxu0 %v1113
        %1253 = vmatpush.msra.mxu0 %v1109
        %1254 = vmatpush.msra.mxu0 %v1105
        %1255 = vmatpush.msra.mxu0 %v1101
        %1256 = vmatpush.msra.mxu0 %v1097
        %1257 = vmatpush.msra.mxu0 %v1093
        %1258 = vmatpush.msra.mxu0 %v1089
        %1259 = vmatpush.msra.mxu0 %v1085
        %1260 = vmatpush.msra.mxu0 %v1081
        %1261 = vmatpush.msra.mxu0 %v1077
        %1262 = vmatpush.msra.mxu0 %v1073
        %1263 = vmatpush.msra.mxu0 %v1069
        %1264 = vmatpush.msra.mxu0 %v1065
        %1265 = vmatmul.f32.gmra.mxu0 %v931
        %v1266 = vpop.f32.mrf.mxu0
        %v1267 = vadd.f32 %v1244, %v1266
        %1268 = vmatmul.f32.gmra.mxu0 %v935
        %v1269 = vpop.f32.mrf.mxu0
        %v1270 = vadd.f32 %v1247, %v1269
        %1271 = vdwg.mxu0
        %1272 = vmatpush.msra.mxu0 %v1189
        %1273 = vmatpush.msra.mxu0 %v1185
        %1274 = vmatpush.msra.mxu0 %v1181
        %1275 = vmatpush.msra.mxu0 %v1177
        %1276 = vmatpush.msra.mxu0 %v1173
        %1277 = vmatpush.msra.mxu0 %v1169
        %1278 = vmatpush.msra.mxu0 %v1165
        %1279 = vmatpush.msra.mxu0 %v1161
        %1280 = vmatpush.msra.mxu0 %v1157
        %1281 = vmatpush.msra.mxu0 %v1153
        %1282 = vmatpush.msra.mxu0 %v1149
        %1283 = vmatpush.msra.mxu0 %v1145
        %1284 = vmatpush.msra.mxu0 %v1141
        %1285 = vmatpush.msra.mxu0 %v1137
        %1286 = vmatpush.msra.mxu0 %v1133
        %1287 = vmatpush.msra.mxu0 %v1129
        %1288 = vmatmul.f32.gmra.mxu0 %v932
        %v1289 = vpop.f32.mrf.mxu0
        %v1290 = vadd.f32 %v1267, %v1289
        %1291 = vmatmul.f32.gmra.mxu0 %v936
        %v1292 = vpop.f32.mrf.mxu0
        %v1293 = vadd.f32 %v1270, %v1292
        %1294 = vdwg.mxu0
        %1295 = vmatpush.msra.mxu0 %v998
        %1296 = vmatpush.msra.mxu0 %v994
        %1297 = vmatpush.msra.mxu0 %v990
        %1298 = vmatpush.msra.mxu0 %v986
        %1299 = vmatpush.msra.mxu0 %v982
        %1300 = vmatpush.msra.mxu0 %v978
        %1301 = vmatpush.msra.mxu0 %v974
        %1302 = vmatpush.msra.mxu0 %v970
        %1303 = vmatpush.msra.mxu0 %v966
        %1304 = vmatpush.msra.mxu0 %v962
        %1305 = vmatpush.msra.mxu0 %v958
        %1306 = vmatpush.msra.mxu0 %v954
        %1307 = vmatpush.msra.mxu0 %v950
        %1308 = vmatpush.msra.mxu0 %v946
        %1309 = vmatpush.msra.mxu0 %v942
        %1310 = vmatpush.msra.mxu0 %v938
        %1311 = vmatmul.f32.gmra.mxu0 %v929
        %v1312 = vpop.f32.mrf.mxu0
        %v1313 = vadd.f32 %v1196, %v1312
        %1314 = vmatmul.f32.gmra.mxu0 %v933
        %v1315 = vpop.f32.mrf.mxu0
        %v1316 = vadd.f32 %v1196, %v1315
        %1317 = vdwg.mxu0
        %1318 = vmatpush.msra.mxu0 %v1062
        %1319 = vmatpush.msra.mxu0 %v1058
        %1320 = vmatpush.msra.mxu0 %v1054
        %1321 = vmatpush.msra.mxu0 %v1050
        %1322 = vmatpush.msra.mxu0 %v1046
        %1323 = vmatpush.msra.mxu0 %v1042
        %1324 = vmatpush.msra.mxu0 %v1038
        %1325 = vmatpush.msra.mxu0 %v1034
        %1326 = vmatpush.msra.mxu0 %v1030
        %1327 = vmatpush.msra.mxu0 %v1026
        %1328 = vmatpush.msra.mxu0 %v1022
        %1329 = vmatpush.msra.mxu0 %v1018
        %1330 = vmatpush.msra.mxu0 %v1014
        %1331 = vmatpush.msra.mxu0 %v1010
        %1332 = vmatpush.msra.mxu0 %v1006
        %1333 = vmatpush.msra.mxu0 %v1002
        %1334 = vmatmul.f32.gmra.mxu0 %v930
        %v1335 = vpop.f32.mrf.mxu0
        %v1336 = vadd.f32 %v1313, %v1335
        %1337 = vmatmul.f32.gmra.mxu0 %v934
        %v1338 = vpop.f32.mrf.mxu0
        %v1339 = vadd.f32 %v1316, %v1338
        %1340 = vdwg.mxu0
        %1341 = vmatpush.msra.mxu0 %v1126
        %1342 = vmatpush.msra.mxu0 %v1122
        %1343 = vmatpush.msra.mxu0 %v1118
        %1344 = vmatpush.msra.mxu0 %v1114
        %1345 = vmatpush.msra.mxu0 %v1110
        %1346 = vmatpush.msra.mxu0 %v1106
        %1347 = vmatpush.msra.mxu0 %v1102
        %1348 = vmatpush.msra.mxu0 %v1098
        %1349 = vmatpush.msra.mxu0 %v1094
        %1350 = vmatpush.msra.mxu0 %v1090
        %1351 = vmatpush.msra.mxu0 %v1086
        %1352 = vmatpush.msra.mxu0 %v1082
        %1353 = vmatpush.msra.mxu0 %v1078
        %1354 = vmatpush.msra.mxu0 %v1074
        %1355 = vmatpush.msra.mxu0 %v1070
        %1356 = vmatpush.msra.mxu0 %v1066
        %1357 = vmatmul.f32.gmra.mxu0 %v931
        %v1358 = vpop.f32.mrf.mxu0
        %v1359 = vadd.f32 %v1336, %v1358
        %1360 = vmatmul.f32.gmra.mxu0 %v935
        %v1361 = vpop.f32.mrf.mxu0
        %v1362 = vadd.f32 %v1339, %v1361
        %1363 = vdwg.mxu0
        %1364 = vmatpush.msra.mxu0 %v1190
        %1365 = vmatpush.msra.mxu0 %v1186
        %1366 = vmatpush.msra.mxu0 %v1182
        %1367 = vmatpush.msra.mxu0 %v1178
        %1368 = vmatpush.msra.mxu0 %v1174
        %1369 = vmatpush.msra.mxu0 %v1170
        %1370 = vmatpush.msra.mxu0 %v1166
        %1371 = vmatpush.msra.mxu0 %v1162
        %1372 = vmatpush.msra.mxu0 %v1158
        %1373 = vmatpush.msra.mxu0 %v1154
        %1374 = vmatpush.msra.mxu0 %v1150
        %1375 = vmatpush.msra.mxu0 %v1146
        %1376 = vmatpush.msra.mxu0 %v1142
        %1377 = vmatpush.msra.mxu0 %v1138
        %1378 = vmatpush.msra.mxu0 %v1134
        %1379 = vmatpush.msra.mxu0 %v1130
        %1380 = vmatmul.f32.gmra.mxu0 %v932
        %v1381 = vpop.f32.mrf.mxu0
        %v1382 = vadd.f32 %v1359, %v1381
        %1383 = vmatmul.f32.gmra.mxu0 %v936
        %v1384 = vpop.f32.mrf.mxu0
        %v1385 = vadd.f32 %v1362, %v1384
        %1386 = vdwg.mxu0
        %1387 = vmatpush.msra.mxu0 %v999
        %1388 = vmatpush.msra.mxu0 %v995
        %1389 = vmatpush.msra.mxu0 %v991
        %1390 = vmatpush.msra.mxu0 %v987
        %1391 = vmatpush.msra.mxu0 %v983
        %1392 = vmatpush.msra.mxu0 %v979
        %1393 = vmatpush.msra.mxu0 %v975
        %1394 = vmatpush.msra.mxu0 %v971
        %1395 = vmatpush.msra.mxu0 %v967
        %1396 = vmatpush.msra.mxu0 %v963
        %1397 = vmatpush.msra.mxu0 %v959
        %1398 = vmatpush.msra.mxu0 %v955
        %1399 = vmatpush.msra.mxu0 %v951
        %1400 = vmatpush.msra.mxu0 %v947
        %1401 = vmatpush.msra.mxu0 %v943
        %1402 = vmatpush.msra.mxu0 %v939
        %1403 = vmatmul.f32.gmra.mxu0 %v929
        %v1404 = vpop.f32.mrf.mxu0
        %v1405 = vadd.f32 %v1197, %v1404
        %1406 = vmatmul.f32.gmra.mxu0 %v933
        %v1407 = vpop.f32.mrf.mxu0
        %v1408 = vadd.f32 %v1197, %v1407
        %1409 = vdwg.mxu0
        %1410 = vmatpush.msra.mxu0 %v1063
        %1411 = vmatpush.msra.mxu0 %v1059
        %1412 = vmatpush.msra.mxu0 %v1055
        %1413 = vmatpush.msra.mxu0 %v1051
        %1414 = vmatpush.msra.mxu0 %v1047
        %1415 = vmatpush.msra.mxu0 %v1043
        %1416 = vmatpush.msra.mxu0 %v1039
        %1417 = vmatpush.msra.mxu0 %v1035
        %1418 = vmatpush.msra.mxu0 %v1031
        %1419 = vmatpush.msra.mxu0 %v1027
        %1420 = vmatpush.msra.mxu0 %v1023
        %1421 = vmatpush.msra.mxu0 %v1019
        %1422 = vmatpush.msra.mxu0 %v1015
        %1423 = vmatpush.msra.mxu0 %v1011
        %1424 = vmatpush.msra.mxu0 %v1007
        %1425 = vmatpush.msra.mxu0 %v1003
        %1426 = vmatmul.f32.gmra.mxu0 %v930
        %v1427 = vpop.f32.mrf.mxu0
        %v1428 = vadd.f32 %v1405, %v1427
        %1429 = vmatmul.f32.gmra.mxu0 %v934
        %v1430 = vpop.f32.mrf.mxu0
        %v1431 = vadd.f32 %v1408, %v1430
        %1432 = vdwg.mxu0
        %1433 = vmatpush.msra.mxu0 %v1127
        %1434 = vmatpush.msra.mxu0 %v1123
        %1435 = vmatpush.msra.mxu0 %v1119
        %1436 = vmatpush.msra.mxu0 %v1115
        %1437 = vmatpush.msra.mxu0 %v1111
        %1438 = vmatpush.msra.mxu0 %v1107
        %1439 = vmatpush.msra.mxu0 %v1103
        %1440 = vmatpush.msra.mxu0 %v1099
        %1441 = vmatpush.msra.mxu0 %v1095
        %1442 = vmatpush.msra.mxu0 %v1091
        %1443 = vmatpush.msra.mxu0 %v1087
        %1444 = vmatpush.msra.mxu0 %v1083
        %1445 = vmatpush.msra.mxu0 %v1079
        %1446 = vmatpush.msra.mxu0 %v1075
        %1447 = vmatpush.msra.mxu0 %v1071
        %1448 = vmatpush.msra.mxu0 %v1067
        %1449 = vmatmul.f32.gmra.mxu0 %v931
        %v1450 = vpop.f32.mrf.mxu0
        %v1451 = vadd.f32 %v1428, %v1450
        %1452 = vmatmul.f32.gmra.mxu0 %v935
        %v1453 = vpop.f32.mrf.mxu0
        %v1454 = vadd.f32 %v1431, %v1453
        %1455 = vdwg.mxu0
        %1456 = vmatpush.msra.mxu0 %v1191
        %1457 = vmatpush.msra.mxu0 %v1187
        %1458 = vmatpush.msra.mxu0 %v1183
        %1459 = vmatpush.msra.mxu0 %v1179
        %1460 = vmatpush.msra.mxu0 %v1175
        %1461 = vmatpush.msra.mxu0 %v1171
        %1462 = vmatpush.msra.mxu0 %v1167
        %1463 = vmatpush.msra.mxu0 %v1163
        %1464 = vmatpush.msra.mxu0 %v1159
        %1465 = vmatpush.msra.mxu0 %v1155
        %1466 = vmatpush.msra.mxu0 %v1151
        %1467 = vmatpush.msra.mxu0 %v1147
        %1468 = vmatpush.msra.mxu0 %v1143
        %1469 = vmatpush.msra.mxu0 %v1139
        %1470 = vmatpush.msra.mxu0 %v1135
        %1471 = vmatpush.msra.mxu0 %v1131
        %1472 = vmatmul.f32.gmra.mxu0 %v932
        %v1473 = vpop.f32.mrf.mxu0
        %v1474 = vadd.f32 %v1451, %v1473
        %1475 = vmatmul.f32.gmra.mxu0 %v936
        %v1476 = vpop.f32.mrf.mxu0
        %v1477 = vadd.f32 %v1454, %v1476
        %1478 = vdwg.mxu0
        %1479 = vmatpush.msra.mxu0 %v1000
        %1480 = vmatpush.msra.mxu0 %v996
        %1481 = vmatpush.msra.mxu0 %v992
        %1482 = vmatpush.msra.mxu0 %v988
        %1483 = vmatpush.msra.mxu0 %v984
        %1484 = vmatpush.msra.mxu0 %v980
        %1485 = vmatpush.msra.mxu0 %v976
        %1486 = vmatpush.msra.mxu0 %v972
        %1487 = vmatpush.msra.mxu0 %v968
        %1488 = vmatpush.msra.mxu0 %v964
        %1489 = vmatpush.msra.mxu0 %v960
        %1490 = vmatpush.msra.mxu0 %v956
        %1491 = vmatpush.msra.mxu0 %v952
        %1492 = vmatpush.msra.mxu0 %v948
        %1493 = vmatpush.msra.mxu0 %v944
        %1494 = vmatpush.msra.mxu0 %v940
        %1495 = vmatmul.f32.gmra.mxu0 %v929
        %v1496 = vpop.f32.mrf.mxu0
        %v1497 = vadd.f32 %v1198, %v1496
        %1498 = vmatmul.f32.gmra.mxu0 %v933
        %v1499 = vpop.f32.mrf.mxu0
        %v1500 = vadd.f32 %v1198, %v1499
        %1501 = vdwg.mxu0
        %1502 = vmatpush.msra.mxu0 %v1064
        %1503 = vmatpush.msra.mxu0 %v1060
        %1504 = vmatpush.msra.mxu0 %v1056
        %1505 = vmatpush.msra.mxu0 %v1052
        %1506 = vmatpush.msra.mxu0 %v1048
        %1507 = vmatpush.msra.mxu0 %v1044
        %1508 = vmatpush.msra.mxu0 %v1040
        %1509 = vmatpush.msra.mxu0 %v1036
        %1510 = vmatpush.msra.mxu0 %v1032
        %1511 = vmatpush.msra.mxu0 %v1028
        %1512 = vmatpush.msra.mxu0 %v1024
        %1513 = vmatpush.msra.mxu0 %v1020
        %1514 = vmatpush.msra.mxu0 %v1016
        %1515 = vmatpush.msra.mxu0 %v1012
        %1516 = vmatpush.msra.mxu0 %v1008
        %1517 = vmatpush.msra.mxu0 %v1004
        %1518 = vmatmul.f32.gmra.mxu0 %v930
        %v1519 = vpop.f32.mrf.mxu0
        %v1520 = vadd.f32 %v1497, %v1519
        %1521 = vmatmul.f32.gmra.mxu0 %v934
        %v1522 = vpop.f32.mrf.mxu0
        %v1523 = vadd.f32 %v1500, %v1522
        %1524 = vdwg.mxu0
        %1525 = vmatpush.msra.mxu0 %v1128
        %1526 = vmatpush.msra.mxu0 %v1124
        %1527 = vmatpush.msra.mxu0 %v1120
        %1528 = vmatpush.msra.mxu0 %v1116
        %1529 = vmatpush.msra.mxu0 %v1112
        %1530 = vmatpush.msra.mxu0 %v1108
        %1531 = vmatpush.msra.mxu0 %v1104
        %1532 = vmatpush.msra.mxu0 %v1100
        %1533 = vmatpush.msra.mxu0 %v1096
        %1534 = vmatpush.msra.mxu0 %v1092
        %1535 = vmatpush.msra.mxu0 %v1088
        %1536 = vmatpush.msra.mxu0 %v1084
        %1537 = vmatpush.msra.mxu0 %v1080
        %1538 = vmatpush.msra.mxu0 %v1076
        %1539 = vmatpush.msra.mxu0 %v1072
        %1540 = vmatpush.msra.mxu0 %v1068
        %1541 = vmatmul.f32.gmra.mxu0 %v931
        %v1542 = vpop.f32.mrf.mxu0
        %v1543 = vadd.f32 %v1520, %v1542
        %1544 = vmatmul.f32.gmra.mxu0 %v935
        %v1545 = vpop.f32.mrf.mxu0
        %v1546 = vadd.f32 %v1523, %v1545
        %1547 = vdwg.mxu0
        %1548 = vmatpush.msra.mxu0 %v1192
        %1549 = vmatpush.msra.mxu0 %v1188
        %1550 = vmatpush.msra.mxu0 %v1184
        %1551 = vmatpush.msra.mxu0 %v1180
        %1552 = vmatpush.msra.mxu0 %v1176
        %1553 = vmatpush.msra.mxu0 %v1172
        %1554 = vmatpush.msra.mxu0 %v1168
        %1555 = vmatpush.msra.mxu0 %v1164
        %1556 = vmatpush.msra.mxu0 %v1160
        %1557 = vmatpush.msra.mxu0 %v1156
        %1558 = vmatpush.msra.mxu0 %v1152
        %1559 = vmatpush.msra.mxu0 %v1148
        %1560 = vmatpush.msra.mxu0 %v1144
        %1561 = vmatpush.msra.mxu0 %v1140
        %1562 = vmatpush.msra.mxu0 %v1136
        %1563 = vmatpush.msra.mxu0 %v1132
        %1564 = vmatmul.f32.gmra.mxu0 %v932
        %v1565 = vpop.f32.mrf.mxu0
        %v1566 = vadd.f32 %v1543, %v1565
        %1567 = vmatmul.f32.gmra.mxu0 %v936
        %v1568 = vpop.f32.mrf.mxu0
        %v1569 = vadd.f32 %v1546, %v1568
        %1570 = vdwg.mxu0
        %v1571 = vsub.f32 0.0, %v1290
        %v1572 = vsub.f32 0.0, %v1382
        %v1573 = vsub.f32 0.0, %v1474
        %v1574 = vsub.f32 0.0, %v1566
        %v1575 = vsub.f32 0.0, %v1293
        %v1576 = vsub.f32 0.0, %v1385
        %v1577 = vsub.f32 0.0, %v1477
        %v1578 = vsub.f32 0.0, %v1569
        %v1579 = vmul.f32 %v1571, 1.442695
        %v1580 = vpow.pop %v1579
        %v1581 = vmul.f32 %v1572, 1.442695
        %v1582 = vpow.pop %v1581
        %v1583 = vmul.f32 %v1573, 1.442695
        %v1584 = vpow.pop %v1583
        %v1585 = vmul.f32 %v1574, 1.442695
        %v1586 = vpow.pop %v1585
        %v1587 = vmul.f32 %v1575, 1.442695
        %v1588 = vpow.pop %v1587
        %v1589 = vmul.f32 %v1576, 1.442695
        %v1590 = vpow.pop %v1589
        %v1591 = vmul.f32 %v1577, 1.442695
        %v1592 = vpow.pop %v1591
        %v1593 = vmul.f32 %v1578, 1.442695
        %v1594 = vpow.pop %v1593
        %v1595 = vadd.f32 %v1580, 1.0
        %v1596 = vadd.f32 %v1582, 1.0
        %v1597 = vadd.f32 %v1584, 1.0
        %v1598 = vadd.f32 %v1586, 1.0
        %v1599 = vadd.f32 %v1588, 1.0
        %v1600 = vadd.f32 %v1590, 1.0
        %v1601 = vadd.f32 %v1592, 1.0
        %v1602 = vadd.f32 %v1594, 1.0
        %v1603 = vrcp.pop %v1595
        %v1604 = vrcp.pop %v1596
        %v1605 = vrcp.pop %v1597
        %v1606 = vrcp.pop %v1598
        %v1607 = vrcp.pop %v1599
        %v1608 = vrcp.pop %v1600
        %v1609 = vrcp.pop %v1601
        %v1610 = vrcp.pop %v1602
        %v1611 = vmul.f32 %v1290, %v1603
        %v1612 = vmul.f32 %v1382, %v1604
        %v1613 = vmul.f32 %v1474, %v1605
        %v1614 = vmul.f32 %v1566, %v1606
        %v1615 = vmul.f32 %v1293, %v1607
        %v1616 = vmul.f32 %v1385, %v1608
        %v1617 = vmul.f32 %v1477, %v1609
        %v1618 = vmul.f32 %v1569, %v1610
        %v1619 = vld [vmem:[#allocation13] sm:$0xff]
        %v1620 = vld [vmem:[#allocation13 + $0x8] sm:$0xff]
        %v1621 = vld [vmem:[#allocation13 + $0x10] sm:$0xff]
        %v1622 = vld [vmem:[#allocation13 + $0x18] sm:$0xff]
        %v1623 = vld [vmem:[#allocation13 + $0x20] sm:$0xff]
        %v1624 = vld [vmem:[#allocation13 + $0x28] sm:$0xff]
        %v1625 = vld [vmem:[#allocation13 + $0x30] sm:$0xff]
        %v1626 = vld [vmem:[#allocation13 + $0x38] sm:$0xff]
        %v1627 = vld [vmem:[#allocation13 + $0x40] sm:$0xff]
        %v1628 = vld [vmem:[#allocation13 + $0x48] sm:$0xff]
        %v1629 = vld [vmem:[#allocation13 + $0x50] sm:$0xff]
        %v1630 = vld [vmem:[#allocation13 + $0x58] sm:$0xff]
        %v1631 = vld [vmem:[#allocation13 + $0x60] sm:$0xff]
        %v1632 = vld [vmem:[#allocation13 + $0x68] sm:$0xff]
        %v1633 = vld [vmem:[#allocation13 + $0x70] sm:$0xff]
        %v1634 = vld [vmem:[#allocation13 + $0x78] sm:$0xff]
        %v1635 = vld [vmem:[#allocation13 + $0x80] sm:$0xff]
        %v1636 = vld [vmem:[#allocation13 + $0x88] sm:$0xff]
        %v1637 = vld [vmem:[#allocation13 + $0x90] sm:$0xff]
        %v1638 = vld [vmem:[#allocation13 + $0x98] sm:$0xff]
        %v1639 = vld [vmem:[#allocation13 + $0xa0] sm:$0xff]
        %v1640 = vld [vmem:[#allocation13 + $0xa8] sm:$0xff]
        %v1641 = vld [vmem:[#allocation13 + $0xb0] sm:$0xff]
        %v1642 = vld [vmem:[#allocation13 + $0xb8] sm:$0xff]
        %v1643 = vld [vmem:[#allocation13 + $0xc0] sm:$0xff]
        %v1644 = vld [vmem:[#allocation13 + $0xc8] sm:$0xff]
        %v1645 = vld [vmem:[#allocation13 + $0xd0] sm:$0xff]
        %v1646 = vld [vmem:[#allocation13 + $0xd8] sm:$0xff]
        %v1647 = vld [vmem:[#allocation13 + $0xe0] sm:$0xff]
        %v1648 = vld [vmem:[#allocation13 + $0xe8] sm:$0xff]
        %v1649 = vld [vmem:[#allocation13 + $0xf0] sm:$0xff]
        %v1650 = vld [vmem:[#allocation13 + $0xf8] sm:$0xff]
        %v1651 = vld [vmem:[#allocation13 + $0x100] sm:$0xff]
        %v1652 = vld [vmem:[#allocation13 + $0x108] sm:$0xff]
        %v1653 = vld [vmem:[#allocation13 + $0x110] sm:$0xff]
        %v1654 = vld [vmem:[#allocation13 + $0x118] sm:$0xff]
        %v1655 = vld [vmem:[#allocation13 + $0x120] sm:$0xff]
        %v1656 = vld [vmem:[#allocation13 + $0x128] sm:$0xff]
        %v1657 = vld [vmem:[#allocation13 + $0x130] sm:$0xff]
        %v1658 = vld [vmem:[#allocation13 + $0x138] sm:$0xff]
        %v1659 = vld [vmem:[#allocation13 + $0x140] sm:$0xff]
        %v1660 = vld [vmem:[#allocation13 + $0x148] sm:$0xff]
        %v1661 = vld [vmem:[#allocation13 + $0x150] sm:$0xff]
        %v1662 = vld [vmem:[#allocation13 + $0x158] sm:$0xff]
        %v1663 = vld [vmem:[#allocation13 + $0x160] sm:$0xff]
        %v1664 = vld [vmem:[#allocation13 + $0x168] sm:$0xff]
        %v1665 = vld [vmem:[#allocation13 + $0x170] sm:$0xff]
        %v1666 = vld [vmem:[#allocation13 + $0x178] sm:$0xff]
        %v1667 = vld [vmem:[#allocation13 + $0x180] sm:$0xff]
        %v1668 = vld [vmem:[#allocation13 + $0x188] sm:$0xff]
        %v1669 = vld [vmem:[#allocation13 + $0x190] sm:$0xff]
        %v1670 = vld [vmem:[#allocation13 + $0x198] sm:$0xff]
        %v1671 = vld [vmem:[#allocation13 + $0x1a0] sm:$0xff]
        %v1672 = vld [vmem:[#allocation13 + $0x1a8] sm:$0xff]
        %v1673 = vld [vmem:[#allocation13 + $0x1b0] sm:$0xff]
        %v1674 = vld [vmem:[#allocation13 + $0x1b8] sm:$0xff]
        %v1675 = vld [vmem:[#allocation13 + $0x1c0] sm:$0xff]
        %v1676 = vld [vmem:[#allocation13 + $0x1c8] sm:$0xff]
        %v1677 = vld [vmem:[#allocation13 + $0x1d0] sm:$0xff]
        %v1678 = vld [vmem:[#allocation13 + $0x1d8] sm:$0xff]
        %v1679 = vld [vmem:[#allocation13 + $0x1e0] sm:$0xff]
        %v1680 = vld [vmem:[#allocation13 + $0x1e8] sm:$0xff]
        %v1681 = vld [vmem:[#allocation13 + $0x1f0] sm:$0xff]
        %v1682 = vld [vmem:[#allocation13 + $0x1f8] sm:$0xff]
        %v1683 = vld [vmem:[%s10] sm:$0x1]
        %v1685 = vperm.slane %v1683, 0
        %1687 = vmatpush.msra.mxu0 %v1634
        %1688 = vmatpush.msra.mxu0 %v1633
        %1689 = vmatpush.msra.mxu0 %v1632
        %1690 = vmatpush.msra.mxu0 %v1631
        %1691 = vmatpush.msra.mxu0 %v1630
        %1692 = vmatpush.msra.mxu0 %v1629
        %1693 = vmatpush.msra.mxu0 %v1628
        %1694 = vmatpush.msra.mxu0 %v1627
        %1695 = vmatpush.msra.mxu0 %v1626
        %1696 = vmatpush.msra.mxu0 %v1625
        %1697 = vmatpush.msra.mxu0 %v1624
        %1698 = vmatpush.msra.mxu0 %v1623
        %1699 = vmatpush.msra.mxu0 %v1622
        %1700 = vmatpush.msra.mxu0 %v1621
        %1701 = vmatpush.msra.mxu0 %v1620
        %1702 = vmatpush.msra.mxu0 %v1619
        %1703 = vmatmul.f32.gmra.mxu0 %v1611
        %v1704 = vpop.f32.mrf.mxu0
        %v1705 = vadd.f32 %v1685, %v1704
        %1706 = vmatmul.f32.gmra.mxu0 %v1615
        %v1707 = vpop.f32.mrf.mxu0
        %v1708 = vadd.f32 %v1685, %v1707
        %1709 = vdwg.mxu0
        %1710 = vmatpush.msra.mxu0 %v1650
        %1711 = vmatpush.msra.mxu0 %v1649
        %1712 = vmatpush.msra.mxu0 %v1648
        %1713 = vmatpush.msra.mxu0 %v1647
        %1714 = vmatpush.msra.mxu0 %v1646
        %1715 = vmatpush.msra.mxu0 %v1645
        %1716 = vmatpush.msra.mxu0 %v1644
        %1717 = vmatpush.msra.mxu0 %v1643
        %1718 = vmatpush.msra.mxu0 %v1642
        %1719 = vmatpush.msra.mxu0 %v1641
        %1720 = vmatpush.msra.mxu0 %v1640
        %1721 = vmatpush.msra.mxu0 %v1639
        %1722 = vmatpush.msra.mxu0 %v1638
        %1723 = vmatpush.msra.mxu0 %v1637
        %1724 = vmatpush.msra.mxu0 %v1636
        %1725 = vmatpush.msra.mxu0 %v1635
        %1726 = vmatmul.f32.gmra.mxu0 %v1612
        %v1727 = vpop.f32.mrf.mxu0
        %v1728 = vadd.f32 %v1705, %v1727
        %1729 = vmatmul.f32.gmra.mxu0 %v1616
        %v1730 = vpop.f32.mrf.mxu0
        %v1731 = vadd.f32 %v1708, %v1730
        %1732 = vdwg.mxu0
        %1733 = vmatpush.msra.mxu0 %v1666
        %1734 = vmatpush.msra.mxu0 %v1665
        %1735 = vmatpush.msra.mxu0 %v1664
        %1736 = vmatpush.msra.mxu0 %v1663
        %1737 = vmatpush.msra.mxu0 %v1662
        %1738 = vmatpush.msra.mxu0 %v1661
        %1739 = vmatpush.msra.mxu0 %v1660
        %1740 = vmatpush.msra.mxu0 %v1659
        %1741 = vmatpush.msra.mxu0 %v1658
        %1742 = vmatpush.msra.mxu0 %v1657
        %1743 = vmatpush.msra.mxu0 %v1656
        %1744 = vmatpush.msra.mxu0 %v1655
        %1745 = vmatpush.msra.mxu0 %v1654
        %1746 = vmatpush.msra.mxu0 %v1653
        %1747 = vmatpush.msra.mxu0 %v1652
        %1748 = vmatpush.msra.mxu0 %v1651
        %1749 = vmatmul.f32.gmra.mxu0 %v1613
        %v1750 = vpop.f32.mrf.mxu0
        %v1751 = vadd.f32 %v1728, %v1750
        %1752 = vmatmul.f32.gmra.mxu0 %v1617
        %v1753 = vpop.f32.mrf.mxu0
        %v1754 = vadd.f32 %v1731, %v1753
        %1755 = vdwg.mxu0
        %1756 = vmatpush.msra.mxu0 %v1682
        %1757 = vmatpush.msra.mxu0 %v1681
        %1758 = vmatpush.msra.mxu0 %v1680
        %1759 = vmatpush.msra.mxu0 %v1679
        %1760 = vmatpush.msra.mxu0 %v1678
        %1761 = vmatpush.msra.mxu0 %v1677
        %1762 = vmatpush.msra.mxu0 %v1676
        %1763 = vmatpush.msra.mxu0 %v1675
        %1764 = vmatpush.msra.mxu0 %v1674
        %1765 = vmatpush.msra.mxu0 %v1673
        %1766 = vmatpush.msra.mxu0 %v1672
        %1767 = vmatpush.msra.mxu0 %v1671
        %1768 = vmatpush.msra.mxu0 %v1670
        %1769 = vmatpush.msra.mxu0 %v1669
        %1770 = vmatpush.msra.mxu0 %v1668
        %1771 = vmatpush.msra.mxu0 %v1667
        %1772 = vmatmul.f32.gmra.mxu0 %v1614
        %v1773 = vpop.f32.mrf.mxu0
        %v1774 = vadd.f32 %v1751, %v1773
        %1775 = vmatmul.f32.gmra.mxu0 %v1618
        %v1776 = vpop.f32.mrf.mxu0
        %v1777 = vadd.f32 %v1754, %v1776
        %1778 = vdwg.mxu0
        %1779 = vst [vmem:[%s533] sm:$0xff] %v1774
        %1780 = vst [vmem:[%s533 + $0x8] sm:$0xff] %v1777
        %s1781 = sand.u32 %s285, 1
        %s1782 = scalar_lea.sflag [#allocation4], %s1781
        %s1783 = sand.u32 %s285, 1
        %s1784 = smul.addr %s1783, 16
        %s1785 = scalar_lea.vmem [#allocation14], %s1784
        // Predicated region
        $region93: #{tpu_custom_call.1} parent=63 // pred_check
          %p1786 = pneg %p295
        $region94: #{tpu_custom_call.1} parent=63 // pred_check_branch
          %1788 = sbr.rel (%p1786) target = $region96
        $region95: #{tpu_custom_call.1} parent=63 // pred_region
          %s1789 = smul.u32 2, %s31
          %1791 = vsyncadd %s1782, 0
          %s1792 = smul.addr %s1789, 8
          %s1793 = scalar_lea.hbm %s11, %s1792
          %s1794 = sshll.u32 %s1785, 4
          %s1795 = int_to_ptr.vmem [resolvable:$true] %s1794
          %s1796 = sshll.u32 %s1793, 4
          %s1797 = int_to_ptr.hbm [resolvable:$true] %s1796
          %1802 = dma.vmem_to_hbm [thread:$0]  %s1795, 256, %s1797, %s1782, 128, 128, 8
        $region96: #{tpu_custom_call.1} parent=63 // pred_fallthru
          _
      $region64: #{tpu_custom_call.1} parent=5 // pred_fallthru
        _
      %p1803 = scmp.le.s32.totalorder 2, %s26
      // Predicated region
      $region97: #{tpu_custom_call.1} parent=5 // pred_check
        %p1804 = pneg %p1803
      $region98: #{tpu_custom_call.1} parent=5 // pred_check_branch
        %1806 = sbr.rel (%p1804) target = $region100
      $region99: #{tpu_custom_call.1} parent=5 // pred_region
        %s1807 = ssub.s32 %s26, 2
        // Predicated region
        $region101: #{tpu_custom_call.1} parent=99 // pred_check
          %p1808 = pneg %p301
        $region102: #{tpu_custom_call.1} parent=99 // pred_check_branch
          %1810 = sbr.rel (%p1808) target = $region104
        $region103: #{tpu_custom_call.1} parent=99 // pred_region
          %s1811 = sand.u32 %s286, 1
          %s1812 = scalar_lea.sflag [#allocation4], %s1811
          %s1813 = sand.u32 %s286, 1
          %s1814 = smul.addr %s1813, 16
          %s1815 = scalar_lea.vmem [#allocation14], %s1814
          %1817 = dma.done %s1812, 256
        $region104: #{tpu_custom_call.1} parent=99 // pred_fallthru
          _
      $region100: #{tpu_custom_call.1} parent=5 // pred_fallthru
        _
    $region6: #{tpu_custom_call.1} parent=1 // loop_footer
      %s30 = sadd.s32 1, %s26
    $region7: #{tpu_custom_call.1} parent=1 // loop_footer_branch
      %25 = sbr.rel target = $region3
    $region8: #{tpu_custom_call.1} parent=1 // loop_exit
      _
    %1818 = vsyncpa [#allocation3], 1
    %s1819 = scalar_lea.sflag [#allocation3], 1
    %1820 = vsyncpa %s1819, 1
    %1821 = vsyncpa [#allocation6], 1
    %1822 = vsyncpa [#allocation9], 1
    %1823 = vsyncpa [#allocation12], 1
    %1824 = vsyncpa [#allocation4], 1
    %s1825 = scalar_lea.sflag [#allocation4], 1
    %1826 = vsyncpa %s1825, 1

</llo_original>
